<compile_context>
chip_gen: v6e
topology: v6e:2x2x1
jax: 0.10.0
libtpu: 0.0.40
codegen_flags: <defaults>
</compile_context>

<pallas_src>
import numpy as np
import jax
import jax.numpy as jnp
from jax.experimental import pallas as pl
from jax.experimental.pallas import tpu as pltpu

_BN_EPS = 1e-5
# Tap order: dy (row offset) outer, dx (col offset) inner -> matches a
# row-major reshape of the (3, 3, ...) weight tensor (k = (dy+1)*3 + (dx+1)).
_TAPS = [(dy, dx) for dy in (-1, 0, 1) for dx in (-1, 0, 1)]


def _cparams():
    # Per-step working set is tiny at these channel counts; 32 MiB stays inside
    # the scoped-VMEM defaults of v5e/v6e and the 64 MiB physical VMEM of v7x.
    return pltpu.CompilerParams(dimension_semantics=("parallel",),
                                vmem_limit_bytes=32 * 1024 * 1024)


# ---------------------------------------------------------------------------
# Host-side constants (built from static shapes; tiny)
# ---------------------------------------------------------------------------
def _interp_matrix(n_in, n_out):
    """1-D bilinear interpolation matrix, align_corners=True semantics."""
    m = np.zeros((n_out, n_in), np.float32)
    if n_out == 1:
        m[0, 0] = 1.0                     # align_corners=True picks src index 0
        return m
    src = np.arange(n_out, dtype=np.float64) * (n_in - 1) / (n_out - 1)
    lo = np.minimum(np.floor(src).astype(np.int64), n_in - 1)
    hi = np.minimum(lo + 1, n_in - 1)
    frac = (src - lo).astype(np.float32)
    m[np.arange(n_out), lo] += 1.0 - frac
    m[np.arange(n_out), hi] += frac
    return m


def _tap_masks(H, W):
    """(9, H*W) validity masks: 1 where the shifted tap stays inside the image
    (anything else is the conv's zero padding)."""
    p = np.arange(H * W)
    y, x = p // W, p % W
    ms = []
    for dy, dx in _TAPS:
        ok = (y + dy >= 0) & (y + dy < H) & (x + dx >= 0) & (x + dx < W)
        ms.append(ok.astype(np.float32))
    return np.stack(ms, axis=0)


# ---------------------------------------------------------------------------
# Kernel 1: fused separable bilinear x2 upsample (one (n, c) slab per step)
# ---------------------------------------------------------------------------
def _upsample_kernel(x_ref, uh_ref, uwt_ref, o_ref):
    # out = Uh @ x @ Uw^T, both dots entirely in VMEM (f32), stored as bf16.
    t = jnp.dot(x_ref[0], uwt_ref[...], preferred_element_type=jnp.float32)
    o_ref[0] = jnp.dot(uh_ref[...], t,
                       preferred_element_type=jnp.float32).astype(o_ref.dtype)


def bilinear_upsample_x2(x_nchw, out_dtype=jnp.bfloat16):
    N, C, H, W = x_nchw.shape
    Ho, Wo = 2 * H, 2 * W
    uh = jnp.asarray(_interp_matrix(H, Ho))        # (Ho, H)  f32
    uwt = jnp.asarray(_interp_matrix(W, Wo).T)     # (W, Wo)  f32
    out = pl.pallas_call(
        _upsample_kernel,
        out_shape=jax.ShapeDtypeStruct((N * C, Ho, Wo), out_dtype),
        grid=(N * C,),
        in_specs=[pl.BlockSpec((1, H, W), lambda i: (i, 0, 0)),
                  pl.BlockSpec((Ho, H), lambda i: (0, 0)),
                  pl.BlockSpec((W, Wo), lambda i: (0, 0))],
        out_specs=pl.BlockSpec((1, Ho, Wo), lambda i: (i, 0, 0)),
        compiler_params=_cparams(),
    )(x_nchw.reshape(N * C, H, W), uh, uwt)        # reshapes are free (layout)
    return out.reshape(N, C, Ho, Wo)


# ---------------------------------------------------------------------------
# Kernel 2: per-image 3x3 conv (in-VMEM im2col via roll+mask) + BN partials.
# Optionally folds the previous layer's BatchNorm+ReLU into the input load.
# ---------------------------------------------------------------------------
def _make_conv_kernel(chans, cout, H, W, fuse_input_affine):
    L = H * W
    cin = sum(chans)
    offs = [int(v) for v in np.cumsum([0] + list(chans))[:-1]]
    n_src = len(chans)

    def kernel(*refs):
        x_refs = refs[:n_src]
        w_ref, m_ref = refs[n_src], refs[n_src + 1]
        pos = n_src + 2
        if fuse_input_affine:
            sc_ref, sh_ref = refs[pos], refs[pos + 1]
            pos += 2
        y_ref, s_ref = refs[pos], refs[pos + 1]

        wts = w_ref[...]                                   # (Cout, 9*Cin) bf16
        msk = m_ref[...]                                   # (9, L)        bf16
        acc = jnp.zeros((cout, L), jnp.float32)
        for si in range(n_src):
            x = x_refs[si][0]                              # (Ci, L)
            if fuse_input_affine:
                # Previous layer's BN + ReLU folded into this load (f32 math).
                x = jnp.maximum(
                    x.astype(jnp.float32) * sc_ref[...] + sh_ref[...], 0.0)
            xb = x.astype(jnp.bfloat16)                    # MXU operand
            for k, (dy, dx) in enumerate(_TAPS):
                s = dy * W + dx                            # constant flat shift
                shifted = xb if s == 0 else jnp.roll(xb, -s, axis=1)
                tap = shifted * msk[k:k + 1, :]            # zero padding
                c0 = k * cin + offs[si]
                wk = wts[:, c0:c0 + chans[si]]             # (Cout, Ci)
                acc = acc + jnp.dot(wk, tap,
                                    preferred_element_type=jnp.float32)
        y_ref[0] = acc.astype(y_ref.dtype)
        # BN partials from the f32 accumulator (lane reductions -> XLU).
        csum = jnp.sum(acc, axis=1, keepdims=True)
        csq = jnp.sum(acc * acc, axis=1, keepdims=True)
        s_ref[0] = jnp.concatenate([csum, csq], axis=1)    # (Cout, 2)

    return kernel


def _conv3x3_pre_bn(xs, w, in_scale=None, in_shift=None,
                    out_dtype=jnp.bfloat16):
    """3x3 'same' conv (zero padding, no bias) over the channel-concat of `xs`.

    Returns (pre-BN output, per-channel sum, per-channel sum of squares) so the
    caller can fold training-mode BatchNorm without another full data pass.
    """
    N, _, H, W = xs[0].shape
    L = H * W
    chans = [int(x.shape[1]) for x in xs]
    cin, cout = sum(chans), int(w.shape[-1])
    assert w.shape[:3] == (3, 3, cin)

    # (3,3,Cin,Cout) -> (Cout, 9*Cin) tap-major weight matrix (bf16 operand).
    wt = jnp.transpose(w.reshape(9, cin, cout), (2, 0, 1)).reshape(cout, 9 * cin)
    wt = wt.astype(jnp.bfloat16)
    masks = jnp.asarray(_tap_masks(H, W), dtype=jnp.bfloat16)      # (9, L)

    x2d = [x.reshape(N, c, L) for x, c in zip(xs, chans)]          # free views

    fuse = in_scale is not None
    in_specs = [pl.BlockSpec((1, c, L), lambda n: (n, 0, 0)) for c in chans]
    in_specs += [pl.BlockSpec((cout, 9 * cin), lambda n: (0, 0)),
                 pl.BlockSpec((9, L), lambda n: (0, 0))]
    args = list(x2d) + [wt, masks]
    if fuse:
        in_specs += [pl.BlockSpec((cin, 1), lambda n: (0, 0)),
                     pl.BlockSpec((cin, 1), lambda n: (0, 0))]
        args += [in_scale.reshape(cin, 1).astype(jnp.float32),
                 in_shift.reshape(cin, 1).astype(jnp.float32)]

    y2d, stats = pl.pallas_call(
        _make_conv_kernel(chans, cout, H, W, fuse),
        out_shape=(jax.ShapeDtypeStruct((N, cout, L), out_dtype),
                   jax.ShapeDtypeStruct((N, cout, 2), jnp.float32)),
        grid=(N,),
        in_specs=in_specs,
        out_specs=(pl.BlockSpec((1, cout, L), lambda n: (n, 0, 0)),
                   pl.BlockSpec((1, cout, 2), lambda n: (n, 0, 0))),
        compiler_params=_cparams(),
    )(*args)

    sums = jnp.sum(stats[:, :, 0], axis=0)                         # (Cout,)
    sqs = jnp.sum(stats[:, :, 1], axis=0)                          # (Cout,)
    return y2d.reshape(N, cout, H, W), sums, sqs


def _fold_bn(sums, sqs, count, gamma, beta):
    # Training-mode BatchNorm (biased batch variance, eps=1e-5) folded to a
    # per-channel affine y*scale + shift.  NOTE: E[x^2]-E[x]^2 in f32 can lose
    # precision when |mean| >> std; acceptable for conv outputs here.
    mean = sums / count
    var = jnp.maximum(sqs / count - mean * mean, 0.0)
    scale = gamma * jax.lax.rsqrt(var + _BN_EPS)
    shift = beta - mean * scale
    return scale, shift


# ---------------------------------------------------------------------------
# Kernel 3: final per-channel affine (folded BN) + ReLU
# ---------------------------------------------------------------------------
def _bn_relu_kernel(y_ref, sc_ref, sh_ref, o_ref):
    o_ref[0] = jnp.maximum(
        y_ref[0].astype(jnp.float32) * sc_ref[...] + sh_ref[...], 0.0)


def _bn_relu_apply(y_pre, scale, shift):
    N, C, H, W = y_pre.shape
    L = H * W
    out = pl.pallas_call(
        _bn_relu_kernel,
        out_shape=jax.ShapeDtypeStruct((N, C, L), jnp.float32),
        grid=(N,),
        in_specs=[pl.BlockSpec((1, C, L), lambda n: (n, 0, 0)),
                  pl.BlockSpec((C, 1), lambda n: (0, 0)),
                  pl.BlockSpec((C, 1), lambda n: (0, 0))],
        out_specs=pl.BlockSpec((1, C, L), lambda n: (n, 0, 0)),
        compiler_params=_cparams(),
    )(y_pre.reshape(N, C, L), scale.reshape(C, 1), shift.reshape(C, 1))
    return out.reshape(N, C, H, W)


# ---------------------------------------------------------------------------
# Forward of the PyTorch `up` module (NCHW in / NCHW out)
# ---------------------------------------------------------------------------
def up_forward(x1_nchw, x2_nchw, params):
    x1 = x1_nchw.astype(jnp.float32)
    x2 = x2_nchw.astype(jnp.float32)

    # self.up(x1): fused separable bilinear x2, align_corners=True (bf16 out).
    x1 = bilinear_upsample_x2(x1)

    # F.pad(x1, (diffX//2, diffX-diffX//2, diffY//2, diffY-diffY//2))
    diffY = x2.shape[2] - x1.shape[2]
    diffX = x2.shape[3] - x1.shape[3]
    if diffY or diffX:
        x1 = jnp.pad(x1, ((0, 0), (0, 0),
                          (diffY // 2, diffY - diffY // 2),
                          (diffX // 2, diffX - diffX // 2)))

    # torch.cat([x2, x1], dim=1) is NOT materialized: conv1 takes both tensors
    # and splits the channel contraction in-kernel (x2 channels first).
    N, _, H, W = x2.shape
    count = N * H * W

    # conv1 -> pre-BN output + BN partials (conv biases cancel under batch BN).
    y1, s1, q1 = _conv3x3_pre_bn([x2, x1], params["w1"])
    scale1, shift1 = _fold_bn(s1, q1, count, params["g1"], params["beta1"])

    # conv2 with BN1 + ReLU folded into its input load (no standalone pass).
    y2, s2, q2 = _conv3x3_pre_bn([y1], params["w2"],
                                 in_scale=scale1, in_shift=shift1)
    scale2, shift2 = _fold_bn(s2, q2, count, params["g2"], params["beta2"])

    # Final BN2 + ReLU (no consumer left to fold into -> one small pass, f32).
    return _bn_relu_apply(y2, scale2, shift2)


if __name__ == "__main__":
    key = jax.random.PRNGKey(0)
    in_ch, out_ch = 8, 4          # up(8, 4): conv sees cat channels = 8
    N = 2

    k1, k2, k3, k4, k5, k6 = jax.random.split(key, 6)
    # x1: low-resolution decoder feature; x2: skip connection at 2x resolution.
    x1 = jax.random.normal(k1, (N, in_ch // 2, 8, 8), jnp.float32)
    x2 = jax.random.normal(k2, (N, in_ch // 2, 16, 16), jnp.float32)

    # Synthetic parameters. Weight layout is (3, 3, Cin, Cout) = PyTorch OIHW
    # Conv2d weight transposed with (2, 3, 1, 0).
    params = dict(
        w1=jax.random.normal(k3, (3, 3, in_ch, out_ch), jnp.float32) * 0.1,
        b1=jax.random.normal(k4, (out_ch,), jnp.float32) * 0.1,   # cancels in BN
        g1=jnp.ones((out_ch,), jnp.float32),
        beta1=jnp.zeros((out_ch,), jnp.float32),
        w2=jax.random.normal(k5, (3, 3, out_ch, out_ch), jnp.float32) * 0.1,
        b2=jax.random.normal(k6, (out_ch,), jnp.float32) * 0.1,   # cancels in BN
        g2=jnp.ones((out_ch,), jnp.float32),
        beta2=jnp.zeros((out_ch,), jnp.float32),
    )

    y = jax.jit(up_forward)(x1, x2, params)
    jax.block_until_ready(y)
    assert y.shape == (N, out_ch, 16, 16), y.shape
    assert bool(jnp.all(jnp.isfinite(y)))
    print("KERNEL_OK")
</pallas_src>

<mosaic_0001>
module attributes {stable_mosaic.version = 11 : i64} {
  func.func @_upsample_kernel(%arg0: i32, %arg1: memref<1x8x8xf32, #tpu.memory_space<vmem>>, %arg2: memref<16x8xf32, #tpu.memory_space<vmem>>, %arg3: memref<8x16xf32, #tpu.memory_space<vmem>>, %arg4: memref<1x16x16xbf16, #tpu.memory_space<vmem>>) attributes {dimension_semantics = [#tpu.dimension_semantics<parallel>], iteration_bounds = array<i64: 8>, scalar_prefetch = 0 : i64, scratch_operands = 0 : i64, tpu.core_type = #tpu.core_type<tc>, window_params = [{transform_indices = @transform_0, window_bounds = array<i64: 1, 8, 8>}, {pipeline_mode = #tpu.pipeline_mode<synchronous>, transform_indices = @transform_1, window_bounds = array<i64: 16, 8>}, {pipeline_mode = #tpu.pipeline_mode<synchronous>, transform_indices = @transform_2, window_bounds = array<i64: 8, 16>}, {transform_indices = @transform_3, window_bounds = array<i64: 1, 16, 16>}]} {
    %c0 = arith.constant 0 : index
    %c0_0 = arith.constant 0 : index
    %c0_1 = arith.constant 0 : index
    %0 = vector.load %arg1[%c0, %c0_0, %c0_1] : memref<1x8x8xf32, #tpu.memory_space<vmem>>, vector<1x8x8xf32>
    %1 = vector.shape_cast %0 : vector<1x8x8xf32> to vector<8x8xf32>
    %c0_2 = arith.constant 0 : index
    %c0_3 = arith.constant 0 : index
    %2 = vector.load %arg3[%c0_2, %c0_3] : memref<8x16xf32, #tpu.memory_space<vmem>>, vector<8x16xf32>
    %cst = arith.constant dense<0.000000e+00> : vector<8x16xf32>
    %3 = tpu.matmul %1, %2, %cst {dimension_numbers = #tpu.dot_dimension_numbers<[1], [0], [0], [1], [0, 0, 1, 1], [], []>} : vector<8x8xf32>, vector<8x16xf32>, vector<8x16xf32> -> vector<8x16xf32>
    %c0_4 = arith.constant 0 : index
    %c0_5 = arith.constant 0 : index
    %4 = vector.load %arg2[%c0_4, %c0_5] : memref<16x8xf32, #tpu.memory_space<vmem>>, vector<16x8xf32>
    %cst_6 = arith.constant dense<0.000000e+00> : vector<16x16xf32>
    %5 = tpu.matmul %4, %3, %cst_6 {dimension_numbers = #tpu.dot_dimension_numbers<[1], [0], [0], [1], [0, 0, 1, 1], [], []>} : vector<16x8xf32>, vector<8x16xf32>, vector<16x16xf32> -> vector<16x16xf32>
    %6 = arith.truncf %5 : vector<16x16xf32> to vector<16x16xbf16>
    %c0_7 = arith.constant 0 : index
    %c0_8 = arith.constant 0 : index
    %c0_9 = arith.constant 0 : index
    %7 = vector.load %arg4[%c0_7, %c0_8, %c0_9] : memref<1x16x16xbf16, #tpu.memory_space<vmem>>, vector<1x16x16xbf16>
    %8 = vector.shape_cast %7 : vector<1x16x16xbf16> to vector<16x16xbf16>
    %9 = vector.shape_cast %6 : vector<16x16xbf16> to vector<1x16x16xbf16>
    tpu.vector_store %arg4[%c0_7, %c0_8, %c0_9], %9 {strides = array<i32>} : memref<1x16x16xbf16, #tpu.memory_space<vmem>>, vector<1x16x16xbf16>,
    return
  }
  func.func @transform_0(%arg0: i32) -> (i32, i32, i32) {
    %c0_i32 = arith.constant 0 : i32
    %c0_i32_0 = arith.constant 0 : i32
    %c0_i32_1 = arith.constant 0 : i32
    return %arg0, %c0_i32, %c0_i32_0 : i32, i32, i32
  }
  func.func @transform_1(%arg0: i32) -> (i32, i32) {
    %c0_i32 = arith.constant 0 : i32
    %c0_i32_0 = arith.constant 0 : i32
    %c0_i32_1 = arith.constant 0 : i32
    return %c0_i32, %c0_i32_0 : i32, i32
  }
  func.func @transform_2(%arg0: i32) -> (i32, i32) {
    %c0_i32 = arith.constant 0 : i32
    %c0_i32_0 = arith.constant 0 : i32
    %c0_i32_1 = arith.constant 0 : i32
    return %c0_i32, %c0_i32_0 : i32, i32
  }
  func.func @transform_3(%arg0: i32) -> (i32, i32, i32) {
    %c0_i32 = arith.constant 0 : i32
    %c0_i32_0 = arith.constant 0 : i32
    %c0_i32_1 = arith.constant 0 : i32
    return %arg0, %c0_i32, %c0_i32_0 : i32, i32, i32
  }
}

module attributes {stable_mosaic.version = 11 : i64} {
  func.func @kernel(%arg0: i32, %arg1: memref<1x4x256xf32, #tpu.memory_space<vmem>>, %arg2: memref<1x4x256xbf16, #tpu.memory_space<vmem>>, %arg3: memref<4x72xbf16, #tpu.memory_space<vmem>>, %arg4: memref<9x256xbf16, #tpu.memory_space<vmem>>, %arg5: memref<1x4x256xbf16, #tpu.memory_space<vmem>>, %arg6: memref<1x4x2xf32, #tpu.memory_space<vmem>>) attributes {dimension_semantics = [#tpu.dimension_semantics<parallel>], iteration_bounds = array<i64: 2>, scalar_prefetch = 0 : i64, scratch_operands = 0 : i64, tpu.core_type = #tpu.core_type<tc>, window_params = [{transform_indices = @transform_0, window_bounds = array<i64: 1, 4, 256>}, {transform_indices = @transform_1, window_bounds = array<i64: 1, 4, 256>}, {pipeline_mode = #tpu.pipeline_mode<synchronous>, transform_indices = @transform_2, window_bounds = array<i64: 4, 72>}, {pipeline_mode = #tpu.pipeline_mode<synchronous>, transform_indices = @transform_3, window_bounds = array<i64: 9, 256>}, {transform_indices = @transform_4, window_bounds = array<i64: 1, 4, 256>}, {transform_indices = @transform_5, window_bounds = array<i64: 1, 4, 2>}]} {
    %c0 = arith.constant 0 : index
    %c0_0 = arith.constant 0 : index
    %0 = vector.load %arg3[%c0, %c0_0] : memref<4x72xbf16, #tpu.memory_space<vmem>>, vector<4x72xbf16>
    %c0_1 = arith.constant 0 : index
    %c0_2 = arith.constant 0 : index
    %1 = vector.load %arg4[%c0_1, %c0_2] : memref<9x256xbf16, #tpu.memory_space<vmem>>, vector<9x256xbf16>
    %cst = arith.constant 0.000000e+00 : f32
    %2 = vector.broadcast %cst : f32 to vector<4x256xf32>
    %c0_3 = arith.constant 0 : index
    %c0_4 = arith.constant 0 : index
    %c0_5 = arith.constant 0 : index
    %3 = vector.load %arg1[%c0_3, %c0_4, %c0_5] : memref<1x4x256xf32, #tpu.memory_space<vmem>>, vector<1x4x256xf32>
    %4 = vector.shape_cast %3 : vector<1x4x256xf32> to vector<4x256xf32>
    %5 = arith.truncf %4 : vector<4x256xf32> to vector<4x256xbf16>
    %6 = vector.extract_strided_slice %5 {offsets = [0, 239], sizes = [4, 17], strides = [1, 1]} : vector<4x256xbf16> to vector<4x17xbf16>
    %7 = vector.extract_strided_slice %5 {offsets = [0, 0], sizes = [4, 239], strides = [1, 1]} : vector<4x256xbf16> to vector<4x239xbf16>
    %8 = tpu.concatenate %6, %7 in 1 : vector<4x17xbf16>, vector<4x239xbf16> -> vector<4x256xbf16>
    %9 = vector.extract_strided_slice %1 {offsets = [0, 0], sizes = [1, 256], strides = [1, 1]} : vector<9x256xbf16> to vector<1x256xbf16>
    %10 = vector.broadcast %9 : vector<1x256xbf16> to vector<4x256xbf16>
    %11 = arith.mulf %8, %10 : vector<4x256xbf16>
    %12 = vector.extract_strided_slice %0 {offsets = [0, 0], sizes = [4, 4], strides = [1, 1]} : vector<4x72xbf16> to vector<4x4xbf16>
    %cst_6 = arith.constant dense<0.000000e+00> : vector<4x256xf32>
    %13 = tpu.matmul %12, %11, %cst_6 {dimension_numbers = #tpu.dot_dimension_numbers<[1], [0], [0], [1], [0, 0, 1, 1], [], []>} : vector<4x4xbf16>, vector<4x256xbf16>, vector<4x256xf32> -> vector<4x256xf32>
    %14 = arith.addf %2, %13 : vector<4x256xf32>
    %15 = vector.extract_strided_slice %5 {offsets = [0, 240], sizes = [4, 16], strides = [1, 1]} : vector<4x256xbf16> to vector<4x16xbf16>
    %16 = vector.extract_strided_slice %5 {offsets = [0, 0], sizes = [4, 240], strides = [1, 1]} : vector<4x256xbf16> to vector<4x240xbf16>
    %17 = tpu.concatenate %15, %16 in 1 : vector<4x16xbf16>, vector<4x240xbf16> -> vector<4x256xbf16>
    %18 = vector.extract_strided_slice %1 {offsets = [1, 0], sizes = [1, 256], strides = [1, 1]} : vector<9x256xbf16> to vector<1x256xbf16>
    %19 = vector.broadcast %18 : vector<1x256xbf16> to vector<4x256xbf16>
    %20 = arith.mulf %17, %19 : vector<4x256xbf16>
    %21 = vector.extract_strided_slice %0 {offsets = [0, 8], sizes = [4, 4], strides = [1, 1]} : vector<4x72xbf16> to vector<4x4xbf16>
    %cst_7 = arith.constant dense<0.000000e+00> : vector<4x256xf32>
    %22 = tpu.matmul %21, %20, %cst_7 {dimension_numbers = #tpu.dot_dimension_numbers<[1], [0], [0], [1], [0, 0, 1, 1], [], []>} : vector<4x4xbf16>, vector<4x256xbf16>, vector<4x256xf32> -> vector<4x256xf32>
    %23 = arith.addf %14, %22 : vector<4x256xf32>
    %24 = vector.extract_strided_slice %5 {offsets = [0, 241], sizes = [4, 15], strides = [1, 1]} : vector<4x256xbf16> to vector<4x15xbf16>
    %25 = vector.extract_strided_slice %5 {offsets = [0, 0], sizes = [4, 241], strides = [1, 1]} : vector<4x256xbf16> to vector<4x241xbf16>
    %26 = tpu.concatenate %24, %25 in 1 : vector<4x15xbf16>, vector<4x241xbf16> -> vector<4x256xbf16>
    %27 = vector.extract_strided_slice %1 {offsets = [2, 0], sizes = [1, 256], strides = [1, 1]} : vector<9x256xbf16> to vector<1x256xbf16>
    %28 = vector.broadcast %27 : vector<1x256xbf16> to vector<4x256xbf16>
    %29 = arith.mulf %26, %28 : vector<4x256xbf16>
    %30 = vector.extract_strided_slice %0 {offsets = [0, 16], sizes = [4, 4], strides = [1, 1]} : vector<4x72xbf16> to vector<4x4xbf16>
    %cst_8 = arith.constant dense<0.000000e+00> : vector<4x256xf32>
    %31 = tpu.matmul %30, %29, %cst_8 {dimension_numbers = #tpu.dot_dimension_numbers<[1], [0], [0], [1], [0, 0, 1, 1], [], []>} : vector<4x4xbf16>, vector<4x256xbf16>, vector<4x256xf32> -> vector<4x256xf32>
    %32 = arith.addf %23, %31 : vector<4x256xf32>
    %33 = vector.extract_strided_slice %5 {offsets = [0, 255], sizes = [4, 1], strides = [1, 1]} : vector<4x256xbf16> to vector<4x1xbf16>
    %34 = vector.extract_strided_slice %5 {offsets = [0, 0], sizes = [4, 255], strides = [1, 1]} : vector<4x256xbf16> to vector<4x255xbf16>
    %35 = tpu.concatenate %33, %34 in 1 : vector<4x1xbf16>, vector<4x255xbf16> -> vector<4x256xbf16>
    %36 = vector.extract_strided_slice %1 {offsets = [3, 0], sizes = [1, 256], strides = [1, 1]} : vector<9x256xbf16> to vector<1x256xbf16>
    %37 = vector.broadcast %36 : vector<1x256xbf16> to vector<4x256xbf16>
    %38 = arith.mulf %35, %37 : vector<4x256xbf16>
    %39 = vector.extract_strided_slice %0 {offsets = [0, 24], sizes = [4, 4], strides = [1, 1]} : vector<4x72xbf16> to vector<4x4xbf16>
    %cst_9 = arith.constant dense<0.000000e+00> : vector<4x256xf32>
    %40 = tpu.matmul %39, %38, %cst_9 {dimension_numbers = #tpu.dot_dimension_numbers<[1], [0], [0], [1], [0, 0, 1, 1], [], []>} : vector<4x4xbf16>, vector<4x256xbf16>, vector<4x256xf32> -> vector<4x256xf32>
    %41 = arith.addf %32, %40 : vector<4x256xf32>
    %42 = vector.extract_strided_slice %1 {offsets = [4, 0], sizes = [1, 256], strides = [1, 1]} : vector<9x256xbf16> to vector<1x256xbf16>
    %43 = vector.broadcast %42 : vector<1x256xbf16> to vector<4x256xbf16>
    %44 = arith.mulf %5, %43 : vector<4x256xbf16>
    %45 = vector.extract_strided_slice %0 {offsets = [0, 32], sizes = [4, 4], strides = [1, 1]} : vector<4x72xbf16> to vector<4x4xbf16>
    %cst_10 = arith.constant dense<0.000000e+00> : vector<4x256xf32>
    %46 = tpu.matmul %45, %44, %cst_10 {dimension_numbers = #tpu.dot_dimension_numbers<[1], [0], [0], [1], [0, 0, 1, 1], [], []>} : vector<4x4xbf16>, vector<4x256xbf16>, vector<4x256xf32> -> vector<4x256xf32>
    %47 = arith.addf %41, %46 : vector<4x256xf32>
    %48 = vector.extract_strided_slice %5 {offsets = [0, 1], sizes = [4, 255], strides = [1, 1]} : vector<4x256xbf16> to vector<4x255xbf16>
    %49 = vector.extract_strided_slice %5 {offsets = [0, 0], sizes = [4, 1], strides = [1, 1]} : vector<4x256xbf16> to vector<4x1xbf16>
    %50 = tpu.concatenate %48, %49 in 1 : vector<4x255xbf16>, vector<4x1xbf16> -> vector<4x256xbf16>
    %51 = vector.extract_strided_slice %1 {offsets = [5, 0], sizes = [1, 256], strides = [1, 1]} : vector<9x256xbf16> to vector<1x256xbf16>
    %52 = vector.broadcast %51 : vector<1x256xbf16> to vector<4x256xbf16>
    %53 = arith.mulf %50, %52 : vector<4x256xbf16>
    %54 = vector.extract_strided_slice %0 {offsets = [0, 40], sizes = [4, 4], strides = [1, 1]} : vector<4x72xbf16> to vector<4x4xbf16>
    %cst_11 = arith.constant dense<0.000000e+00> : vector<4x256xf32>
    %55 = tpu.matmul %54, %53, %cst_11 {dimension_numbers = #tpu.dot_dimension_numbers<[1], [0], [0], [1], [0, 0, 1, 1], [], []>} : vector<4x4xbf16>, vector<4x256xbf16>, vector<4x256xf32> -> vector<4x256xf32>
    %56 = arith.addf %47, %55 : vector<4x256xf32>
    %57 = vector.extract_strided_slice %5 {offsets = [0, 15], sizes = [4, 241], strides = [1, 1]} : vector<4x256xbf16> to vector<4x241xbf16>
    %58 = vector.extract_strided_slice %5 {offsets = [0, 0], sizes = [4, 15], strides = [1, 1]} : vector<4x256xbf16> to vector<4x15xbf16>
    %59 = tpu.concatenate %57, %58 in 1 : vector<4x241xbf16>, vector<4x15xbf16> -> vector<4x256xbf16>
    %60 = vector.extract_strided_slice %1 {offsets = [6, 0], sizes = [1, 256], strides = [1, 1]} : vector<9x256xbf16> to vector<1x256xbf16>
    %61 = vector.broadcast %60 : vector<1x256xbf16> to vector<4x256xbf16>
    %62 = arith.mulf %59, %61 : vector<4x256xbf16>
    %63 = vector.extract_strided_slice %0 {offsets = [0, 48], sizes = [4, 4], strides = [1, 1]} : vector<4x72xbf16> to vector<4x4xbf16>
    %cst_12 = arith.constant dense<0.000000e+00> : vector<4x256xf32>
    %64 = tpu.matmul %63, %62, %cst_12 {dimension_numbers = #tpu.dot_dimension_numbers<[1], [0], [0], [1], [0, 0, 1, 1], [], []>} : vector<4x4xbf16>, vector<4x256xbf16>, vector<4x256xf32> -> vector<4x256xf32>
    %65 = arith.addf %56, %64 : vector<4x256xf32>
    %66 = vector.extract_strided_slice %5 {offsets = [0, 16], sizes = [4, 240], strides = [1, 1]} : vector<4x256xbf16> to vector<4x240xbf16>
    %67 = vector.extract_strided_slice %5 {offsets = [0, 0], sizes = [4, 16], strides = [1, 1]} : vector<4x256xbf16> to vector<4x16xbf16>
    %68 = tpu.concatenate %66, %67 in 1 : vector<4x240xbf16>, vector<4x16xbf16> -> vector<4x256xbf16>
    %69 = vector.extract_strided_slice %1 {offsets = [7, 0], sizes = [1, 256], strides = [1, 1]} : vector<9x256xbf16> to vector<1x256xbf16>
    %70 = vector.broadcast %69 : vector<1x256xbf16> to vector<4x256xbf16>
    %71 = arith.mulf %68, %70 : vector<4x256xbf16>
    %72 = vector.extract_strided_slice %0 {offsets = [0, 56], sizes = [4, 4], strides = [1, 1]} : vector<4x72xbf16> to vector<4x4xbf16>
    %cst_13 = arith.constant dense<0.000000e+00> : vector<4x256xf32>
    %73 = tpu.matmul %72, %71, %cst_13 {dimension_numbers = #tpu.dot_dimension_numbers<[1], [0], [0], [1], [0, 0, 1, 1], [], []>} : vector<4x4xbf16>, vector<4x256xbf16>, vector<4x256xf32> -> vector<4x256xf32>
    %74 = arith.addf %65, %73 : vector<4x256xf32>
    %75 = vector.extract_strided_slice %5 {offsets = [0, 17], sizes = [4, 239], strides = [1, 1]} : vector<4x256xbf16> to vector<4x239xbf16>
    %76 = vector.extract_strided_slice %5 {offsets = [0, 0], sizes = [4, 17], strides = [1, 1]} : vector<4x256xbf16> to vector<4x17xbf16>
    %77 = tpu.concatenate %75, %76 in 1 : vector<4x239xbf16>, vector<4x17xbf16> -> vector<4x256xbf16>
    %78 = vector.extract_strided_slice %1 {offsets = [8, 0], sizes = [1, 256], strides = [1, 1]} : vector<9x256xbf16> to vector<1x256xbf16>
    %79 = vector.broadcast %78 : vector<1x256xbf16> to vector<4x256xbf16>
    %80 = arith.mulf %77, %79 : vector<4x256xbf16>
    %81 = vector.extract_strided_slice %0 {offsets = [0, 64], sizes = [4, 4], strides = [1, 1]} : vector<4x72xbf16> to vector<4x4xbf16>
    %cst_14 = arith.constant dense<0.000000e+00> : vector<4x256xf32>
    %82 = tpu.matmul %81, %80, %cst_14 {dimension_numbers = #tpu.dot_dimension_numbers<[1], [0], [0], [1], [0, 0, 1, 1], [], []>} : vector<4x4xbf16>, vector<4x256xbf16>, vector<4x256xf32> -> vector<4x256xf32>
    %83 = arith.addf %74, %82 : vector<4x256xf32>
    %c0_15 = arith.constant 0 : index
    %c0_16 = arith.constant 0 : index
    %c0_17 = arith.constant 0 : index
    %84 = vector.load %arg2[%c0_15, %c0_16, %c0_17] : memref<1x4x256xbf16, #tpu.memory_space<vmem>>, vector<1x4x256xbf16>
    %85 = vector.shape_cast %84 : vector<1x4x256xbf16> to vector<4x256xbf16>
    %86 = vector.extract_strided_slice %85 {offsets = [0, 239], sizes = [4, 17], strides = [1, 1]} : vector<4x256xbf16> to vector<4x17xbf16>
    %87 = vector.extract_strided_slice %85 {offsets = [0, 0], sizes = [4, 239], strides = [1, 1]} : vector<4x256xbf16> to vector<4x239xbf16>
    %88 = tpu.concatenate %86, %87 in 1 : vector<4x17xbf16>, vector<4x239xbf16> -> vector<4x256xbf16>
    %89 = vector.extract_strided_slice %1 {offsets = [0, 0], sizes = [1, 256], strides = [1, 1]} : vector<9x256xbf16> to vector<1x256xbf16>
    %90 = vector.broadcast %89 : vector<1x256xbf16> to vector<4x256xbf16>
    %91 = arith.mulf %88, %90 : vector<4x256xbf16>
    %92 = vector.extract_strided_slice %0 {offsets = [0, 4], sizes = [4, 4], strides = [1, 1]} : vector<4x72xbf16> to vector<4x4xbf16>
    %cst_18 = arith.constant dense<0.000000e+00> : vector<4x256xf32>
    %93 = tpu.matmul %92, %91, %cst_18 {dimension_numbers = #tpu.dot_dimension_numbers<[1], [0], [0], [1], [0, 0, 1, 1], [], []>} : vector<4x4xbf16>, vector<4x256xbf16>, vector<4x256xf32> -> vector<4x256xf32>
    %94 = arith.addf %83, %93 : vector<4x256xf32>
    %95 = vector.extract_strided_slice %85 {offsets = [0, 240], sizes = [4, 16], strides = [1, 1]} : vector<4x256xbf16> to vector<4x16xbf16>
    %96 = vector.extract_strided_slice %85 {offsets = [0, 0], sizes = [4, 240], strides = [1, 1]} : vector<4x256xbf16> to vector<4x240xbf16>
    %97 = tpu.concatenate %95, %96 in 1 : vector<4x16xbf16>, vector<4x240xbf16> -> vector<4x256xbf16>
    %98 = vector.extract_strided_slice %1 {offsets = [1, 0], sizes = [1, 256], strides = [1, 1]} : vector<9x256xbf16> to vector<1x256xbf16>
    %99 = vector.broadcast %98 : vector<1x256xbf16> to vector<4x256xbf16>
    %100 = arith.mulf %97, %99 : vector<4x256xbf16>
    %101 = vector.extract_strided_slice %0 {offsets = [0, 12], sizes = [4, 4], strides = [1, 1]} : vector<4x72xbf16> to vector<4x4xbf16>
    %cst_19 = arith.constant dense<0.000000e+00> : vector<4x256xf32>
    %102 = tpu.matmul %101, %100, %cst_19 {dimension_numbers = #tpu.dot_dimension_numbers<[1], [0], [0], [1], [0, 0, 1, 1], [], []>} : vector<4x4xbf16>, vector<4x256xbf16>, vector<4x256xf32> -> vector<4x256xf32>
    %103 = arith.addf %94, %102 : vector<4x256xf32>
    %104 = vector.extract_strided_slice %85 {offsets = [0, 241], sizes = [4, 15], strides = [1, 1]} : vector<4x256xbf16> to vector<4x15xbf16>
    %105 = vector.extract_strided_slice %85 {offsets = [0, 0], sizes = [4, 241], strides = [1, 1]} : vector<4x256xbf16> to vector<4x241xbf16>
    %106 = tpu.concatenate %104, %105 in 1 : vector<4x15xbf16>, vector<4x241xbf16> -> vector<4x256xbf16>
    %107 = vector.extract_strided_slice %1 {offsets = [2, 0], sizes = [1, 256], strides = [1, 1]} : vector<9x256xbf16> to vector<1x256xbf16>
    %108 = vector.broadcast %107 : vector<1x256xbf16> to vector<4x256xbf16>
    %109 = arith.mulf %106, %108 : vector<4x256xbf16>
    %110 = vector.extract_strided_slice %0 {offsets = [0, 20], sizes = [4, 4], strides = [1, 1]} : vector<4x72xbf16> to vector<4x4xbf16>
    %cst_20 = arith.constant dense<0.000000e+00> : vector<4x256xf32>
    %111 = tpu.matmul %110, %109, %cst_20 {dimension_numbers = #tpu.dot_dimension_numbers<[1], [0], [0], [1], [0, 0, 1, 1], [], []>} : vector<4x4xbf16>, vector<4x256xbf16>, vector<4x256xf32> -> vector<4x256xf32>
    %112 = arith.addf %103, %111 : vector<4x256xf32>
    %113 = vector.extract_strided_slice %85 {offsets = [0, 255], sizes = [4, 1], strides = [1, 1]} : vector<4x256xbf16> to vector<4x1xbf16>
    %114 = vector.extract_strided_slice %85 {offsets = [0, 0], sizes = [4, 255], strides = [1, 1]} : vector<4x256xbf16> to vector<4x255xbf16>
    %115 = tpu.concatenate %113, %114 in 1 : vector<4x1xbf16>, vector<4x255xbf16> -> vector<4x256xbf16>
    %116 = vector.extract_strided_slice %1 {offsets = [3, 0], sizes = [1, 256], strides = [1, 1]} : vector<9x256xbf16> to vector<1x256xbf16>
    %117 = vector.broadcast %116 : vector<1x256xbf16> to vector<4x256xbf16>
    %118 = arith.mulf %115, %117 : vector<4x256xbf16>
    %119 = vector.extract_strided_slice %0 {offsets = [0, 28], sizes = [4, 4], strides = [1, 1]} : vector<4x72xbf16> to vector<4x4xbf16>
    %cst_21 = arith.constant dense<0.000000e+00> : vector<4x256xf32>
    %120 = tpu.matmul %119, %118, %cst_21 {dimension_numbers = #tpu.dot_dimension_numbers<[1], [0], [0], [1], [0, 0, 1, 1], [], []>} : vector<4x4xbf16>, vector<4x256xbf16>, vector<4x256xf32> -> vector<4x256xf32>
    %121 = arith.addf %112, %120 : vector<4x256xf32>
    %122 = vector.extract_strided_slice %1 {offsets = [4, 0], sizes = [1, 256], strides = [1, 1]} : vector<9x256xbf16> to vector<1x256xbf16>
    %123 = vector.broadcast %122 : vector<1x256xbf16> to vector<4x256xbf16>
    %124 = arith.mulf %85, %123 : vector<4x256xbf16>
    %125 = vector.extract_strided_slice %0 {offsets = [0, 36], sizes = [4, 4], strides = [1, 1]} : vector<4x72xbf16> to vector<4x4xbf16>
    %cst_22 = arith.constant dense<0.000000e+00> : vector<4x256xf32>
    %126 = tpu.matmul %125, %124, %cst_22 {dimension_numbers = #tpu.dot_dimension_numbers<[1], [0], [0], [1], [0, 0, 1, 1], [], []>} : vector<4x4xbf16>, vector<4x256xbf16>, vector<4x256xf32> -> vector<4x256xf32>
    %127 = arith.addf %121, %126 : vector<4x256xf32>
    %128 = vector.extract_strided_slice %85 {offsets = [0, 1], sizes = [4, 255], strides = [1, 1]} : vector<4x256xbf16> to vector<4x255xbf16>
    %129 = vector.extract_strided_slice %85 {offsets = [0, 0], sizes = [4, 1], strides = [1, 1]} : vector<4x256xbf16> to vector<4x1xbf16>
    %130 = tpu.concatenate %128, %129 in 1 : vector<4x255xbf16>, vector<4x1xbf16> -> vector<4x256xbf16>
    %131 = vector.extract_strided_slice %1 {offsets = [5, 0], sizes = [1, 256], strides = [1, 1]} : vector<9x256xbf16> to vector<1x256xbf16>
    %132 = vector.broadcast %131 : vector<1x256xbf16> to vector<4x256xbf16>
    %133 = arith.mulf %130, %132 : vector<4x256xbf16>
    %134 = vector.extract_strided_slice %0 {offsets = [0, 44], sizes = [4, 4], strides = [1, 1]} : vector<4x72xbf16> to vector<4x4xbf16>
    %cst_23 = arith.constant dense<0.000000e+00> : vector<4x256xf32>
    %135 = tpu.matmul %134, %133, %cst_23 {dimension_numbers = #tpu.dot_dimension_numbers<[1], [0], [0], [1], [0, 0, 1, 1], [], []>} : vector<4x4xbf16>, vector<4x256xbf16>, vector<4x256xf32> -> vector<4x256xf32>
    %136 = arith.addf %127, %135 : vector<4x256xf32>
    %137 = vector.extract_strided_slice %85 {offsets = [0, 15], sizes = [4, 241], strides = [1, 1]} : vector<4x256xbf16> to vector<4x241xbf16>
    %138 = vector.extract_strided_slice %85 {offsets = [0, 0], sizes = [4, 15], strides = [1, 1]} : vector<4x256xbf16> to vector<4x15xbf16>
    %139 = tpu.concatenate %137, %138 in 1 : vector<4x241xbf16>, vector<4x15xbf16> -> vector<4x256xbf16>
    %140 = vector.extract_strided_slice %1 {offsets = [6, 0], sizes = [1, 256], strides = [1, 1]} : vector<9x256xbf16> to vector<1x256xbf16>
    %141 = vector.broadcast %140 : vector<1x256xbf16> to vector<4x256xbf16>
    %142 = arith.mulf %139, %141 : vector<4x256xbf16>
    %143 = vector.extract_strided_slice %0 {offsets = [0, 52], sizes = [4, 4], strides = [1, 1]} : vector<4x72xbf16> to vector<4x4xbf16>
    %cst_24 = arith.constant dense<0.000000e+00> : vector<4x256xf32>
    %144 = tpu.matmul %143, %142, %cst_24 {dimension_numbers = #tpu.dot_dimension_numbers<[1], [0], [0], [1], [0, 0, 1, 1], [], []>} : vector<4x4xbf16>, vector<4x256xbf16>, vector<4x256xf32> -> vector<4x256xf32>
    %145 = arith.addf %136, %144 : vector<4x256xf32>
    %146 = vector.extract_strided_slice %85 {offsets = [0, 16], sizes = [4, 240], strides = [1, 1]} : vector<4x256xbf16> to vector<4x240xbf16>
    %147 = vector.extract_strided_slice %85 {offsets = [0, 0], sizes = [4, 16], strides = [1, 1]} : vector<4x256xbf16> to vector<4x16xbf16>
    %148 = tpu.concatenate %146, %147 in 1 : vector<4x240xbf16>, vector<4x16xbf16> -> vector<4x256xbf16>
    %149 = vector.extract_strided_slice %1 {offsets = [7, 0], sizes = [1, 256], strides = [1, 1]} : vector<9x256xbf16> to vector<1x256xbf16>
    %150 = vector.broadcast %149 : vector<1x256xbf16> to vector<4x256xbf16>
    %151 = arith.mulf %148, %150 : vector<4x256xbf16>
    %152 = vector.extract_strided_slice %0 {offsets = [0, 60], sizes = [4, 4], strides = [1, 1]} : vector<4x72xbf16> to vector<4x4xbf16>
    %cst_25 = arith.constant dense<0.000000e+00> : vector<4x256xf32>
    %153 = tpu.matmul %152, %151, %cst_25 {dimension_numbers = #tpu.dot_dimension_numbers<[1], [0], [0], [1], [0, 0, 1, 1], [], []>} : vector<4x4xbf16>, vector<4x256xbf16>, vector<4x256xf32> -> vector<4x256xf32>
    %154 = arith.addf %145, %153 : vector<4x256xf32>
    %155 = vector.extract_strided_slice %85 {offsets = [0, 17], sizes = [4, 239], strides = [1, 1]} : vector<4x256xbf16> to vector<4x239xbf16>
    %156 = vector.extract_strided_slice %85 {offsets = [0, 0], sizes = [4, 17], strides = [1, 1]} : vector<4x256xbf16> to vector<4x17xbf16>
    %157 = tpu.concatenate %155, %156 in 1 : vector<4x239xbf16>, vector<4x17xbf16> -> vector<4x256xbf16>
    %158 = vector.extract_strided_slice %1 {offsets = [8, 0], sizes = [1, 256], strides = [1, 1]} : vector<9x256xbf16> to vector<1x256xbf16>
    %159 = vector.broadcast %158 : vector<1x256xbf16> to vector<4x256xbf16>
    %160 = arith.mulf %157, %159 : vector<4x256xbf16>
    %161 = vector.extract_strided_slice %0 {offsets = [0, 68], sizes = [4, 4], strides = [1, 1]} : vector<4x72xbf16> to vector<4x4xbf16>
    %cst_26 = arith.constant dense<0.000000e+00> : vector<4x256xf32>
    %162 = tpu.matmul %161, %160, %cst_26 {dimension_numbers = #tpu.dot_dimension_numbers<[1], [0], [0], [1], [0, 0, 1, 1], [], []>} : vector<4x4xbf16>, vector<4x256xbf16>, vector<4x256xf32> -> vector<4x256xf32>
    %163 = arith.addf %154, %162 : vector<4x256xf32>
    %164 = arith.truncf %163 : vector<4x256xf32> to vector<4x256xbf16>
    %c0_27 = arith.constant 0 : index
    %c0_28 = arith.constant 0 : index
    %c0_29 = arith.constant 0 : index
    %165 = vector.load %arg5[%c0_27, %c0_28, %c0_29] : memref<1x4x256xbf16, #tpu.memory_space<vmem>>, vector<1x4x256xbf16>
    %166 = vector.shape_cast %165 : vector<1x4x256xbf16> to vector<4x256xbf16>
    %167 = vector.shape_cast %164 : vector<4x256xbf16> to vector<1x4x256xbf16>
    tpu.vector_store %arg5[%c0_27, %c0_28, %c0_29], %167 {strides = array<i32>} : memref<1x4x256xbf16, #tpu.memory_space<vmem>>, vector<1x4x256xbf16>,
    %cst_30 = arith.constant dense<0.000000e+00> : vector<4xf32>
    %168 = vector.multi_reduction <add>, %163, %cst_30 [1] : vector<4x256xf32> to vector<4xf32>
    %169 = vector.shape_cast %168 : vector<4xf32> to vector<4x1xf32>
    %170 = arith.mulf %163, %163 : vector<4x256xf32>
    %cst_31 = arith.constant dense<0.000000e+00> : vector<4xf32>
    %171 = vector.multi_reduction <add>, %170, %cst_31 [1] : vector<4x256xf32> to vector<4xf32>
    %172 = vector.shape_cast %171 : vector<4xf32> to vector<4x1xf32>
    %173 = tpu.concatenate %169, %172 in 1 : vector<4x1xf32>, vector<4x1xf32> -> vector<4x2xf32>
    %c0_32 = arith.constant 0 : index
    %c0_33 = arith.constant 0 : index
    %c0_34 = arith.constant 0 : index
    %174 = vector.load %arg6[%c0_32, %c0_33, %c0_34] : memref<1x4x2xf32, #tpu.memory_space<vmem>>, vector<1x4x2xf32>
    %175 = vector.shape_cast %174 : vector<1x4x2xf32> to vector<4x2xf32>
    %176 = vector.shape_cast %173 : vector<4x2xf32> to vector<1x4x2xf32>
    tpu.vector_store %arg6[%c0_32, %c0_33, %c0_34], %176 {strides = array<i32>} : memref<1x4x2xf32, #tpu.memory_space<vmem>>, vector<1x4x2xf32>,
    return
  }
  func.func @transform_0(%arg0: i32) -> (i32, i32, i32) {
    %c0_i32 = arith.constant 0 : i32
    %c0_i32_0 = arith.constant 0 : i32
    %c0_i32_1 = arith.constant 0 : i32
    return %arg0, %c0_i32, %c0_i32_0 : i32, i32, i32
  }
  func.func @transform_1(%arg0: i32) -> (i32, i32, i32) {
    %c0_i32 = arith.constant 0 : i32
    %c0_i32_0 = arith.constant 0 : i32
    %c0_i32_1 = arith.constant 0 : i32
    return %arg0, %c0_i32, %c0_i32_0 : i32, i32, i32
  }
  func.func @transform_2(%arg0: i32) -> (i32, i32) {
    %c0_i32 = arith.constant 0 : i32
    %c0_i32_0 = arith.constant 0 : i32
    %c0_i32_1 = arith.constant 0 : i32
    return %c0_i32, %c0_i32_0 : i32, i32
  }
  func.func @transform_3(%arg0: i32) -> (i32, i32) {
    %c0_i32 = arith.constant 0 : i32
    %c0_i32_0 = arith.constant 0 : i32
    %c0_i32_1 = arith.constant 0 : i32
    return %c0_i32, %c0_i32_0 : i32, i32
  }
  func.func @transform_4(%arg0: i32) -> (i32, i32, i32) {
    %c0_i32 = arith.constant 0 : i32
    %c0_i32_0 = arith.constant 0 : i32
    %c0_i32_1 = arith.constant 0 : i32
    return %arg0, %c0_i32, %c0_i32_0 : i32, i32, i32
  }
  func.func @transform_5(%arg0: i32) -> (i32, i32, i32) {
    %c0_i32 = arith.constant 0 : i32
    %c0_i32_0 = arith.constant 0 : i32
    %c0_i32_1 = arith.constant 0 : i32
    return %arg0, %c0_i32, %c0_i32_0 : i32, i32, i32
  }
}

module attributes {stable_mosaic.version = 11 : i64} {
  func.func @kernel(%arg0: i32, %arg1: memref<1x4x256xbf16, #tpu.memory_space<vmem>>, %arg2: memref<4x36xbf16, #tpu.memory_space<vmem>>, %arg3: memref<9x256xbf16, #tpu.memory_space<vmem>>, %arg4: memref<4x1xf32, #tpu.memory_space<vmem>>, %arg5: memref<4x1xf32, #tpu.memory_space<vmem>>, %arg6: memref<1x4x256xbf16, #tpu.memory_space<vmem>>, %arg7: memref<1x4x2xf32, #tpu.memory_space<vmem>>) attributes {dimension_semantics = [#tpu.dimension_semantics<parallel>], iteration_bounds = array<i64: 2>, scalar_prefetch = 0 : i64, scratch_operands = 0 : i64, tpu.core_type = #tpu.core_type<tc>, window_params = [{transform_indices = @transform_0, window_bounds = array<i64: 1, 4, 256>}, {pipeline_mode = #tpu.pipeline_mode<synchronous>, transform_indices = @transform_1, window_bounds = array<i64: 4, 36>}, {pipeline_mode = #tpu.pipeline_mode<synchronous>, transform_indices = @transform_2, window_bounds = array<i64: 9, 256>}, {pipeline_mode = #tpu.pipeline_mode<synchronous>, transform_indices = @transform_3, window_bounds = array<i64: 4, 1>}, {pipeline_mode = #tpu.pipeline_mode<synchronous>, transform_indices = @transform_4, window_bounds = array<i64: 4, 1>}, {transform_indices = @transform_5, window_bounds = array<i64: 1, 4, 256>}, {transform_indices = @transform_6, window_bounds = array<i64: 1, 4, 2>}]} {
    %c0 = arith.constant 0 : index
    %c0_0 = arith.constant 0 : index
    %0 = vector.load %arg2[%c0, %c0_0] : memref<4x36xbf16, #tpu.memory_space<vmem>>, vector<4x36xbf16>
    %c0_1 = arith.constant 0 : index
    %c0_2 = arith.constant 0 : index
    %1 = vector.load %arg3[%c0_1, %c0_2] : memref<9x256xbf16, #tpu.memory_space<vmem>>, vector<9x256xbf16>
    %cst = arith.constant 0.000000e+00 : f32
    %2 = vector.broadcast %cst : f32 to vector<4x256xf32>
    %c0_3 = arith.constant 0 : index
    %c0_4 = arith.constant 0 : index
    %c0_5 = arith.constant 0 : index
    %3 = vector.load %arg1[%c0_3, %c0_4, %c0_5] : memref<1x4x256xbf16, #tpu.memory_space<vmem>>, vector<1x4x256xbf16>
    %4 = vector.shape_cast %3 : vector<1x4x256xbf16> to vector<4x256xbf16>
    %5 = arith.extf %4 : vector<4x256xbf16> to vector<4x256xf32>
    %c0_6 = arith.constant 0 : index
    %c0_7 = arith.constant 0 : index
    %6 = vector.load %arg4[%c0_6, %c0_7] : memref<4x1xf32, #tpu.memory_space<vmem>>, vector<4x1xf32>
    %7 = vector.broadcast %6 : vector<4x1xf32> to vector<4x256xf32>
    %8 = arith.mulf %5, %7 : vector<4x256xf32>
    %c0_8 = arith.constant 0 : index
    %c0_9 = arith.constant 0 : index
    %9 = vector.load %arg5[%c0_8, %c0_9] : memref<4x1xf32, #tpu.memory_space<vmem>>, vector<4x1xf32>
    %10 = vector.broadcast %9 : vector<4x1xf32> to vector<4x256xf32>
    %11 = arith.addf %8, %10 : vector<4x256xf32>
    %cst_10 = arith.constant 0.000000e+00 : f32
    %12 = vector.broadcast %cst_10 : f32 to vector<4x256xf32>
    %13 = arith.maximumf %11, %12 : vector<4x256xf32>
    %14 = arith.truncf %13 : vector<4x256xf32> to vector<4x256xbf16>
    %15 = vector.extract_strided_slice %14 {offsets = [0, 239], sizes = [4, 17], strides = [1, 1]} : vector<4x256xbf16> to vector<4x17xbf16>
    %16 = vector.extract_strided_slice %14 {offsets = [0, 0], sizes = [4, 239], strides = [1, 1]} : vector<4x256xbf16> to vector<4x239xbf16>
    %17 = tpu.concatenate %15, %16 in 1 : vector<4x17xbf16>, vector<4x239xbf16> -> vector<4x256xbf16>
    %18 = vector.extract_strided_slice %1 {offsets = [0, 0], sizes = [1, 256], strides = [1, 1]} : vector<9x256xbf16> to vector<1x256xbf16>
    %19 = vector.broadcast %18 : vector<1x256xbf16> to vector<4x256xbf16>
    %20 = arith.mulf %17, %19 : vector<4x256xbf16>
    %21 = vector.extract_strided_slice %0 {offsets = [0, 0], sizes = [4, 4], strides = [1, 1]} : vector<4x36xbf16> to vector<4x4xbf16>
    %cst_11 = arith.constant dense<0.000000e+00> : vector<4x256xf32>
    %22 = tpu.matmul %21, %20, %cst_11 {dimension_numbers = #tpu.dot_dimension_numbers<[1], [0], [0], [1], [0, 0, 1, 1], [], []>} : vector<4x4xbf16>, vector<4x256xbf16>, vector<4x256xf32> -> vector<4x256xf32>
    %23 = arith.addf %2, %22 : vector<4x256xf32>
    %24 = vector.extract_strided_slice %14 {offsets = [0, 240], sizes = [4, 16], strides = [1, 1]} : vector<4x256xbf16> to vector<4x16xbf16>
    %25 = vector.extract_strided_slice %14 {offsets = [0, 0], sizes = [4, 240], strides = [1, 1]} : vector<4x256xbf16> to vector<4x240xbf16>
    %26 = tpu.concatenate %24, %25 in 1 : vector<4x16xbf16>, vector<4x240xbf16> -> vector<4x256xbf16>
    %27 = vector.extract_strided_slice %1 {offsets = [1, 0], sizes = [1, 256], strides = [1, 1]} : vector<9x256xbf16> to vector<1x256xbf16>
    %28 = vector.broadcast %27 : vector<1x256xbf16> to vector<4x256xbf16>
    %29 = arith.mulf %26, %28 : vector<4x256xbf16>
    %30 = vector.extract_strided_slice %0 {offsets = [0, 4], sizes = [4, 4], strides = [1, 1]} : vector<4x36xbf16> to vector<4x4xbf16>
    %cst_12 = arith.constant dense<0.000000e+00> : vector<4x256xf32>
    %31 = tpu.matmul %30, %29, %cst_12 {dimension_numbers = #tpu.dot_dimension_numbers<[1], [0], [0], [1], [0, 0, 1, 1], [], []>} : vector<4x4xbf16>, vector<4x256xbf16>, vector<4x256xf32> -> vector<4x256xf32>
    %32 = arith.addf %23, %31 : vector<4x256xf32>
    %33 = vector.extract_strided_slice %14 {offsets = [0, 241], sizes = [4, 15], strides = [1, 1]} : vector<4x256xbf16> to vector<4x15xbf16>
    %34 = vector.extract_strided_slice %14 {offsets = [0, 0], sizes = [4, 241], strides = [1, 1]} : vector<4x256xbf16> to vector<4x241xbf16>
    %35 = tpu.concatenate %33, %34 in 1 : vector<4x15xbf16>, vector<4x241xbf16> -> vector<4x256xbf16>
    %36 = vector.extract_strided_slice %1 {offsets = [2, 0], sizes = [1, 256], strides = [1, 1]} : vector<9x256xbf16> to vector<1x256xbf16>
    %37 = vector.broadcast %36 : vector<1x256xbf16> to vector<4x256xbf16>
    %38 = arith.mulf %35, %37 : vector<4x256xbf16>
    %39 = vector.extract_strided_slice %0 {offsets = [0, 8], sizes = [4, 4], strides = [1, 1]} : vector<4x36xbf16> to vector<4x4xbf16>
    %cst_13 = arith.constant dense<0.000000e+00> : vector<4x256xf32>
    %40 = tpu.matmul %39, %38, %cst_13 {dimension_numbers = #tpu.dot_dimension_numbers<[1], [0], [0], [1], [0, 0, 1, 1], [], []>} : vector<4x4xbf16>, vector<4x256xbf16>, vector<4x256xf32> -> vector<4x256xf32>
    %41 = arith.addf %32, %40 : vector<4x256xf32>
    %42 = vector.extract_strided_slice %14 {offsets = [0, 255], sizes = [4, 1], strides = [1, 1]} : vector<4x256xbf16> to vector<4x1xbf16>
    %43 = vector.extract_strided_slice %14 {offsets = [0, 0], sizes = [4, 255], strides = [1, 1]} : vector<4x256xbf16> to vector<4x255xbf16>
    %44 = tpu.concatenate %42, %43 in 1 : vector<4x1xbf16>, vector<4x255xbf16> -> vector<4x256xbf16>
    %45 = vector.extract_strided_slice %1 {offsets = [3, 0], sizes = [1, 256], strides = [1, 1]} : vector<9x256xbf16> to vector<1x256xbf16>
    %46 = vector.broadcast %45 : vector<1x256xbf16> to vector<4x256xbf16>
    %47 = arith.mulf %44, %46 : vector<4x256xbf16>
    %48 = vector.extract_strided_slice %0 {offsets = [0, 12], sizes = [4, 4], strides = [1, 1]} : vector<4x36xbf16> to vector<4x4xbf16>
    %cst_14 = arith.constant dense<0.000000e+00> : vector<4x256xf32>
    %49 = tpu.matmul %48, %47, %cst_14 {dimension_numbers = #tpu.dot_dimension_numbers<[1], [0], [0], [1], [0, 0, 1, 1], [], []>} : vector<4x4xbf16>, vector<4x256xbf16>, vector<4x256xf32> -> vector<4x256xf32>
    %50 = arith.addf %41, %49 : vector<4x256xf32>
    %51 = vector.extract_strided_slice %1 {offsets = [4, 0], sizes = [1, 256], strides = [1, 1]} : vector<9x256xbf16> to vector<1x256xbf16>
    %52 = vector.broadcast %51 : vector<1x256xbf16> to vector<4x256xbf16>
    %53 = arith.mulf %14, %52 : vector<4x256xbf16>
    %54 = vector.extract_strided_slice %0 {offsets = [0, 16], sizes = [4, 4], strides = [1, 1]} : vector<4x36xbf16> to vector<4x4xbf16>
    %cst_15 = arith.constant dense<0.000000e+00> : vector<4x256xf32>
    %55 = tpu.matmul %54, %53, %cst_15 {dimension_numbers = #tpu.dot_dimension_numbers<[1], [0], [0], [1], [0, 0, 1, 1], [], []>} : vector<4x4xbf16>, vector<4x256xbf16>, vector<4x256xf32> -> vector<4x256xf32>
    %56 = arith.addf %50, %55 : vector<4x256xf32>
    %57 = vector.extract_strided_slice %14 {offsets = [0, 1], sizes = [4, 255], strides = [1, 1]} : vector<4x256xbf16> to vector<4x255xbf16>
    %58 = vector.extract_strided_slice %14 {offsets = [0, 0], sizes = [4, 1], strides = [1, 1]} : vector<4x256xbf16> to vector<4x1xbf16>
    %59 = tpu.concatenate %57, %58 in 1 : vector<4x255xbf16>, vector<4x1xbf16> -> vector<4x256xbf16>
    %60 = vector.extract_strided_slice %1 {offsets = [5, 0], sizes = [1, 256], strides = [1, 1]} : vector<9x256xbf16> to vector<1x256xbf16>
    %61 = vector.broadcast %60 : vector<1x256xbf16> to vector<4x256xbf16>
    %62 = arith.mulf %59, %61 : vector<4x256xbf16>
    %63 = vector.extract_strided_slice %0 {offsets = [0, 20], sizes = [4, 4], strides = [1, 1]} : vector<4x36xbf16> to vector<4x4xbf16>
    %cst_16 = arith.constant dense<0.000000e+00> : vector<4x256xf32>
    %64 = tpu.matmul %63, %62, %cst_16 {dimension_numbers = #tpu.dot_dimension_numbers<[1], [0], [0], [1], [0, 0, 1, 1], [], []>} : vector<4x4xbf16>, vector<4x256xbf16>, vector<4x256xf32> -> vector<4x256xf32>
    %65 = arith.addf %56, %64 : vector<4x256xf32>
    %66 = vector.extract_strided_slice %14 {offsets = [0, 15], sizes = [4, 241], strides = [1, 1]} : vector<4x256xbf16> to vector<4x241xbf16>
    %67 = vector.extract_strided_slice %14 {offsets = [0, 0], sizes = [4, 15], strides = [1, 1]} : vector<4x256xbf16> to vector<4x15xbf16>
    %68 = tpu.concatenate %66, %67 in 1 : vector<4x241xbf16>, vector<4x15xbf16> -> vector<4x256xbf16>
    %69 = vector.extract_strided_slice %1 {offsets = [6, 0], sizes = [1, 256], strides = [1, 1]} : vector<9x256xbf16> to vector<1x256xbf16>
    %70 = vector.broadcast %69 : vector<1x256xbf16> to vector<4x256xbf16>
    %71 = arith.mulf %68, %70 : vector<4x256xbf16>
    %72 = vector.extract_strided_slice %0 {offsets = [0, 24], sizes = [4, 4], strides = [1, 1]} : vector<4x36xbf16> to vector<4x4xbf16>
    %cst_17 = arith.constant dense<0.000000e+00> : vector<4x256xf32>
    %73 = tpu.matmul %72, %71, %cst_17 {dimension_numbers = #tpu.dot_dimension_numbers<[1], [0], [0], [1], [0, 0, 1, 1], [], []>} : vector<4x4xbf16>, vector<4x256xbf16>, vector<4x256xf32> -> vector<4x256xf32>
    %74 = arith.addf %65, %73 : vector<4x256xf32>
    %75 = vector.extract_strided_slice %14 {offsets = [0, 16], sizes = [4, 240], strides = [1, 1]} : vector<4x256xbf16> to vector<4x240xbf16>
    %76 = vector.extract_strided_slice %14 {offsets = [0, 0], sizes = [4, 16], strides = [1, 1]} : vector<4x256xbf16> to vector<4x16xbf16>
    %77 = tpu.concatenate %75, %76 in 1 : vector<4x240xbf16>, vector<4x16xbf16> -> vector<4x256xbf16>
    %78 = vector.extract_strided_slice %1 {offsets = [7, 0], sizes = [1, 256], strides = [1, 1]} : vector<9x256xbf16> to vector<1x256xbf16>
    %79 = vector.broadcast %78 : vector<1x256xbf16> to vector<4x256xbf16>
    %80 = arith.mulf %77, %79 : vector<4x256xbf16>
    %81 = vector.extract_strided_slice %0 {offsets = [0, 28], sizes = [4, 4], strides = [1, 1]} : vector<4x36xbf16> to vector<4x4xbf16>
    %cst_18 = arith.constant dense<0.000000e+00> : vector<4x256xf32>
    %82 = tpu.matmul %81, %80, %cst_18 {dimension_numbers = #tpu.dot_dimension_numbers<[1], [0], [0], [1], [0, 0, 1, 1], [], []>} : vector<4x4xbf16>, vector<4x256xbf16>, vector<4x256xf32> -> vector<4x256xf32>
    %83 = arith.addf %74, %82 : vector<4x256xf32>
    %84 = vector.extract_strided_slice %14 {offsets = [0, 17], sizes = [4, 239], strides = [1, 1]} : vector<4x256xbf16> to vector<4x239xbf16>
    %85 = vector.extract_strided_slice %14 {offsets = [0, 0], sizes = [4, 17], strides = [1, 1]} : vector<4x256xbf16> to vector<4x17xbf16>
    %86 = tpu.concatenate %84, %85 in 1 : vector<4x239xbf16>, vector<4x17xbf16> -> vector<4x256xbf16>
    %87 = vector.extract_strided_slice %1 {offsets = [8, 0], sizes = [1, 256], strides = [1, 1]} : vector<9x256xbf16> to vector<1x256xbf16>
    %88 = vector.broadcast %87 : vector<1x256xbf16> to vector<4x256xbf16>
    %89 = arith.mulf %86, %88 : vector<4x256xbf16>
    %90 = vector.extract_strided_slice %0 {offsets = [0, 32], sizes = [4, 4], strides = [1, 1]} : vector<4x36xbf16> to vector<4x4xbf16>
    %cst_19 = arith.constant dense<0.000000e+00> : vector<4x256xf32>
    %91 = tpu.matmul %90, %89, %cst_19 {dimension_numbers = #tpu.dot_dimension_numbers<[1], [0], [0], [1], [0, 0, 1, 1], [], []>} : vector<4x4xbf16>, vector<4x256xbf16>, vector<4x256xf32> -> vector<4x256xf32>
    %92 = arith.addf %83, %91 : vector<4x256xf32>
    %93 = arith.truncf %92 : vector<4x256xf32> to vector<4x256xbf16>
    %c0_20 = arith.constant 0 : index
    %c0_21 = arith.constant 0 : index
    %c0_22 = arith.constant 0 : index
    %94 = vector.load %arg6[%c0_20, %c0_21, %c0_22] : memref<1x4x256xbf16, #tpu.memory_space<vmem>>, vector<1x4x256xbf16>
    %95 = vector.shape_cast %94 : vector<1x4x256xbf16> to vector<4x256xbf16>
    %96 = vector.shape_cast %93 : vector<4x256xbf16> to vector<1x4x256xbf16>
    tpu.vector_store %arg6[%c0_20, %c0_21, %c0_22], %96 {strides = array<i32>} : memref<1x4x256xbf16, #tpu.memory_space<vmem>>, vector<1x4x256xbf16>,
    %cst_23 = arith.constant dense<0.000000e+00> : vector<4xf32>
    %97 = vector.multi_reduction <add>, %92, %cst_23 [1] : vector<4x256xf32> to vector<4xf32>
    %98 = vector.shape_cast %97 : vector<4xf32> to vector<4x1xf32>
    %99 = arith.mulf %92, %92 : vector<4x256xf32>
    %cst_24 = arith.constant dense<0.000000e+00> : vector<4xf32>
    %100 = vector.multi_reduction <add>, %99, %cst_24 [1] : vector<4x256xf32> to vector<4xf32>
    %101 = vector.shape_cast %100 : vector<4xf32> to vector<4x1xf32>
    %102 = tpu.concatenate %98, %101 in 1 : vector<4x1xf32>, vector<4x1xf32> -> vector<4x2xf32>
    %c0_25 = arith.constant 0 : index
    %c0_26 = arith.constant 0 : index
    %c0_27 = arith.constant 0 : index
    %103 = vector.load %arg7[%c0_25, %c0_26, %c0_27] : memref<1x4x2xf32, #tpu.memory_space<vmem>>, vector<1x4x2xf32>
    %104 = vector.shape_cast %103 : vector<1x4x2xf32> to vector<4x2xf32>
    %105 = vector.shape_cast %102 : vector<4x2xf32> to vector<1x4x2xf32>
    tpu.vector_store %arg7[%c0_25, %c0_26, %c0_27], %105 {strides = array<i32>} : memref<1x4x2xf32, #tpu.memory_space<vmem>>, vector<1x4x2xf32>,
    return
  }
  func.func @transform_0(%arg0: i32) -> (i32, i32, i32) {
    %c0_i32 = arith.constant 0 : i32
    %c0_i32_0 = arith.constant 0 : i32
    %c0_i32_1 = arith.constant 0 : i32
    return %arg0, %c0_i32, %c0_i32_0 : i32, i32, i32
  }
  func.func @transform_1(%arg0: i32) -> (i32, i32) {
    %c0_i32 = arith.constant 0 : i32
    %c0_i32_0 = arith.constant 0 : i32
    %c0_i32_1 = arith.constant 0 : i32
    return %c0_i32, %c0_i32_0 : i32, i32
  }
  func.func @transform_2(%arg0: i32) -> (i32, i32) {
    %c0_i32 = arith.constant 0 : i32
    %c0_i32_0 = arith.constant 0 : i32
    %c0_i32_1 = arith.constant 0 : i32
    return %c0_i32, %c0_i32_0 : i32, i32
  }
  func.func @transform_3(%arg0: i32) -> (i32, i32) {
    %c0_i32 = arith.constant 0 : i32
    %c0_i32_0 = arith.constant 0 : i32
    %c0_i32_1 = arith.constant 0 : i32
    return %c0_i32, %c0_i32_0 : i32, i32
  }
  func.func @transform_4(%arg0: i32) -> (i32, i32) {
    %c0_i32 = arith.constant 0 : i32
    %c0_i32_0 = arith.constant 0 : i32
    %c0_i32_1 = arith.constant 0 : i32
    return %c0_i32, %c0_i32_0 : i32, i32
  }
  func.func @transform_5(%arg0: i32) -> (i32, i32, i32) {
    %c0_i32 = arith.constant 0 : i32
    %c0_i32_0 = arith.constant 0 : i32
    %c0_i32_1 = arith.constant 0 : i32
    return %arg0, %c0_i32, %c0_i32_0 : i32, i32, i32
  }
  func.func @transform_6(%arg0: i32) -> (i32, i32, i32) {
    %c0_i32 = arith.constant 0 : i32
    %c0_i32_0 = arith.constant 0 : i32
    %c0_i32_1 = arith.constant 0 : i32
    return %arg0, %c0_i32, %c0_i32_0 : i32, i32, i32
  }
}

module attributes {stable_mosaic.version = 11 : i64} {
  func.func @_bn_relu_kernel(%arg0: i32, %arg1: memref<1x4x256xbf16, #tpu.memory_space<vmem>>, %arg2: memref<4x1xf32, #tpu.memory_space<vmem>>, %arg3: memref<4x1xf32, #tpu.memory_space<vmem>>, %arg4: memref<1x4x256xf32, #tpu.memory_space<vmem>>) attributes {dimension_semantics = [#tpu.dimension_semantics<parallel>], iteration_bounds = array<i64: 2>, scalar_prefetch = 0 : i64, scratch_operands = 0 : i64, tpu.core_type = #tpu.core_type<tc>, window_params = [{transform_indices = @transform_0, window_bounds = array<i64: 1, 4, 256>}, {pipeline_mode = #tpu.pipeline_mode<synchronous>, transform_indices = @transform_1, window_bounds = array<i64: 4, 1>}, {pipeline_mode = #tpu.pipeline_mode<synchronous>, transform_indices = @transform_2, window_bounds = array<i64: 4, 1>}, {transform_indices = @transform_3, window_bounds = array<i64: 1, 4, 256>}]} {
    %c0 = arith.constant 0 : index
    %c0_0 = arith.constant 0 : index
    %c0_1 = arith.constant 0 : index
    %0 = vector.load %arg1[%c0, %c0_0, %c0_1] : memref<1x4x256xbf16, #tpu.memory_space<vmem>>, vector<1x4x256xbf16>
    %1 = vector.shape_cast %0 : vector<1x4x256xbf16> to vector<4x256xbf16>
    %2 = arith.extf %1 : vector<4x256xbf16> to vector<4x256xf32>
    %c0_2 = arith.constant 0 : index
    %c0_3 = arith.constant 0 : index
    %3 = vector.load %arg2[%c0_2, %c0_3] : memref<4x1xf32, #tpu.memory_space<vmem>>, vector<4x1xf32>
    %4 = vector.broadcast %3 : vector<4x1xf32> to vector<4x256xf32>
    %5 = arith.mulf %2, %4 : vector<4x256xf32>
    %c0_4 = arith.constant 0 : index
    %c0_5 = arith.constant 0 : index
    %6 = vector.load %arg3[%c0_4, %c0_5] : memref<4x1xf32, #tpu.memory_space<vmem>>, vector<4x1xf32>
    %7 = vector.broadcast %6 : vector<4x1xf32> to vector<4x256xf32>
    %8 = arith.addf %5, %7 : vector<4x256xf32>
    %cst = arith.constant 0.000000e+00 : f32
    %9 = vector.broadcast %cst : f32 to vector<4x256xf32>
    %10 = arith.maximumf %8, %9 : vector<4x256xf32>
    %c0_6 = arith.constant 0 : index
    %c0_7 = arith.constant 0 : index
    %c0_8 = arith.constant 0 : index
    %11 = vector.load %arg4[%c0_6, %c0_7, %c0_8] : memref<1x4x256xf32, #tpu.memory_space<vmem>>, vector<1x4x256xf32>
    %12 = vector.shape_cast %11 : vector<1x4x256xf32> to vector<4x256xf32>
    %13 = vector.shape_cast %10 : vector<4x256xf32> to vector<1x4x256xf32>
    tpu.vector_store %arg4[%c0_6, %c0_7, %c0_8], %13 {strides = array<i32>} : memref<1x4x256xf32, #tpu.memory_space<vmem>>, vector<1x4x256xf32>,
    return
  }
  func.func @transform_0(%arg0: i32) -> (i32, i32, i32) {
    %c0_i32 = arith.constant 0 : i32
    %c0_i32_0 = arith.constant 0 : i32
    %c0_i32_1 = arith.constant 0 : i32
    return %arg0, %c0_i32, %c0_i32_0 : i32, i32, i32
  }
  func.func @transform_1(%arg0: i32) -> (i32, i32) {
    %c0_i32 = arith.constant 0 : i32
    %c0_i32_0 = arith.constant 0 : i32
    %c0_i32_1 = arith.constant 0 : i32
    return %c0_i32, %c0_i32_0 : i32, i32
  }
  func.func @transform_2(%arg0: i32) -> (i32, i32) {
    %c0_i32 = arith.constant 0 : i32
    %c0_i32_0 = arith.constant 0 : i32
    %c0_i32_1 = arith.constant 0 : i32
    return %c0_i32, %c0_i32_0 : i32, i32
  }
  func.func @transform_3(%arg0: i32) -> (i32, i32, i32) {
    %c0_i32 = arith.constant 0 : i32
    %c0_i32_0 = arith.constant 0 : i32
    %c0_i32_1 = arith.constant 0 : i32
    return %arg0, %c0_i32, %c0_i32_0 : i32, i32, i32
  }
}

</mosaic_0001>

<llo_original>
// kernel: up_forward.4
$region0: #{up_forward.4}
  #allocation0 [shape = 'u32[]', space=smem, size = 0x4, offset = 0x4, fixed_abs, tag = 'smem constant byte address 0x4 - core index']
  #allocation1 [shape = 'u32[144,128]{1,0:T(1,128)}', space=vmem, size = 0x12000, scoped, tag = 'internal scratch']
  %s0 = inlined_call_operand.vmem [shape: f32[8,8,8], index: 0, kind: input, shape index: {}]
  %s1 = inlined_call_operand.vmem [shape: f32[16,8], index: 1, kind: input, shape index: {}]
  %s2 = inlined_call_operand.vmem [shape: f32[8,16], index: 2, kind: input, shape index: {}]
  %s3 = inlined_call_operand.vmem [shape: bf16[8,16,16], index: 3, kind: output, shape index: {}]
  %s4 = sld [smem:[#allocation0]]
  $region45: #{up_forward.4} parent=0
    _
  %s6 = ssub.s32 1, %s4
  %s7 = scalar_select 0, %s6, %s4
  loop: start=0, step=1, limit=10
  $region2: #{up_forward.4} parent=0 // loop_pre_header
    _
  $region3: #{up_forward.4} parent=0 // loop_header
    %s9 = sphi 0, %s13
    %p10 = scmp.ge.s32.totalorder %s9, 10
    %s19 = sphi 0, %s21
    %s22 = sphi 0, %s19
    %s23 = sphi 0, %s22
    %s39 = sphi 0, %s23
    %s43 = sphi 0, %s43
    %s45 = sphi 0, %s43
    %s46 = sphi 0, %s45
    %s60 = sphi 0, %s46
    %s64 = sphi 0, %s64
    %s66 = sphi 0, %s64
    %s67 = sphi 0, %s66
    %s81 = sphi 0, %s67
    %s87 = sphi 0, %s89
    %s90 = sphi 0, %s87
    %s91 = sphi 0, %s90
    %s107 = sphi 0, %s91
  $region4: #{up_forward.4} parent=0 // loop_header_branch
    %12 = sbr.rel (%p10) target = $region8
  $region5: #{up_forward.4} parent=0 // loop_body
    %s14 = ssub.s32 %s9, 1
    %s15 = ssub.s32 %s9, 2
    %s16 = sadd.s32 %s9, 1
    %s17 = ssub.s32 %s9, %s16
    %p18 = scmp.eq.s32.totalorder %s17, 0
    %s20 = sadd.s32 %s19, 1
    %s21 = scalar_select %p18, %s19, %s20
    %p24 = pneg %p18
    %p25 = scmp.eq.s32.totalorder %s9, 7
    %p26 = por %p24, %p25
    %p27 = scmp.ne.s32.totalorder %s19, %s22
    %p28 = scmp.eq.s32.totalorder %s9, 0
    %p29 = por %p27, %p28
    %p30 = scmp.ne.s32.totalorder %s19, %s22
    %p31 = scmp.eq.s32.totalorder %s14, 7
    %p32 = por %p30, %p31
    %p33 = scmp.ne.s32.totalorder %s22, %s23
    %p34 = scmp.eq.s32.totalorder %s14, 0
    %p35 = por %p33, %p34
    %p36 = scmp.ne.s32.totalorder %s22, %s23
    %p37 = scmp.eq.s32.totalorder %s15, 7
    %p38 = por %p36, %p37
    %p40 = scmp.ne.s32.totalorder %s23, %s39
    %p41 = scmp.eq.s32.totalorder %s15, 0
    %p42 = por %p40, %p41
    %s44 = sadd.s32 %s43, 1
    %p47 = scmp.eq.s32.totalorder %s9, 7
    %p48 = scmp.ne.s32.totalorder %s43, %s45
    %p49 = scmp.eq.s32.totalorder %s9, 0
    %p50 = por %p48, %p49
    %p51 = scmp.ne.s32.totalorder %s43, %s45
    %p52 = scmp.eq.s32.totalorder %s14, 7
    %p53 = por %p51, %p52
    %p54 = scmp.ne.s32.totalorder %s45, %s46
    %p55 = scmp.eq.s32.totalorder %s14, 0
    %p56 = por %p54, %p55
    %p57 = scmp.ne.s32.totalorder %s45, %s46
    %p58 = scmp.eq.s32.totalorder %s15, 7
    %p59 = por %p57, %p58
    %p61 = scmp.ne.s32.totalorder %s46, %s60
    %p62 = scmp.eq.s32.totalorder %s15, 0
    %p63 = por %p61, %p62
    %s65 = sadd.s32 %s64, 1
    %p68 = scmp.eq.s32.totalorder %s9, 7
    %p69 = scmp.ne.s32.totalorder %s64, %s66
    %p70 = scmp.eq.s32.totalorder %s9, 0
    %p71 = por %p69, %p70
    %p72 = scmp.ne.s32.totalorder %s64, %s66
    %p73 = scmp.eq.s32.totalorder %s14, 7
    %p74 = por %p72, %p73
    %p75 = scmp.ne.s32.totalorder %s66, %s67
    %p76 = scmp.eq.s32.totalorder %s14, 0
    %p77 = por %p75, %p76
    %p78 = scmp.ne.s32.totalorder %s66, %s67
    %p79 = scmp.eq.s32.totalorder %s15, 7
    %p80 = por %p78, %p79
    %p82 = scmp.ne.s32.totalorder %s67, %s81
    %p83 = scmp.eq.s32.totalorder %s15, 0
    %p84 = por %p82, %p83
    %s85 = ssub.s32 %s9, %s16
    %p86 = scmp.eq.s32.totalorder %s85, 0
    %s88 = sadd.s32 %s87, 1
    %s89 = scalar_select %p86, %s87, %s88
    %p92 = pneg %p86
    %p93 = scmp.eq.s32.totalorder %s9, 7
    %p94 = por %p92, %p93
    %p95 = scmp.ne.s32.totalorder %s87, %s90
    %p96 = scmp.eq.s32.totalorder %s9, 0
    %p97 = por %p95, %p96
    %p98 = scmp.ne.s32.totalorder %s87, %s90
    %p99 = scmp.eq.s32.totalorder %s14, 7
    %p100 = por %p98, %p99
    %p101 = scmp.ne.s32.totalorder %s90, %s91
    %p102 = scmp.eq.s32.totalorder %s14, 0
    %p103 = por %p101, %p102
    %p104 = scmp.ne.s32.totalorder %s90, %s91
    %p105 = scmp.eq.s32.totalorder %s15, 7
    %p106 = por %p104, %p105
    %p108 = scmp.ne.s32.totalorder %s91, %s107
    %p109 = scmp.eq.s32.totalorder %s15, 0
    %p110 = por %p108, %p109
    %p111 = scmp.le.s32.totalorder 1, %s9
    %p112 = scmp.lt.s32.totalorder %s9, 9
    %p113 = pnand %p111, %p112
    %p114 = pneg %p113
    // Predicated region
    $region9: #{up_forward.4} parent=5 // pred_check
      _
    $region10: #{up_forward.4} parent=5 // pred_check_branch
      %116 = sbr.rel (%p113) target = $region12
    $region11: #{up_forward.4} parent=5 // pred_region
      %s117 = ssub.s32 %s9, 1
      // Predicated region
      $region13: #{up_forward.4} parent=11 // pred_check
        %p118 = pneg %p56
      $region14: #{up_forward.4} parent=11 // pred_check_branch
        %120 = sbr.rel (%p118) target = $region16
      $region15: #{up_forward.4} parent=11 // pred_region
        _
      $region16: #{up_forward.4} parent=11 // pred_fallthru
        _
      // Predicated region
      $region17: #{up_forward.4} parent=11 // pred_check
        %p121 = pneg %p77
      $region18: #{up_forward.4} parent=11 // pred_check_branch
        %123 = sbr.rel (%p121) target = $region20
      $region19: #{up_forward.4} parent=11 // pred_region
        _
      $region20: #{up_forward.4} parent=11 // pred_fallthru
        _
    $region12: #{up_forward.4} parent=5 // pred_fallthru
      _
    %p124 = scmp.lt.s32.totalorder %s9, 8
    // Predicated region
    $region21: #{up_forward.4} parent=5 // pred_check
      %p125 = pneg %p124
    $region22: #{up_forward.4} parent=5 // pred_check_branch
      %127 = sbr.rel (%p125) target = $region24
    $region23: #{up_forward.4} parent=5 // pred_region
      // Predicated region
      $region25: #{up_forward.4} parent=23 // pred_check
        %p128 = pneg %p29
      $region26: #{up_forward.4} parent=23 // pred_check_branch
        %130 = sbr.rel (%p128) target = $region28
      $region27: #{up_forward.4} parent=23 // pred_region
        %p131 = scmp.lt.s32.totalorder %s9, 7
        %s132 = scalar_select %p131, %s9, 7
        %s133 = smul.addr %s132, 8
        %s134 = scalar_lea.vmem %s0, %s133
      $region28: #{up_forward.4} parent=23 // pred_fallthru
        _
    $region24: #{up_forward.4} parent=5 // pred_fallthru
      _
    %p135 = scmp.le.s32.totalorder 1, %s9
    %p136 = scmp.lt.s32.totalorder %s9, 9
    %p137 = pnand %p135, %p136
    %p138 = pneg %p137
    // Predicated region
    $region29: #{up_forward.4} parent=5 // pred_check
      _
    $region30: #{up_forward.4} parent=5 // pred_check_branch
      %140 = sbr.rel (%p137) target = $region32
    $region31: #{up_forward.4} parent=5 // pred_region
      %s141 = ssub.s32 %s9, 1
      %p142 = scmp.lt.s32.totalorder %s14, 7
      %s143 = scalar_select %p142, %s14, 7
      %s144 = smul.addr %s143, 8
      %s145 = scalar_lea.vmem %s0, %s144
      %p146 = pneg %p35
      %p147 = pneg %p32
      %p148 = pneg %p56
      %p149 = pneg %p53
      %p150 = pneg %p77
      %p151 = pneg %p74
      %p152 = pneg %p103
      %p153 = pneg %p100
      %p154 = scmp.lt.s32.totalorder %s14, 7
      %s155 = scalar_select %p154, %s14, 7
      %s156 = smul.addr %s155, 2
      %s157 = smul.addr %s156, 4
      %s158 = scalar_lea.vmem %s3, %s157
      %p159 = scmp.lt.s32.totalorder %s14, 7
      %s160 = scalar_select %p159, %s14, 7
      %s161 = smul.addr %s160, 8
      %s162 = scalar_lea.vmem %s0, %s161
      %p163 = scmp.lt.s32.totalorder %s14, 7
      %s164 = scalar_select %p163, %s14, 7
      %s165 = smul.addr %s164, 2
      %s166 = smul.addr %s165, 4
      %s167 = scalar_lea.vmem %s3, %s166
      %v168 = vld [vmem:[%s162] sm:$0xff]
      %v169 = vld [vmem:[%s2] sm:$0xff]
      %vm170 = vcmask 64512
      %v172 = vsel %vm170, %v168, 0
      %174 = vmatprep.subr.mxu0 0.0
      %175 = vmatpush1.msra.mxu0 0.0
      %176 = vmatprep.subr.mxu0 0.0
      %177 = vmatpush1.msra.mxu0 0.0
      %178 = vmatprep.subr.mxu0 0.0
      %179 = vmatpush1.msra.mxu0 0.0
      %180 = vmatprep.subr.mxu0 0.0
      %181 = vmatpush1.msra.mxu0 0.0
      %182 = vmatprep.subr.mxu0 0.0
      %183 = vmatpush1.msra.mxu0 0.0
      %184 = vmatprep.subr.mxu0 0.0
      %185 = vmatpush1.msra.mxu0 0.0
      %186 = vmatprep.subr.mxu0 0.0
      %187 = vmatpush1.msra.mxu0 0.0
      %188 = vmatprep.subr.mxu0 0.0
      %189 = vmatpush1.msra.mxu0 0.0
      %190 = vmatprep.subr.mxu0 0.0
      %191 = vmatpush1.msra.mxu0 0.0
      %192 = vmatprep.subr.mxu0 0.0
      %193 = vmatpush1.msra.mxu0 0.0
      %194 = vmatprep.subr.mxu0 0.0
      %195 = vmatpush1.msra.mxu0 0.0
      %196 = vmatprep.subr.mxu0 0.0
      %197 = vmatpush1.msra.mxu0 0.0
      %198 = vmatprep.subr.mxu0 0.0
      %199 = vmatpush1.msra.mxu0 0.0
      %200 = vmatprep.subr.mxu0 0.0
      %201 = vmatpush1.msra.mxu0 0.0
      %202 = vmatprep.subr.mxu0 0.0
      %203 = vmatpush1.msra.mxu0 0.0
      %204 = vmatprep.subr.mxu0 0.0
      %205 = vmatpush1.msra.mxu0 %v169
      %206 = vmatprep.subr.mxu0 0.0
      %207 = vmatpush2.msra.mxu0 0.0
      %208 = vmatprep.subr.mxu0 0.0
      %209 = vmatpush2.msra.mxu0 0.0
      %210 = vmatprep.subr.mxu0 0.0
      %211 = vmatpush2.msra.mxu0 0.0
      %212 = vmatprep.subr.mxu0 0.0
      %213 = vmatpush2.msra.mxu0 0.0
      %214 = vmatprep.subr.mxu0 0.0
      %215 = vmatpush2.msra.mxu0 0.0
      %216 = vmatprep.subr.mxu0 0.0
      %217 = vmatpush2.msra.mxu0 0.0
      %218 = vmatprep.subr.mxu0 0.0
      %219 = vmatpush2.msra.mxu0 0.0
      %220 = vmatprep.subr.mxu0 0.0
      %221 = vmatpush2.msra.mxu0 0.0
      %222 = vmatprep.subr.mxu0 0.0
      %223 = vmatpush2.msra.mxu0 0.0
      %224 = vmatprep.subr.mxu0 0.0
      %225 = vmatpush2.msra.mxu0 0.0
      %226 = vmatprep.subr.mxu0 0.0
      %227 = vmatpush2.msra.mxu0 0.0
      %228 = vmatprep.subr.mxu0 0.0
      %229 = vmatpush2.msra.mxu0 0.0
      %230 = vmatprep.subr.mxu0 0.0
      %231 = vmatpush2.msra.mxu0 0.0
      %232 = vmatprep.subr.mxu0 0.0
      %233 = vmatpush2.msra.mxu0 0.0
      %234 = vmatprep.subr.mxu0 0.0
      %235 = vmatpush2.msra.mxu0 0.0
      %236 = vmatprep.subr.mxu0 0.0
      %237 = vmatpush2.msra.mxu0 0.0
      %238 = vmatprep.mubr.f32.mxu0 0.0
      %239 = vmatmul.mubr.f32.gmra.mxu0 %v172
      %v240 = vpop.f32.mrf.mxu0
      %v241 = vadd.f32 0.0, %v240
      %v242 = vpop.f32.mrf.mxu0
      %243 = vdwg.mxu0
      %v244 = vld [vmem:[%s1] sm:$0xff]
      %v245 = vld [vmem:[%s1 + $0x8] sm:$0xff]
      %v247 = vsel %vm170, %v244, 0
      %v250 = vsel %vm170, %v245, 0
      %252 = vmatprep.subr.mxu0 0.0
      %253 = vmatpush1.msra.mxu0 0.0
      %254 = vmatprep.subr.mxu0 0.0
      %255 = vmatpush1.msra.mxu0 0.0
      %256 = vmatprep.subr.mxu0 0.0
      %257 = vmatpush1.msra.mxu0 0.0
      %258 = vmatprep.subr.mxu0 0.0
      %259 = vmatpush1.msra.mxu0 0.0
      %260 = vmatprep.subr.mxu0 0.0
      %261 = vmatpush1.msra.mxu0 0.0
      %262 = vmatprep.subr.mxu0 0.0
      %263 = vmatpush1.msra.mxu0 0.0
      %264 = vmatprep.subr.mxu0 0.0
      %265 = vmatpush1.msra.mxu0 0.0
      %266 = vmatprep.subr.mxu0 0.0
      %267 = vmatpush1.msra.mxu0 0.0
      %268 = vmatprep.subr.mxu0 0.0
      %269 = vmatpush1.msra.mxu0 0.0
      %270 = vmatprep.subr.mxu0 0.0
      %271 = vmatpush1.msra.mxu0 0.0
      %272 = vmatprep.subr.mxu0 0.0
      %273 = vmatpush1.msra.mxu0 0.0
      %274 = vmatprep.subr.mxu0 0.0
      %275 = vmatpush1.msra.mxu0 0.0
      %276 = vmatprep.subr.mxu0 0.0
      %277 = vmatpush1.msra.mxu0 0.0
      %278 = vmatprep.subr.mxu0 0.0
      %279 = vmatpush1.msra.mxu0 0.0
      %280 = vmatprep.subr.mxu0 0.0
      %281 = vmatpush1.msra.mxu0 0.0
      %282 = vmatprep.subr.mxu0 0.0
      %283 = vmatpush1.msra.mxu0 %v241
      %284 = vmatprep.subr.mxu0 0.0
      %285 = vmatpush2.msra.mxu0 0.0
      %286 = vmatprep.subr.mxu0 0.0
      %287 = vmatpush2.msra.mxu0 0.0
      %288 = vmatprep.subr.mxu0 0.0
      %289 = vmatpush2.msra.mxu0 0.0
      %290 = vmatprep.subr.mxu0 0.0
      %291 = vmatpush2.msra.mxu0 0.0
      %292 = vmatprep.subr.mxu0 0.0
      %293 = vmatpush2.msra.mxu0 0.0
      %294 = vmatprep.subr.mxu0 0.0
      %295 = vmatpush2.msra.mxu0 0.0
      %296 = vmatprep.subr.mxu0 0.0
      %297 = vmatpush2.msra.mxu0 0.0
      %298 = vmatprep.subr.mxu0 0.0
      %299 = vmatpush2.msra.mxu0 0.0
      %300 = vmatprep.subr.mxu0 0.0
      %301 = vmatpush2.msra.mxu0 0.0
      %302 = vmatprep.subr.mxu0 0.0
      %303 = vmatpush2.msra.mxu0 0.0
      %304 = vmatprep.subr.mxu0 0.0
      %305 = vmatpush2.msra.mxu0 0.0
      %306 = vmatprep.subr.mxu0 0.0
      %307 = vmatpush2.msra.mxu0 0.0
      %308 = vmatprep.subr.mxu0 0.0
      %309 = vmatpush2.msra.mxu0 0.0
      %310 = vmatprep.subr.mxu0 0.0
      %311 = vmatpush2.msra.mxu0 0.0
      %312 = vmatprep.subr.mxu0 0.0
      %313 = vmatpush2.msra.mxu0 0.0
      %314 = vmatprep.subr.mxu0 0.0
      %315 = vmatpush2.msra.mxu0 0.0
      %316 = vmatprep.mubr.f32.mxu0 0.0
      %317 = vmatmul.mubr.f32.gmra.mxu0 %v247
      %v318 = vpop.f32.mrf.mxu0
      %v319 = vadd.f32 0.0, %v318
      %v320 = vpop.f32.mrf.mxu0
      %321 = vmatprep.mubr.f32.mxu0 0.0
      %322 = vmatmul.mubr.f32.gmra.mxu0 %v250
      %v323 = vpop.f32.mrf.mxu0
      %v324 = vadd.f32 0.0, %v323
      %v325 = vpop.f32.mrf.mxu0
      %326 = vdwg.mxu0
      %v327 = vpack.c.bf16 %v324, %v319
      %v329 = vunpack.c.l.b16 %v327
      %v330 = vunpack.c.h.b16 %v327
      %v331 = vpack.c.b16 %v329, %v329
      %v332 = vpack.c.b16 %v330, %v330
      %vm335 = vcmask 125952
      %336 = vst.msk [vmem:[%s167] sm:$0xf] %vm335, %v331
      %337 = vst.msk [vmem:[%s167 + $0x4] sm:$0xf] %vm335, %v332
      %p338 = scmp.lt.s32.totalorder %s14, 7
      %s339 = scalar_select %p338, %s14, 7
      %s340 = smul.addr %s339, 2
      %s341 = smul.addr %s340, 4
      %s342 = scalar_lea.vmem %s3, %s341
      // Predicated region
      $region33: #{up_forward.4} parent=31 // pred_check
        %p343 = pneg %p100
      $region34: #{up_forward.4} parent=31 // pred_check_branch
        %345 = sbr.rel (%p343) target = $region36
      $region35: #{up_forward.4} parent=31 // pred_region
        _
      $region36: #{up_forward.4} parent=31 // pred_fallthru
        _
    $region32: #{up_forward.4} parent=5 // pred_fallthru
      _
    %p346 = scmp.le.s32.totalorder 2, %s9
    // Predicated region
    $region37: #{up_forward.4} parent=5 // pred_check
      %p347 = pneg %p346
    $region38: #{up_forward.4} parent=5 // pred_check_branch
      %349 = sbr.rel (%p347) target = $region40
    $region39: #{up_forward.4} parent=5 // pred_region
      %s350 = ssub.s32 %s9, 2
      // Predicated region
      $region41: #{up_forward.4} parent=39 // pred_check
        %p351 = pneg %p106
      $region42: #{up_forward.4} parent=39 // pred_check_branch
        %353 = sbr.rel (%p351) target = $region44
      $region43: #{up_forward.4} parent=39 // pred_region
        %p354 = scmp.lt.s32.totalorder %s15, 7
        %s355 = scalar_select %p354, %s15, 7
        %s356 = smul.addr %s355, 2
        %s357 = smul.addr %s356, 4
        %s358 = scalar_lea.vmem %s3, %s357
      $region44: #{up_forward.4} parent=39 // pred_fallthru
        _
    $region40: #{up_forward.4} parent=5 // pred_fallthru
      _
  $region6: #{up_forward.4} parent=0 // loop_footer
    %s13 = sadd.s32 1, %s9
  $region7: #{up_forward.4} parent=0 // loop_footer_branch
    %8 = sbr.rel target = $region3
  $region8: #{up_forward.4} parent=0 // loop_exit
    _

// kernel: up_forward.7
$region0: #{up_forward.7}
  #allocation0 [shape = 'u32[]', space=smem, size = 0x4, offset = 0x4, fixed_abs, tag = 'smem constant byte address 0x4 - core index']
  #allocation1 [shape = 'u32[144,128]{1,0:T(1,128)}', space=vmem, size = 0x12000, scoped, tag = 'internal scratch']
  %s0 = inlined_call_operand.vmem [shape: bf16[2,4,256], index: 0, kind: input, shape index: {}]
  %s1 = inlined_call_operand.vmem [shape: f32[4,1], index: 1, kind: input, shape index: {}]
  %s2 = inlined_call_operand.vmem [shape: f32[4,1], index: 2, kind: input, shape index: {}]
  %s3 = inlined_call_operand.vmem [shape: f32[2,4,256], index: 3, kind: output, shape index: {}]
  %s4 = sld [smem:[#allocation0]]
  $region45: #{up_forward.7} parent=0
    _
  %s6 = ssub.s32 1, %s4
  %s7 = scalar_select 0, %s6, %s4
  loop: start=0, step=1, limit=4
  $region2: #{up_forward.7} parent=0 // loop_pre_header
    _
  $region3: #{up_forward.7} parent=0 // loop_header
    %s9 = sphi 0, %s13
    %p10 = scmp.ge.s32.totalorder %s9, 4
    %s19 = sphi 0, %s21
    %s22 = sphi 0, %s19
    %s23 = sphi 0, %s22
    %s39 = sphi 0, %s23
    %s43 = sphi 0, %s43
    %s45 = sphi 0, %s43
    %s46 = sphi 0, %s45
    %s60 = sphi 0, %s46
    %s64 = sphi 0, %s64
    %s66 = sphi 0, %s64
    %s67 = sphi 0, %s66
    %s81 = sphi 0, %s67
    %s87 = sphi 0, %s89
    %s90 = sphi 0, %s87
    %s91 = sphi 0, %s90
    %s107 = sphi 0, %s91
  $region4: #{up_forward.7} parent=0 // loop_header_branch
    %12 = sbr.rel (%p10) target = $region8
  $region5: #{up_forward.7} parent=0 // loop_body
    %s14 = ssub.s32 %s9, 1
    %s15 = ssub.s32 %s9, 2
    %s16 = sadd.s32 %s9, 1
    %s17 = ssub.s32 %s9, %s16
    %p18 = scmp.eq.s32.totalorder %s17, 0
    %s20 = sadd.s32 %s19, 1
    %s21 = scalar_select %p18, %s19, %s20
    %p24 = pneg %p18
    %p25 = scmp.eq.s32.totalorder %s9, 1
    %p26 = por %p24, %p25
    %p27 = scmp.ne.s32.totalorder %s19, %s22
    %p28 = scmp.eq.s32.totalorder %s9, 0
    %p29 = por %p27, %p28
    %p30 = scmp.ne.s32.totalorder %s19, %s22
    %p31 = scmp.eq.s32.totalorder %s14, 1
    %p32 = por %p30, %p31
    %p33 = scmp.ne.s32.totalorder %s22, %s23
    %p34 = scmp.eq.s32.totalorder %s14, 0
    %p35 = por %p33, %p34
    %p36 = scmp.ne.s32.totalorder %s22, %s23
    %p37 = scmp.eq.s32.totalorder %s15, 1
    %p38 = por %p36, %p37
    %p40 = scmp.ne.s32.totalorder %s23, %s39
    %p41 = scmp.eq.s32.totalorder %s15, 0
    %p42 = por %p40, %p41
    %s44 = sadd.s32 %s43, 1
    %p47 = scmp.eq.s32.totalorder %s9, 1
    %p48 = scmp.ne.s32.totalorder %s43, %s45
    %p49 = scmp.eq.s32.totalorder %s9, 0
    %p50 = por %p48, %p49
    %p51 = scmp.ne.s32.totalorder %s43, %s45
    %p52 = scmp.eq.s32.totalorder %s14, 1
    %p53 = por %p51, %p52
    %p54 = scmp.ne.s32.totalorder %s45, %s46
    %p55 = scmp.eq.s32.totalorder %s14, 0
    %p56 = por %p54, %p55
    %p57 = scmp.ne.s32.totalorder %s45, %s46
    %p58 = scmp.eq.s32.totalorder %s15, 1
    %p59 = por %p57, %p58
    %p61 = scmp.ne.s32.totalorder %s46, %s60
    %p62 = scmp.eq.s32.totalorder %s15, 0
    %p63 = por %p61, %p62
    %s65 = sadd.s32 %s64, 1
    %p68 = scmp.eq.s32.totalorder %s9, 1
    %p69 = scmp.ne.s32.totalorder %s64, %s66
    %p70 = scmp.eq.s32.totalorder %s9, 0
    %p71 = por %p69, %p70
    %p72 = scmp.ne.s32.totalorder %s64, %s66
    %p73 = scmp.eq.s32.totalorder %s14, 1
    %p74 = por %p72, %p73
    %p75 = scmp.ne.s32.totalorder %s66, %s67
    %p76 = scmp.eq.s32.totalorder %s14, 0
    %p77 = por %p75, %p76
    %p78 = scmp.ne.s32.totalorder %s66, %s67
    %p79 = scmp.eq.s32.totalorder %s15, 1
    %p80 = por %p78, %p79
    %p82 = scmp.ne.s32.totalorder %s67, %s81
    %p83 = scmp.eq.s32.totalorder %s15, 0
    %p84 = por %p82, %p83
    %s85 = ssub.s32 %s9, %s16
    %p86 = scmp.eq.s32.totalorder %s85, 0
    %s88 = sadd.s32 %s87, 1
    %s89 = scalar_select %p86, %s87, %s88
    %p92 = pneg %p86
    %p93 = scmp.eq.s32.totalorder %s9, 1
    %p94 = por %p92, %p93
    %p95 = scmp.ne.s32.totalorder %s87, %s90
    %p96 = scmp.eq.s32.totalorder %s9, 0
    %p97 = por %p95, %p96
    %p98 = scmp.ne.s32.totalorder %s87, %s90
    %p99 = scmp.eq.s32.totalorder %s14, 1
    %p100 = por %p98, %p99
    %p101 = scmp.ne.s32.totalorder %s90, %s91
    %p102 = scmp.eq.s32.totalorder %s14, 0
    %p103 = por %p101, %p102
    %p104 = scmp.ne.s32.totalorder %s90, %s91
    %p105 = scmp.eq.s32.totalorder %s15, 1
    %p106 = por %p104, %p105
    %p108 = scmp.ne.s32.totalorder %s91, %s107
    %p109 = scmp.eq.s32.totalorder %s15, 0
    %p110 = por %p108, %p109
    %p111 = scmp.le.s32.totalorder 1, %s9
    %p112 = scmp.lt.s32.totalorder %s9, 3
    %p113 = pnand %p111, %p112
    %p114 = pneg %p113
    // Predicated region
    $region9: #{up_forward.7} parent=5 // pred_check
      _
    $region10: #{up_forward.7} parent=5 // pred_check_branch
      %116 = sbr.rel (%p113) target = $region12
    $region11: #{up_forward.7} parent=5 // pred_region
      %s117 = ssub.s32 %s9, 1
      // Predicated region
      $region13: #{up_forward.7} parent=11 // pred_check
        %p118 = pneg %p56
      $region14: #{up_forward.7} parent=11 // pred_check_branch
        %120 = sbr.rel (%p118) target = $region16
      $region15: #{up_forward.7} parent=11 // pred_region
        _
      $region16: #{up_forward.7} parent=11 // pred_fallthru
        _
      // Predicated region
      $region17: #{up_forward.7} parent=11 // pred_check
        %p121 = pneg %p77
      $region18: #{up_forward.7} parent=11 // pred_check_branch
        %123 = sbr.rel (%p121) target = $region20
      $region19: #{up_forward.7} parent=11 // pred_region
        _
      $region20: #{up_forward.7} parent=11 // pred_fallthru
        _
    $region12: #{up_forward.7} parent=5 // pred_fallthru
      _
    %p124 = scmp.lt.s32.totalorder %s9, 2
    // Predicated region
    $region21: #{up_forward.7} parent=5 // pred_check
      %p125 = pneg %p124
    $region22: #{up_forward.7} parent=5 // pred_check_branch
      %127 = sbr.rel (%p125) target = $region24
    $region23: #{up_forward.7} parent=5 // pred_region
      // Predicated region
      $region25: #{up_forward.7} parent=23 // pred_check
        %p128 = pneg %p29
      $region26: #{up_forward.7} parent=23 // pred_check_branch
        %130 = sbr.rel (%p128) target = $region28
      $region27: #{up_forward.7} parent=23 // pred_region
        %p131 = scmp.lt.s32.totalorder %s9, 1
        %s132 = scalar_select %p131, %s9, 1
        %s133 = smul.addr %s132, 2
        %s134 = smul.addr %s133, 2
        %s135 = scalar_lea.vmem %s0, %s134
      $region28: #{up_forward.7} parent=23 // pred_fallthru
        _
    $region24: #{up_forward.7} parent=5 // pred_fallthru
      _
    %p136 = scmp.le.s32.totalorder 1, %s9
    %p137 = scmp.lt.s32.totalorder %s9, 3
    %p138 = pnand %p136, %p137
    %p139 = pneg %p138
    // Predicated region
    $region29: #{up_forward.7} parent=5 // pred_check
      _
    $region30: #{up_forward.7} parent=5 // pred_check_branch
      %141 = sbr.rel (%p138) target = $region32
    $region31: #{up_forward.7} parent=5 // pred_region
      %s142 = ssub.s32 %s9, 1
      %p143 = scmp.lt.s32.totalorder %s14, 1
      %s144 = scalar_select %p143, %s14, 1
      %s145 = smul.addr %s144, 2
      %s146 = smul.addr %s145, 2
      %s147 = scalar_lea.vmem %s0, %s146
      %p148 = pneg %p35
      %p149 = pneg %p32
      %p150 = pneg %p56
      %p151 = pneg %p53
      %p152 = pneg %p77
      %p153 = pneg %p74
      %p154 = pneg %p103
      %p155 = pneg %p100
      %p156 = scmp.lt.s32.totalorder %s14, 1
      %s157 = scalar_select %p156, %s14, 1
      %s158 = smul.addr %s157, 2
      %s159 = smul.addr %s158, 4
      %s160 = scalar_lea.vmem %s3, %s159
      %p161 = scmp.lt.s32.totalorder %s14, 1
      %s162 = scalar_select %p161, %s14, 1
      %s163 = smul.addr %s162, 2
      %s164 = smul.addr %s163, 2
      %s165 = scalar_lea.vmem %s0, %s164
      %p166 = scmp.lt.s32.totalorder %s14, 1
      %s167 = scalar_select %p166, %s14, 1
      %s168 = smul.addr %s167, 2
      %s169 = smul.addr %s168, 4
      %s170 = scalar_lea.vmem %s3, %s169
      %v171 = vld [vmem:[%s165] sm:$0xf]
      %v172 = vunpack.c.l.bf16 %v171
      %v173 = vld [vmem:[%s1] sm:$0xf]
      %175 = vset.pattern.permute.xlu0 0
      %176 = vperm.xlu0 %175, %v173
      %v177 = vpop.permute.xlu0 %176
      %v179 = vunpack.c.l.s4 839922192
      %v180 = vunpack.c.0.s8 %v179
      %v181 = vlaneseq
      %v182 = vshrl.u32 %v181, 7
      %v183 = vsub.s32 %v180, %v182
      %v184 = vrot.slane %v177, %v183
      %v186 = vmul.f32 %v172, %v184
      %v187 = vld [vmem:[%s2] sm:$0xf]
      %189 = vset.pattern.permute.xlu0 0
      %190 = vperm.xlu0 %189, %v187
      %v191 = vpop.permute.xlu0 %190
      %v193 = vunpack.c.l.s4 839922192
      %v194 = vunpack.c.0.s8 %v193
      %v195 = vlaneseq
      %v196 = vshrl.u32 %v195, 7
      %v197 = vsub.s32 %v194, %v196
      %v198 = vrot.slane %v191, %v197
      %v200 = vadd.f32 %v186, %v198
      %v201 = vmax.f32 %v200, 0.0
      %202 = vst [vmem:[%s170] sm:$0xff] %v201
      %p203 = scmp.lt.s32.totalorder %s14, 1
      %s204 = scalar_select %p203, %s14, 1
      %s205 = smul.addr %s204, 2
      %s206 = smul.addr %s205, 4
      %s207 = scalar_lea.vmem %s3, %s206
      // Predicated region
      $region33: #{up_forward.7} parent=31 // pred_check
        %p208 = pneg %p100
      $region34: #{up_forward.7} parent=31 // pred_check_branch
        %210 = sbr.rel (%p208) target = $region36
      $region35: #{up_forward.7} parent=31 // pred_region
        _
      $region36: #{up_forward.7} parent=31 // pred_fallthru
        _
    $region32: #{up_forward.7} parent=5 // pred_fallthru
      _
    %p211 = scmp.le.s32.totalorder 2, %s9
    // Predicated region
    $region37: #{up_forward.7} parent=5 // pred_check
      %p212 = pneg %p211
    $region38: #{up_forward.7} parent=5 // pred_check_branch
      %214 = sbr.rel (%p212) target = $region40
    $region39: #{up_forward.7} parent=5 // pred_region
      %s215 = ssub.s32 %s9, 2
      // Predicated region
      $region41: #{up_forward.7} parent=39 // pred_check
        %p216 = pneg %p106
      $region42: #{up_forward.7} parent=39 // pred_check_branch
        %218 = sbr.rel (%p216) target = $region44
      $region43: #{up_forward.7} parent=39 // pred_region
        %p219 = scmp.lt.s32.totalorder %s15, 1
        %s220 = scalar_select %p219, %s15, 1
        %s221 = smul.addr %s220, 2
        %s222 = smul.addr %s221, 4
        %s223 = scalar_lea.vmem %s3, %s222
      $region44: #{up_forward.7} parent=39 // pred_fallthru
        _
    $region40: #{up_forward.7} parent=5 // pred_fallthru
      _
  $region6: #{up_forward.7} parent=0 // loop_footer
    %s13 = sadd.s32 1, %s9
  $region7: #{up_forward.7} parent=0 // loop_footer_branch
    %8 = sbr.rel target = $region3
  $region8: #{up_forward.7} parent=0 // loop_exit
    _

// kernel: up_forward.6
$region0: #{up_forward.6}
  #allocation0 [shape = 'u32[]', space=smem, size = 0x4, offset = 0x4, fixed_abs, tag = 'smem constant byte address 0x4 - core index']
  #allocation1 [shape = 'u32[144,128]{1,0:T(1,128)}', space=vmem, size = 0x12000, scoped, tag = 'internal scratch']
  %s0 = inlined_call_operand.vmem [shape: bf16[2,4,256], index: 0, kind: input, shape index: {}]
  %s1 = inlined_call_operand.vmem [shape: bf16[4,36], index: 1, kind: input, shape index: {}]
  %s2 = inlined_call_operand.vmem [shape: bf16[9,256], index: 2, kind: input, shape index: {}]
  %s3 = inlined_call_operand.vmem [shape: f32[4,1], index: 3, kind: input, shape index: {}]
  %s4 = inlined_call_operand.vmem [shape: f32[4,1], index: 4, kind: input, shape index: {}]
  %s5 = inlined_call_operand.vmem [shape: bf16[2,4,256], index: 5, kind: output, shape index: {0}]
  %s6 = inlined_call_operand.vmem [shape: f32[2,4,2], index: 6, kind: output, shape index: {1}]
  %7 = xla_tuple %s5, %s6
  %s8 = sld [smem:[#allocation0]]
  $region61: #{up_forward.6} parent=0
    _
  %s10 = ssub.s32 1, %s8
  %s11 = scalar_select 0, %s10, %s8
  loop: start=0, step=1, limit=4
  $region2: #{up_forward.6} parent=0 // loop_pre_header
    _
  $region3: #{up_forward.6} parent=0 // loop_header
    %s13 = sphi 0, %s17
    %p14 = scmp.ge.s32.totalorder %s13, 4
    %s23 = sphi 0, %s25
    %s26 = sphi 0, %s23
    %s27 = sphi 0, %s26
    %s43 = sphi 0, %s27
    %s47 = sphi 0, %s47
    %s49 = sphi 0, %s47
    %s50 = sphi 0, %s49
    %s64 = sphi 0, %s50
    %s68 = sphi 0, %s68
    %s70 = sphi 0, %s68
    %s71 = sphi 0, %s70
    %s85 = sphi 0, %s71
    %s89 = sphi 0, %s89
    %s91 = sphi 0, %s89
    %s92 = sphi 0, %s91
    %s106 = sphi 0, %s92
    %s110 = sphi 0, %s110
    %s112 = sphi 0, %s110
    %s113 = sphi 0, %s112
    %s127 = sphi 0, %s113
    %s133 = sphi 0, %s135
    %s136 = sphi 0, %s133
    %s137 = sphi 0, %s136
    %s153 = sphi 0, %s137
    %s159 = sphi 0, %s161
    %s162 = sphi 0, %s159
    %s163 = sphi 0, %s162
    %s179 = sphi 0, %s163
  $region4: #{up_forward.6} parent=0 // loop_header_branch
    %16 = sbr.rel (%p14) target = $region8
  $region5: #{up_forward.6} parent=0 // loop_body
    %s18 = ssub.s32 %s13, 1
    %s19 = ssub.s32 %s13, 2
    %s20 = sadd.s32 %s13, 1
    %s21 = ssub.s32 %s13, %s20
    %p22 = scmp.eq.s32.totalorder %s21, 0
    %s24 = sadd.s32 %s23, 1
    %s25 = scalar_select %p22, %s23, %s24
    %p28 = pneg %p22
    %p29 = scmp.eq.s32.totalorder %s13, 1
    %p30 = por %p28, %p29
    %p31 = scmp.ne.s32.totalorder %s23, %s26
    %p32 = scmp.eq.s32.totalorder %s13, 0
    %p33 = por %p31, %p32
    %p34 = scmp.ne.s32.totalorder %s23, %s26
    %p35 = scmp.eq.s32.totalorder %s18, 1
    %p36 = por %p34, %p35
    %p37 = scmp.ne.s32.totalorder %s26, %s27
    %p38 = scmp.eq.s32.totalorder %s18, 0
    %p39 = por %p37, %p38
    %p40 = scmp.ne.s32.totalorder %s26, %s27
    %p41 = scmp.eq.s32.totalorder %s19, 1
    %p42 = por %p40, %p41
    %p44 = scmp.ne.s32.totalorder %s27, %s43
    %p45 = scmp.eq.s32.totalorder %s19, 0
    %p46 = por %p44, %p45
    %s48 = sadd.s32 %s47, 1
    %p51 = scmp.eq.s32.totalorder %s13, 1
    %p52 = scmp.ne.s32.totalorder %s47, %s49
    %p53 = scmp.eq.s32.totalorder %s13, 0
    %p54 = por %p52, %p53
    %p55 = scmp.ne.s32.totalorder %s47, %s49
    %p56 = scmp.eq.s32.totalorder %s18, 1
    %p57 = por %p55, %p56
    %p58 = scmp.ne.s32.totalorder %s49, %s50
    %p59 = scmp.eq.s32.totalorder %s18, 0
    %p60 = por %p58, %p59
    %p61 = scmp.ne.s32.totalorder %s49, %s50
    %p62 = scmp.eq.s32.totalorder %s19, 1
    %p63 = por %p61, %p62
    %p65 = scmp.ne.s32.totalorder %s50, %s64
    %p66 = scmp.eq.s32.totalorder %s19, 0
    %p67 = por %p65, %p66
    %s69 = sadd.s32 %s68, 1
    %p72 = scmp.eq.s32.totalorder %s13, 1
    %p73 = scmp.ne.s32.totalorder %s68, %s70
    %p74 = scmp.eq.s32.totalorder %s13, 0
    %p75 = por %p73, %p74
    %p76 = scmp.ne.s32.totalorder %s68, %s70
    %p77 = scmp.eq.s32.totalorder %s18, 1
    %p78 = por %p76, %p77
    %p79 = scmp.ne.s32.totalorder %s70, %s71
    %p80 = scmp.eq.s32.totalorder %s18, 0
    %p81 = por %p79, %p80
    %p82 = scmp.ne.s32.totalorder %s70, %s71
    %p83 = scmp.eq.s32.totalorder %s19, 1
    %p84 = por %p82, %p83
    %p86 = scmp.ne.s32.totalorder %s71, %s85
    %p87 = scmp.eq.s32.totalorder %s19, 0
    %p88 = por %p86, %p87
    %s90 = sadd.s32 %s89, 1
    %p93 = scmp.eq.s32.totalorder %s13, 1
    %p94 = scmp.ne.s32.totalorder %s89, %s91
    %p95 = scmp.eq.s32.totalorder %s13, 0
    %p96 = por %p94, %p95
    %p97 = scmp.ne.s32.totalorder %s89, %s91
    %p98 = scmp.eq.s32.totalorder %s18, 1
    %p99 = por %p97, %p98
    %p100 = scmp.ne.s32.totalorder %s91, %s92
    %p101 = scmp.eq.s32.totalorder %s18, 0
    %p102 = por %p100, %p101
    %p103 = scmp.ne.s32.totalorder %s91, %s92
    %p104 = scmp.eq.s32.totalorder %s19, 1
    %p105 = por %p103, %p104
    %p107 = scmp.ne.s32.totalorder %s92, %s106
    %p108 = scmp.eq.s32.totalorder %s19, 0
    %p109 = por %p107, %p108
    %s111 = sadd.s32 %s110, 1
    %p114 = scmp.eq.s32.totalorder %s13, 1
    %p115 = scmp.ne.s32.totalorder %s110, %s112
    %p116 = scmp.eq.s32.totalorder %s13, 0
    %p117 = por %p115, %p116
    %p118 = scmp.ne.s32.totalorder %s110, %s112
    %p119 = scmp.eq.s32.totalorder %s18, 1
    %p120 = por %p118, %p119
    %p121 = scmp.ne.s32.totalorder %s112, %s113
    %p122 = scmp.eq.s32.totalorder %s18, 0
    %p123 = por %p121, %p122
    %p124 = scmp.ne.s32.totalorder %s112, %s113
    %p125 = scmp.eq.s32.totalorder %s19, 1
    %p126 = por %p124, %p125
    %p128 = scmp.ne.s32.totalorder %s113, %s127
    %p129 = scmp.eq.s32.totalorder %s19, 0
    %p130 = por %p128, %p129
    %s131 = ssub.s32 %s13, %s20
    %p132 = scmp.eq.s32.totalorder %s131, 0
    %s134 = sadd.s32 %s133, 1
    %s135 = scalar_select %p132, %s133, %s134
    %p138 = pneg %p132
    %p139 = scmp.eq.s32.totalorder %s13, 1
    %p140 = por %p138, %p139
    %p141 = scmp.ne.s32.totalorder %s133, %s136
    %p142 = scmp.eq.s32.totalorder %s13, 0
    %p143 = por %p141, %p142
    %p144 = scmp.ne.s32.totalorder %s133, %s136
    %p145 = scmp.eq.s32.totalorder %s18, 1
    %p146 = por %p144, %p145
    %p147 = scmp.ne.s32.totalorder %s136, %s137
    %p148 = scmp.eq.s32.totalorder %s18, 0
    %p149 = por %p147, %p148
    %p150 = scmp.ne.s32.totalorder %s136, %s137
    %p151 = scmp.eq.s32.totalorder %s19, 1
    %p152 = por %p150, %p151
    %p154 = scmp.ne.s32.totalorder %s137, %s153
    %p155 = scmp.eq.s32.totalorder %s19, 0
    %p156 = por %p154, %p155
    %s157 = ssub.s32 %s13, %s20
    %p158 = scmp.eq.s32.totalorder %s157, 0
    %s160 = sadd.s32 %s159, 1
    %s161 = scalar_select %p158, %s159, %s160
    %p164 = pneg %p158
    %p165 = scmp.eq.s32.totalorder %s13, 1
    %p166 = por %p164, %p165
    %p167 = scmp.ne.s32.totalorder %s159, %s162
    %p168 = scmp.eq.s32.totalorder %s13, 0
    %p169 = por %p167, %p168
    %p170 = scmp.ne.s32.totalorder %s159, %s162
    %p171 = scmp.eq.s32.totalorder %s18, 1
    %p172 = por %p170, %p171
    %p173 = scmp.ne.s32.totalorder %s162, %s163
    %p174 = scmp.eq.s32.totalorder %s18, 0
    %p175 = por %p173, %p174
    %p176 = scmp.ne.s32.totalorder %s162, %s163
    %p177 = scmp.eq.s32.totalorder %s19, 1
    %p178 = por %p176, %p177
    %p180 = scmp.ne.s32.totalorder %s163, %s179
    %p181 = scmp.eq.s32.totalorder %s19, 0
    %p182 = por %p180, %p181
    %p183 = scmp.le.s32.totalorder 1, %s13
    %p184 = scmp.lt.s32.totalorder %s13, 3
    %p185 = pnand %p183, %p184
    %p186 = pneg %p185
    // Predicated region
    $region9: #{up_forward.6} parent=5 // pred_check
      _
    $region10: #{up_forward.6} parent=5 // pred_check_branch
      %188 = sbr.rel (%p185) target = $region12
    $region11: #{up_forward.6} parent=5 // pred_region
      %s189 = ssub.s32 %s13, 1
      // Predicated region
      $region13: #{up_forward.6} parent=11 // pred_check
        %p190 = pneg %p60
      $region14: #{up_forward.6} parent=11 // pred_check_branch
        %192 = sbr.rel (%p190) target = $region16
      $region15: #{up_forward.6} parent=11 // pred_region
        _
      $region16: #{up_forward.6} parent=11 // pred_fallthru
        _
      // Predicated region
      $region17: #{up_forward.6} parent=11 // pred_check
        %p193 = pneg %p81
      $region18: #{up_forward.6} parent=11 // pred_check_branch
        %195 = sbr.rel (%p193) target = $region20
      $region19: #{up_forward.6} parent=11 // pred_region
        _
      $region20: #{up_forward.6} parent=11 // pred_fallthru
        _
      // Predicated region
      $region21: #{up_forward.6} parent=11 // pred_check
        %p196 = pneg %p102
      $region22: #{up_forward.6} parent=11 // pred_check_branch
        %198 = sbr.rel (%p196) target = $region24
      $region23: #{up_forward.6} parent=11 // pred_region
        _
      $region24: #{up_forward.6} parent=11 // pred_fallthru
        _
      // Predicated region
      $region25: #{up_forward.6} parent=11 // pred_check
        %p199 = pneg %p123
      $region26: #{up_forward.6} parent=11 // pred_check_branch
        %201 = sbr.rel (%p199) target = $region28
      $region27: #{up_forward.6} parent=11 // pred_region
        _
      $region28: #{up_forward.6} parent=11 // pred_fallthru
        _
    $region12: #{up_forward.6} parent=5 // pred_fallthru
      _
    %p202 = scmp.lt.s32.totalorder %s13, 2
    // Predicated region
    $region29: #{up_forward.6} parent=5 // pred_check
      %p203 = pneg %p202
    $region30: #{up_forward.6} parent=5 // pred_check_branch
      %205 = sbr.rel (%p203) target = $region32
    $region31: #{up_forward.6} parent=5 // pred_region
      // Predicated region
      $region33: #{up_forward.6} parent=31 // pred_check
        %p206 = pneg %p33
      $region34: #{up_forward.6} parent=31 // pred_check_branch
        %208 = sbr.rel (%p206) target = $region36
      $region35: #{up_forward.6} parent=31 // pred_region
        %p209 = scmp.lt.s32.totalorder %s13, 1
        %s210 = scalar_select %p209, %s13, 1
        %s211 = smul.addr %s210, 2
        %s212 = smul.addr %s211, 2
        %s213 = scalar_lea.vmem %s0, %s212
      $region36: #{up_forward.6} parent=31 // pred_fallthru
        _
    $region32: #{up_forward.6} parent=5 // pred_fallthru
      _
    %p214 = scmp.le.s32.totalorder 1, %s13
    %p215 = scmp.lt.s32.totalorder %s13, 3
    %p216 = pnand %p214, %p215
    %p217 = pneg %p216
    // Predicated region
    $region37: #{up_forward.6} parent=5 // pred_check
      _
    $region38: #{up_forward.6} parent=5 // pred_check_branch
      %219 = sbr.rel (%p216) target = $region40
    $region39: #{up_forward.6} parent=5 // pred_region
      %s220 = ssub.s32 %s13, 1
      %p221 = scmp.lt.s32.totalorder %s18, 1
      %s222 = scalar_select %p221, %s18, 1
      %s223 = smul.addr %s222, 2
      %s224 = smul.addr %s223, 2
      %s225 = scalar_lea.vmem %s0, %s224
      %p226 = pneg %p39
      %p227 = pneg %p36
      %p228 = pneg %p60
      %p229 = pneg %p57
      %p230 = pneg %p81
      %p231 = pneg %p78
      %p232 = pneg %p102
      %p233 = pneg %p99
      %p234 = pneg %p123
      %p235 = pneg %p120
      %p236 = pneg %p149
      %p237 = pneg %p146
      %p238 = scmp.lt.s32.totalorder %s18, 1
      %s239 = scalar_select %p238, %s18, 1
      %s240 = smul.addr %s239, 2
      %s241 = smul.addr %s240, 2
      %s242 = scalar_lea.vmem %s5, %s241
      %p243 = pneg %p175
      %p244 = pneg %p172
      %p245 = scmp.lt.s32.totalorder %s18, 1
      %s246 = scalar_select %p245, %s18, 1
      %s247 = smul.addr %s246, 4
      %s248 = scalar_lea.vmem %s6, %s247
      %p249 = scmp.lt.s32.totalorder %s18, 1
      %s250 = scalar_select %p249, %s18, 1
      %s251 = smul.addr %s250, 2
      %s252 = smul.addr %s251, 2
      %s253 = scalar_lea.vmem %s0, %s252
      %p254 = scmp.lt.s32.totalorder %s18, 1
      %s255 = scalar_select %p254, %s18, 1
      %s256 = smul.addr %s255, 2
      %s257 = smul.addr %s256, 2
      %s258 = scalar_lea.vmem %s5, %s257
      %p259 = scmp.lt.s32.totalorder %s18, 1
      %s260 = scalar_select %p259, %s18, 1
      %s261 = smul.addr %s260, 4
      %s262 = scalar_lea.vmem %s6, %s261
      %v264 = vld [vmem:[%s1] sm:$0x3]
      %v265 = vld [vmem:[%s2] sm:$0xff]
      %v266 = vld [vmem:[%s2 + $0x8] sm:$0x11]
      %v267 = vld [vmem:[%s253] sm:$0xf]
      %v268 = vunpack.c.l.bf16 %v267
      %v269 = vld [vmem:[%s3] sm:$0xf]
      %271 = vset.pattern.permute.xlu0 0
      %272 = vperm.xlu0 %271, %v269
      %v273 = vpop.permute.xlu0 %272
      %v275 = vunpack.c.l.s4 839922192
      %v276 = vunpack.c.0.s8 %v275
      %v277 = vlaneseq
      %v278 = vshrl.u32 %v277, 7
      %v279 = vsub.s32 %v276, %v278
      %v280 = vrot.slane %v273, %v279
      %v282 = vmul.f32 %v268, %v280
      %v283 = vld [vmem:[%s4] sm:$0xf]
      %285 = vset.pattern.permute.xlu0 0
      %286 = vperm.xlu0 %285, %v283
      %v287 = vpop.permute.xlu0 %286
      %v289 = vunpack.c.l.s4 839922192
      %v290 = vunpack.c.0.s8 %v289
      %v291 = vlaneseq
      %v292 = vshrl.u32 %v291, 7
      %v293 = vsub.s32 %v290, %v292
      %v294 = vrot.slane %v287, %v293
      %v296 = vadd.f32 %v282, %v294
      %v297 = vmax.f32 %v296, 0.0
      %v299 = vcombine.high %v297, %v297
      %v301 = vpack.c.bf16 %v297, %v297
      %v302 = vpack.c.bf16 %v299, %v299
      %304 = vrot.lane.b32.xlu0 %v302, 17
      %v305 = vpop.permute.xlu0 %304
      %307 = vrot.lane.b32.xlu0 %v301, 17
      %v308 = vpop.permute.xlu0 %307
      %vm309 = vcmask 138240
      %v310 = vsel %vm309, %v308, %v305
      %vm312 = vcmask 138240
      %v315 = vsel %vm312, %v305, %v308
      %v318 = vunpack.c.l.b16 %v265
      %v319 = vunpack.c.h.b16 %v265
      %v320 = vpack.c.b16 %v318, %v318
      %v321 = vpack.c.b16 %v319, %v319
      %v323 = vpack.i.b16 %v320, %v320
      %v325 = vlaneseq
      %v326 = vshrl.u32 %v325, 7
      %v327 = vsub.s32 0, %v326
      %v328 = vrot.slane %v323, %v327
      %v330 = vpack.i.b16 %v321, %v321
      %v332 = vlaneseq
      %v333 = vshrl.u32 %v332, 7
      %v334 = vsub.s32 0, %v333
      %v335 = vrot.slane %v330, %v334
      %v336 = vmul.bf16 %v315, %v328
      %v337 = vmul.bf16 %v310, %v335
      %338 = vrot.lane.b32.xlu0 %v302, 16
      %v339 = vpop.permute.xlu0 %338
      %340 = vrot.lane.b32.xlu0 %v301, 16
      %v341 = vpop.permute.xlu0 %340
      %vm342 = vcmask 130048
      %v343 = vsel %vm342, %v341, %v339
      %vm345 = vcmask 130048
      %v348 = vsel %vm345, %v339, %v341
      %v350 = vshrl.u32 %v320, 16
      %v351 = vpack.i.b16 %v350, %v350
      %v353 = vlaneseq
      %v354 = vshrl.u32 %v353, 7
      %v355 = vsub.s32 0, %v354
      %v356 = vrot.slane %v351, %v355
      %v357 = vshrl.u32 %v321, 16
      %v358 = vpack.i.b16 %v357, %v357
      %v360 = vlaneseq
      %v361 = vshrl.u32 %v360, 7
      %v362 = vsub.s32 0, %v361
      %v363 = vrot.slane %v358, %v362
      %v364 = vmul.bf16 %v348, %v356
      %v365 = vmul.bf16 %v343, %v363
      %v368 = vunpack.c.l.s4 1983009808
      %v369 = vunpack.c.0.s8 %v368
      %v370 = vlaneseq
      %v371 = vshrl.u32 %v370, 7
      %v372 = vsub.s32 %v369, %v371
      %v373 = vrot.slane %v264, %v372
      %374 = vrot.lane.b32.xlu0 %v373, 124
      %v375 = vpop.permute.xlu0 %374
      %vm376 = vcmask 31744
      %v378 = vsel %vm376, %v375, 0
      %vm380 = vcmask 1041408
      %v382 = vsel %vm380, %v364, 0
      %v385 = vsel %vm380, %v365, 0
      %387 = vmatprep.subr.bf16.mxu0 0
      %388 = vmatpush1.bf16.msra.mxu0 0
      %389 = vmatprep.subr.bf16.mxu0 0
      %390 = vmatpush1.bf16.msra.mxu0 0
      %391 = vmatprep.subr.bf16.mxu0 0
      %392 = vmatpush1.bf16.msra.mxu0 0
      %393 = vmatprep.subr.bf16.mxu0 0
      %394 = vmatpush1.bf16.msra.mxu0 0
      %395 = vmatprep.subr.bf16.mxu0 0
      %396 = vmatpush1.bf16.msra.mxu0 0
      %397 = vmatprep.subr.bf16.mxu0 0
      %398 = vmatpush1.bf16.msra.mxu0 0
      %399 = vmatprep.subr.bf16.mxu0 0
      %400 = vmatpush1.bf16.msra.mxu0 0
      %401 = vmatprep.subr.bf16.mxu0 %v385
      %402 = vmatpush1.bf16.msra.mxu0 %v382
      %403 = vmatprep.subr.bf16.mxu0 0
      %404 = vmatpush2.bf16.msra.mxu0 0
      %405 = vmatprep.subr.bf16.mxu0 0
      %406 = vmatpush2.bf16.msra.mxu0 0
      %407 = vmatprep.subr.bf16.mxu0 0
      %408 = vmatpush2.bf16.msra.mxu0 0
      %409 = vmatprep.subr.bf16.mxu0 0
      %410 = vmatpush2.bf16.msra.mxu0 0
      %411 = vmatprep.subr.bf16.mxu0 0
      %412 = vmatpush2.bf16.msra.mxu0 0
      %413 = vmatprep.subr.bf16.mxu0 0
      %414 = vmatpush2.bf16.msra.mxu0 0
      %415 = vmatprep.subr.bf16.mxu0 0
      %416 = vmatpush2.bf16.msra.mxu0 0
      %417 = vmatprep.subr.bf16.mxu0 0
      %418 = vmatpush2.bf16.msra.mxu0 0
      %419 = vmatprep.mubr.bf16.mxu0 0
      %420 = vmatmul.mubr.bf16.gmra.mxu0 %v378
      %v421 = vpop.f32.mrf.mxu0
      %v422 = vadd.f32 0.0, %v421
      %v423 = vpop.f32.mrf.mxu0
      %v424 = vadd.f32 0.0, %v423
      %v425 = vpop.f32.mrf.mxu0
      %v426 = vpop.f32.mrf.mxu0
      %427 = vdwg.mxu0
      %v429 = vsel %vm376, %v264, 0
      %v432 = vsel %vm380, %v336, 0
      %v435 = vsel %vm380, %v337, 0
      %437 = vmatprep.subr.bf16.mxu0 0
      %438 = vmatpush1.bf16.msra.mxu0 0
      %439 = vmatprep.subr.bf16.mxu0 0
      %440 = vmatpush1.bf16.msra.mxu0 0
      %441 = vmatprep.subr.bf16.mxu0 0
      %442 = vmatpush1.bf16.msra.mxu0 0
      %443 = vmatprep.subr.bf16.mxu0 0
      %444 = vmatpush1.bf16.msra.mxu0 0
      %445 = vmatprep.subr.bf16.mxu0 0
      %446 = vmatpush1.bf16.msra.mxu0 0
      %447 = vmatprep.subr.bf16.mxu0 0
      %448 = vmatpush1.bf16.msra.mxu0 0
      %449 = vmatprep.subr.bf16.mxu0 0
      %450 = vmatpush1.bf16.msra.mxu0 0
      %451 = vmatprep.subr.bf16.mxu0 %v435
      %452 = vmatpush1.bf16.msra.mxu0 %v432
      %453 = vmatprep.subr.bf16.mxu0 0
      %454 = vmatpush2.bf16.msra.mxu0 0
      %455 = vmatprep.subr.bf16.mxu0 0
      %456 = vmatpush2.bf16.msra.mxu0 0
      %457 = vmatprep.subr.bf16.mxu0 0
      %458 = vmatpush2.bf16.msra.mxu0 0
      %459 = vmatprep.subr.bf16.mxu0 0
      %460 = vmatpush2.bf16.msra.mxu0 0
      %461 = vmatprep.subr.bf16.mxu0 0
      %462 = vmatpush2.bf16.msra.mxu0 0
      %463 = vmatprep.subr.bf16.mxu0 0
      %464 = vmatpush2.bf16.msra.mxu0 0
      %465 = vmatprep.subr.bf16.mxu0 0
      %466 = vmatpush2.bf16.msra.mxu0 0
      %467 = vmatprep.subr.bf16.mxu0 0
      %468 = vmatpush2.bf16.msra.mxu0 0
      %469 = vmatprep.mubr.bf16.mxu0 0
      %470 = vmatmul.mubr.bf16.gmra.mxu0 %v429
      %v471 = vpop.f32.mrf.mxu0
      %v472 = vadd.f32 %v422, %v471
      %v473 = vpop.f32.mrf.mxu0
      %v474 = vadd.f32 %v424, %v473
      %v475 = vpop.f32.mrf.mxu0
      %v476 = vpop.f32.mrf.mxu0
      %477 = vdwg.mxu0
      %478 = vrot.lane.b32.xlu0 %v302, 15
      %v479 = vpop.permute.xlu0 %478
      %480 = vrot.lane.b32.xlu0 %v301, 15
      %v481 = vpop.permute.xlu0 %480
      %vm482 = vcmask 121856
      %v483 = vsel %vm482, %v481, %v479
      %vm485 = vcmask 121856
      %v488 = vsel %vm485, %v479, %v481
      %v490 = vlaneseq
      %v491 = vshrl.u32 %v490, 7
      %v492 = vsub.s32 1, %v491
      %v493 = vrot.slane %v323, %v492
      %v494 = vlaneseq
      %v495 = vshrl.u32 %v494, 7
      %v496 = vsub.s32 1, %v495
      %v497 = vrot.slane %v330, %v496
      %v498 = vmul.bf16 %v488, %v493
      %v499 = vmul.bf16 %v483, %v497
      %500 = vrot.lane.b32.xlu0 %v373, 120
      %v501 = vpop.permute.xlu0 %500
      %v503 = vsel %vm376, %v501, 0
      %v506 = vsel %vm380, %v498, 0
      %v509 = vsel %vm380, %v499, 0
      %511 = vmatprep.subr.bf16.mxu0 0
      %512 = vmatpush1.bf16.msra.mxu0 0
      %513 = vmatprep.subr.bf16.mxu0 0
      %514 = vmatpush1.bf16.msra.mxu0 0
      %515 = vmatprep.subr.bf16.mxu0 0
      %516 = vmatpush1.bf16.msra.mxu0 0
      %517 = vmatprep.subr.bf16.mxu0 0
      %518 = vmatpush1.bf16.msra.mxu0 0
      %519 = vmatprep.subr.bf16.mxu0 0
      %520 = vmatpush1.bf16.msra.mxu0 0
      %521 = vmatprep.subr.bf16.mxu0 0
      %522 = vmatpush1.bf16.msra.mxu0 0
      %523 = vmatprep.subr.bf16.mxu0 0
      %524 = vmatpush1.bf16.msra.mxu0 0
      %525 = vmatprep.subr.bf16.mxu0 %v509
      %526 = vmatpush1.bf16.msra.mxu0 %v506
      %527 = vmatprep.subr.bf16.mxu0 0
      %528 = vmatpush2.bf16.msra.mxu0 0
      %529 = vmatprep.subr.bf16.mxu0 0
      %530 = vmatpush2.bf16.msra.mxu0 0
      %531 = vmatprep.subr.bf16.mxu0 0
      %532 = vmatpush2.bf16.msra.mxu0 0
      %533 = vmatprep.subr.bf16.mxu0 0
      %534 = vmatpush2.bf16.msra.mxu0 0
      %535 = vmatprep.subr.bf16.mxu0 0
      %536 = vmatpush2.bf16.msra.mxu0 0
      %537 = vmatprep.subr.bf16.mxu0 0
      %538 = vmatpush2.bf16.msra.mxu0 0
      %539 = vmatprep.subr.bf16.mxu0 0
      %540 = vmatpush2.bf16.msra.mxu0 0
      %541 = vmatprep.subr.bf16.mxu0 0
      %542 = vmatpush2.bf16.msra.mxu0 0
      %543 = vmatprep.mubr.bf16.mxu0 0
      %544 = vmatmul.mubr.bf16.gmra.mxu0 %v503
      %v545 = vpop.f32.mrf.mxu0
      %v546 = vadd.f32 0.0, %v545
      %v547 = vpop.f32.mrf.mxu0
      %v548 = vadd.f32 0.0, %v547
      %v549 = vpop.f32.mrf.mxu0
      %v550 = vpop.f32.mrf.mxu0
      %551 = vdwg.mxu0
      %v552 = vadd.f32 %v472, %v546
      %v553 = vadd.f32 %v474, %v548
      %554 = vrot.lane.b32.xlu0 %v302, 1
      %v555 = vpop.permute.xlu0 %554
      %556 = vrot.lane.b32.xlu0 %v301, 1
      %v557 = vpop.permute.xlu0 %556
      %vm558 = vcmask 7168
      %v559 = vsel %vm558, %v557, %v555
      %vm561 = vcmask 7168
      %v564 = vsel %vm561, %v555, %v557
      %v566 = vlaneseq
      %v567 = vshrl.u32 %v566, 7
      %v568 = vsub.s32 1, %v567
      %v569 = vrot.slane %v351, %v568
      %v570 = vlaneseq
      %v571 = vshrl.u32 %v570, 7
      %v572 = vsub.s32 1, %v571
      %v573 = vrot.slane %v358, %v572
      %v574 = vmul.bf16 %v564, %v569
      %v575 = vmul.bf16 %v559, %v573
      %576 = vrot.lane.b32.xlu0 %v373, 116
      %v577 = vpop.permute.xlu0 %576
      %v579 = vsel %vm376, %v577, 0
      %v582 = vsel %vm380, %v574, 0
      %v585 = vsel %vm380, %v575, 0
      %587 = vmatprep.subr.bf16.mxu0 0
      %588 = vmatpush1.bf16.msra.mxu0 0
      %589 = vmatprep.subr.bf16.mxu0 0
      %590 = vmatpush1.bf16.msra.mxu0 0
      %591 = vmatprep.subr.bf16.mxu0 0
      %592 = vmatpush1.bf16.msra.mxu0 0
      %593 = vmatprep.subr.bf16.mxu0 0
      %594 = vmatpush1.bf16.msra.mxu0 0
      %595 = vmatprep.subr.bf16.mxu0 0
      %596 = vmatpush1.bf16.msra.mxu0 0
      %597 = vmatprep.subr.bf16.mxu0 0
      %598 = vmatpush1.bf16.msra.mxu0 0
      %599 = vmatprep.subr.bf16.mxu0 0
      %600 = vmatpush1.bf16.msra.mxu0 0
      %601 = vmatprep.subr.bf16.mxu0 %v585
      %602 = vmatpush1.bf16.msra.mxu0 %v582
      %603 = vmatprep.subr.bf16.mxu0 0
      %604 = vmatpush2.bf16.msra.mxu0 0
      %605 = vmatprep.subr.bf16.mxu0 0
      %606 = vmatpush2.bf16.msra.mxu0 0
      %607 = vmatprep.subr.bf16.mxu0 0
      %608 = vmatpush2.bf16.msra.mxu0 0
      %609 = vmatprep.subr.bf16.mxu0 0
      %610 = vmatpush2.bf16.msra.mxu0 0
      %611 = vmatprep.subr.bf16.mxu0 0
      %612 = vmatpush2.bf16.msra.mxu0 0
      %613 = vmatprep.subr.bf16.mxu0 0
      %614 = vmatpush2.bf16.msra.mxu0 0
      %615 = vmatprep.subr.bf16.mxu0 0
      %616 = vmatpush2.bf16.msra.mxu0 0
      %617 = vmatprep.subr.bf16.mxu0 0
      %618 = vmatpush2.bf16.msra.mxu0 0
      %619 = vmatprep.mubr.bf16.mxu0 0
      %620 = vmatmul.mubr.bf16.gmra.mxu0 %v579
      %v621 = vpop.f32.mrf.mxu0
      %v622 = vadd.f32 0.0, %v621
      %v623 = vpop.f32.mrf.mxu0
      %v624 = vadd.f32 0.0, %v623
      %v625 = vpop.f32.mrf.mxu0
      %v626 = vpop.f32.mrf.mxu0
      %627 = vdwg.mxu0
      %v628 = vadd.f32 %v552, %v622
      %v629 = vadd.f32 %v553, %v624
      %v630 = vlaneseq
      %v631 = vshrl.u32 %v630, 7
      %v632 = vsub.s32 2, %v631
      %v633 = vrot.slane %v323, %v632
      %v634 = vlaneseq
      %v635 = vshrl.u32 %v634, 7
      %v636 = vsub.s32 2, %v635
      %v637 = vrot.slane %v330, %v636
      %v638 = vmul.bf16 %v301, %v633
      %v639 = vmul.bf16 %v302, %v637
      %640 = vrot.lane.b32.xlu0 %v373, 112
      %v641 = vpop.permute.xlu0 %640
      %v643 = vsel %vm376, %v641, 0
      %v646 = vsel %vm380, %v638, 0
      %v649 = vsel %vm380, %v639, 0
      %651 = vmatprep.subr.bf16.mxu0 0
      %652 = vmatpush1.bf16.msra.mxu0 0
      %653 = vmatprep.subr.bf16.mxu0 0
      %654 = vmatpush1.bf16.msra.mxu0 0
      %655 = vmatprep.subr.bf16.mxu0 0
      %656 = vmatpush1.bf16.msra.mxu0 0
      %657 = vmatprep.subr.bf16.mxu0 0
      %658 = vmatpush1.bf16.msra.mxu0 0
      %659 = vmatprep.subr.bf16.mxu0 0
      %660 = vmatpush1.bf16.msra.mxu0 0
      %661 = vmatprep.subr.bf16.mxu0 0
      %662 = vmatpush1.bf16.msra.mxu0 0
      %663 = vmatprep.subr.bf16.mxu0 0
      %664 = vmatpush1.bf16.msra.mxu0 0
      %665 = vmatprep.subr.bf16.mxu0 %v649
      %666 = vmatpush1.bf16.msra.mxu0 %v646
      %667 = vmatprep.subr.bf16.mxu0 0
      %668 = vmatpush2.bf16.msra.mxu0 0
      %669 = vmatprep.subr.bf16.mxu0 0
      %670 = vmatpush2.bf16.msra.mxu0 0
      %671 = vmatprep.subr.bf16.mxu0 0
      %672 = vmatpush2.bf16.msra.mxu0 0
      %673 = vmatprep.subr.bf16.mxu0 0
      %674 = vmatpush2.bf16.msra.mxu0 0
      %675 = vmatprep.subr.bf16.mxu0 0
      %676 = vmatpush2.bf16.msra.mxu0 0
      %677 = vmatprep.subr.bf16.mxu0 0
      %678 = vmatpush2.bf16.msra.mxu0 0
      %679 = vmatprep.subr.bf16.mxu0 0
      %680 = vmatpush2.bf16.msra.mxu0 0
      %681 = vmatprep.subr.bf16.mxu0 0
      %682 = vmatpush2.bf16.msra.mxu0 0
      %683 = vmatprep.mubr.bf16.mxu0 0
      %684 = vmatmul.mubr.bf16.gmra.mxu0 %v643
      %v685 = vpop.f32.mrf.mxu0
      %v686 = vadd.f32 0.0, %v685
      %v687 = vpop.f32.mrf.mxu0
      %v688 = vadd.f32 0.0, %v687
      %v689 = vpop.f32.mrf.mxu0
      %v690 = vpop.f32.mrf.mxu0
      %691 = vdwg.mxu0
      %v692 = vadd.f32 %v628, %v686
      %v693 = vadd.f32 %v629, %v688
      %694 = vrot.lane.b32.xlu0 %v301, 127
      %v695 = vpop.permute.xlu0 %694
      %696 = vrot.lane.b32.xlu0 %v302, 127
      %v697 = vpop.permute.xlu0 %696
      %vm698 = vcmask 1039360
      %v699 = vsel %vm698, %v695, %v697
      %vm701 = vcmask 1039360
      %v704 = vsel %vm701, %v697, %v695
      %v706 = vlaneseq
      %v707 = vshrl.u32 %v706, 7
      %v708 = vsub.s32 2, %v707
      %v709 = vrot.slane %v351, %v708
      %v710 = vlaneseq
      %v711 = vshrl.u32 %v710, 7
      %v712 = vsub.s32 2, %v711
      %v713 = vrot.slane %v358, %v712
      %v714 = vmul.bf16 %v699, %v709
      %v715 = vmul.bf16 %v704, %v713
      %716 = vrot.lane.b32.xlu0 %v373, 108
      %v717 = vpop.permute.xlu0 %716
      %v719 = vsel %vm376, %v717, 0
      %v722 = vsel %vm380, %v714, 0
      %v725 = vsel %vm380, %v715, 0
      %727 = vmatprep.subr.bf16.mxu0 0
      %728 = vmatpush1.bf16.msra.mxu0 0
      %729 = vmatprep.subr.bf16.mxu0 0
      %730 = vmatpush1.bf16.msra.mxu0 0
      %731 = vmatprep.subr.bf16.mxu0 0
      %732 = vmatpush1.bf16.msra.mxu0 0
      %733 = vmatprep.subr.bf16.mxu0 0
      %734 = vmatpush1.bf16.msra.mxu0 0
      %735 = vmatprep.subr.bf16.mxu0 0
      %736 = vmatpush1.bf16.msra.mxu0 0
      %737 = vmatprep.subr.bf16.mxu0 0
      %738 = vmatpush1.bf16.msra.mxu0 0
      %739 = vmatprep.subr.bf16.mxu0 0
      %740 = vmatpush1.bf16.msra.mxu0 0
      %741 = vmatprep.subr.bf16.mxu0 %v725
      %742 = vmatpush1.bf16.msra.mxu0 %v722
      %743 = vmatprep.subr.bf16.mxu0 0
      %744 = vmatpush2.bf16.msra.mxu0 0
      %745 = vmatprep.subr.bf16.mxu0 0
      %746 = vmatpush2.bf16.msra.mxu0 0
      %747 = vmatprep.subr.bf16.mxu0 0
      %748 = vmatpush2.bf16.msra.mxu0 0
      %749 = vmatprep.subr.bf16.mxu0 0
      %750 = vmatpush2.bf16.msra.mxu0 0
      %751 = vmatprep.subr.bf16.mxu0 0
      %752 = vmatpush2.bf16.msra.mxu0 0
      %753 = vmatprep.subr.bf16.mxu0 0
      %754 = vmatpush2.bf16.msra.mxu0 0
      %755 = vmatprep.subr.bf16.mxu0 0
      %756 = vmatpush2.bf16.msra.mxu0 0
      %757 = vmatprep.subr.bf16.mxu0 0
      %758 = vmatpush2.bf16.msra.mxu0 0
      %759 = vmatprep.mubr.bf16.mxu0 0
      %760 = vmatmul.mubr.bf16.gmra.mxu0 %v719
      %v761 = vpop.f32.mrf.mxu0
      %v762 = vadd.f32 0.0, %v761
      %v763 = vpop.f32.mrf.mxu0
      %v764 = vadd.f32 0.0, %v763
      %v765 = vpop.f32.mrf.mxu0
      %v766 = vpop.f32.mrf.mxu0
      %767 = vdwg.mxu0
      %v768 = vadd.f32 %v692, %v762
      %v769 = vadd.f32 %v693, %v764
      %770 = vrot.lane.b32.xlu0 %v301, 113
      %v771 = vpop.permute.xlu0 %770
      %772 = vrot.lane.b32.xlu0 %v302, 113
      %v773 = vpop.permute.xlu0 %772
      %vm774 = vcmask 924672
      %v775 = vsel %vm774, %v771, %v773
      %vm777 = vcmask 924672
      %v780 = vsel %vm777, %v773, %v771
      %v782 = vlaneseq
      %v783 = vshrl.u32 %v782, 7
      %v784 = vsub.s32 3, %v783
      %v785 = vrot.slane %v323, %v784
      %v786 = vlaneseq
      %v787 = vshrl.u32 %v786, 7
      %v788 = vsub.s32 3, %v787
      %v789 = vrot.slane %v330, %v788
      %v790 = vmul.bf16 %v775, %v785
      %v791 = vmul.bf16 %v780, %v789
      %792 = vrot.lane.b32.xlu0 %v373, 104
      %v793 = vpop.permute.xlu0 %792
      %v795 = vsel %vm376, %v793, 0
      %v798 = vsel %vm380, %v790, 0
      %v801 = vsel %vm380, %v791, 0
      %803 = vmatprep.subr.bf16.mxu0 0
      %804 = vmatpush1.bf16.msra.mxu0 0
      %805 = vmatprep.subr.bf16.mxu0 0
      %806 = vmatpush1.bf16.msra.mxu0 0
      %807 = vmatprep.subr.bf16.mxu0 0
      %808 = vmatpush1.bf16.msra.mxu0 0
      %809 = vmatprep.subr.bf16.mxu0 0
      %810 = vmatpush1.bf16.msra.mxu0 0
      %811 = vmatprep.subr.bf16.mxu0 0
      %812 = vmatpush1.bf16.msra.mxu0 0
      %813 = vmatprep.subr.bf16.mxu0 0
      %814 = vmatpush1.bf16.msra.mxu0 0
      %815 = vmatprep.subr.bf16.mxu0 0
      %816 = vmatpush1.bf16.msra.mxu0 0
      %817 = vmatprep.subr.bf16.mxu0 %v801
      %818 = vmatpush1.bf16.msra.mxu0 %v798
      %819 = vmatprep.subr.bf16.mxu0 0
      %820 = vmatpush2.bf16.msra.mxu0 0
      %821 = vmatprep.subr.bf16.mxu0 0
      %822 = vmatpush2.bf16.msra.mxu0 0
      %823 = vmatprep.subr.bf16.mxu0 0
      %824 = vmatpush2.bf16.msra.mxu0 0
      %825 = vmatprep.subr.bf16.mxu0 0
      %826 = vmatpush2.bf16.msra.mxu0 0
      %827 = vmatprep.subr.bf16.mxu0 0
      %828 = vmatpush2.bf16.msra.mxu0 0
      %829 = vmatprep.subr.bf16.mxu0 0
      %830 = vmatpush2.bf16.msra.mxu0 0
      %831 = vmatprep.subr.bf16.mxu0 0
      %832 = vmatpush2.bf16.msra.mxu0 0
      %833 = vmatprep.subr.bf16.mxu0 0
      %834 = vmatpush2.bf16.msra.mxu0 0
      %835 = vmatprep.mubr.bf16.mxu0 0
      %836 = vmatmul.mubr.bf16.gmra.mxu0 %v795
      %v837 = vpop.f32.mrf.mxu0
      %v838 = vadd.f32 0.0, %v837
      %v839 = vpop.f32.mrf.mxu0
      %v840 = vadd.f32 0.0, %v839
      %v841 = vpop.f32.mrf.mxu0
      %v842 = vpop.f32.mrf.mxu0
      %843 = vdwg.mxu0
      %v844 = vadd.f32 %v768, %v838
      %v845 = vadd.f32 %v769, %v840
      %846 = vrot.lane.b32.xlu0 %v301, 112
      %v847 = vpop.permute.xlu0 %846
      %848 = vrot.lane.b32.xlu0 %v302, 112
      %v849 = vpop.permute.xlu0 %848
      %vm850 = vcmask 916480
      %v851 = vsel %vm850, %v847, %v849
      %vm853 = vcmask 916480
      %v856 = vsel %vm853, %v849, %v847
      %v858 = vlaneseq
      %v859 = vshrl.u32 %v858, 7
      %v860 = vsub.s32 3, %v859
      %v861 = vrot.slane %v351, %v860
      %v862 = vlaneseq
      %v863 = vshrl.u32 %v862, 7
      %v864 = vsub.s32 3, %v863
      %v865 = vrot.slane %v358, %v864
      %v866 = vmul.bf16 %v851, %v861
      %v867 = vmul.bf16 %v856, %v865
      %868 = vrot.lane.b32.xlu0 %v373, 100
      %v869 = vpop.permute.xlu0 %868
      %v871 = vsel %vm376, %v869, 0
      %v874 = vsel %vm380, %v866, 0
      %v877 = vsel %vm380, %v867, 0
      %879 = vmatprep.subr.bf16.mxu0 0
      %880 = vmatpush1.bf16.msra.mxu0 0
      %881 = vmatprep.subr.bf16.mxu0 0
      %882 = vmatpush1.bf16.msra.mxu0 0
      %883 = vmatprep.subr.bf16.mxu0 0
      %884 = vmatpush1.bf16.msra.mxu0 0
      %885 = vmatprep.subr.bf16.mxu0 0
      %886 = vmatpush1.bf16.msra.mxu0 0
      %887 = vmatprep.subr.bf16.mxu0 0
      %888 = vmatpush1.bf16.msra.mxu0 0
      %889 = vmatprep.subr.bf16.mxu0 0
      %890 = vmatpush1.bf16.msra.mxu0 0
      %891 = vmatprep.subr.bf16.mxu0 0
      %892 = vmatpush1.bf16.msra.mxu0 0
      %893 = vmatprep.subr.bf16.mxu0 %v877
      %894 = vmatpush1.bf16.msra.mxu0 %v874
      %895 = vmatprep.subr.bf16.mxu0 0
      %896 = vmatpush2.bf16.msra.mxu0 0
      %897 = vmatprep.subr.bf16.mxu0 0
      %898 = vmatpush2.bf16.msra.mxu0 0
      %899 = vmatprep.subr.bf16.mxu0 0
      %900 = vmatpush2.bf16.msra.mxu0 0
      %901 = vmatprep.subr.bf16.mxu0 0
      %902 = vmatpush2.bf16.msra.mxu0 0
      %903 = vmatprep.subr.bf16.mxu0 0
      %904 = vmatpush2.bf16.msra.mxu0 0
      %905 = vmatprep.subr.bf16.mxu0 0
      %906 = vmatpush2.bf16.msra.mxu0 0
      %907 = vmatprep.subr.bf16.mxu0 0
      %908 = vmatpush2.bf16.msra.mxu0 0
      %909 = vmatprep.subr.bf16.mxu0 0
      %910 = vmatpush2.bf16.msra.mxu0 0
      %911 = vmatprep.mubr.bf16.mxu0 0
      %912 = vmatmul.mubr.bf16.gmra.mxu0 %v871
      %v913 = vpop.f32.mrf.mxu0
      %v914 = vadd.f32 0.0, %v913
      %v915 = vpop.f32.mrf.mxu0
      %v916 = vadd.f32 0.0, %v915
      %v917 = vpop.f32.mrf.mxu0
      %v918 = vpop.f32.mrf.mxu0
      %919 = vdwg.mxu0
      %v920 = vadd.f32 %v844, %v914
      %v921 = vadd.f32 %v845, %v916
      %922 = vrot.lane.b32.xlu0 %v301, 111
      %v923 = vpop.permute.xlu0 %922
      %924 = vrot.lane.b32.xlu0 %v302, 111
      %v925 = vpop.permute.xlu0 %924
      %vm926 = vcmask 908288
      %v927 = vsel %vm926, %v923, %v925
      %vm929 = vcmask 908288
      %v932 = vsel %vm929, %v925, %v923
      %v935 = vunpack.c.l.b16 %v266
      %v936 = vunpack.c.h.b16 %v266
      %v937 = vpack.c.b16 %v935, %v935
      %v938 = vpack.c.b16 %v936, %v936
      %v940 = vpack.i.b16 %v937, %v937
      %v942 = vlaneseq
      %v943 = vshrl.u32 %v942, 7
      %v944 = vsub.s32 0, %v943
      %v945 = vrot.slane %v940, %v944
      %v947 = vpack.i.b16 %v938, %v938
      %v949 = vlaneseq
      %v950 = vshrl.u32 %v949, 7
      %v951 = vsub.s32 0, %v950
      %v952 = vrot.slane %v947, %v951
      %v953 = vmul.bf16 %v927, %v945
      %v954 = vmul.bf16 %v932, %v952
      %955 = vrot.lane.b32.xlu0 %v373, 96
      %v956 = vpop.permute.xlu0 %955
      %v958 = vsel %vm376, %v956, 0
      %v961 = vsel %vm380, %v953, 0
      %v964 = vsel %vm380, %v954, 0
      %966 = vmatprep.subr.bf16.mxu0 0
      %967 = vmatpush1.bf16.msra.mxu0 0
      %968 = vmatprep.subr.bf16.mxu0 0
      %969 = vmatpush1.bf16.msra.mxu0 0
      %970 = vmatprep.subr.bf16.mxu0 0
      %971 = vmatpush1.bf16.msra.mxu0 0
      %972 = vmatprep.subr.bf16.mxu0 0
      %973 = vmatpush1.bf16.msra.mxu0 0
      %974 = vmatprep.subr.bf16.mxu0 0
      %975 = vmatpush1.bf16.msra.mxu0 0
      %976 = vmatprep.subr.bf16.mxu0 0
      %977 = vmatpush1.bf16.msra.mxu0 0
      %978 = vmatprep.subr.bf16.mxu0 0
      %979 = vmatpush1.bf16.msra.mxu0 0
      %980 = vmatprep.subr.bf16.mxu0 %v964
      %981 = vmatpush1.bf16.msra.mxu0 %v961
      %982 = vmatprep.subr.bf16.mxu0 0
      %983 = vmatpush2.bf16.msra.mxu0 0
      %984 = vmatprep.subr.bf16.mxu0 0
      %985 = vmatpush2.bf16.msra.mxu0 0
      %986 = vmatprep.subr.bf16.mxu0 0
      %987 = vmatpush2.bf16.msra.mxu0 0
      %988 = vmatprep.subr.bf16.mxu0 0
      %989 = vmatpush2.bf16.msra.mxu0 0
      %990 = vmatprep.subr.bf16.mxu0 0
      %991 = vmatpush2.bf16.msra.mxu0 0
      %992 = vmatprep.subr.bf16.mxu0 0
      %993 = vmatpush2.bf16.msra.mxu0 0
      %994 = vmatprep.subr.bf16.mxu0 0
      %995 = vmatpush2.bf16.msra.mxu0 0
      %996 = vmatprep.subr.bf16.mxu0 0
      %997 = vmatpush2.bf16.msra.mxu0 0
      %998 = vmatprep.mubr.bf16.mxu0 0
      %999 = vmatmul.mubr.bf16.gmra.mxu0 %v958
      %v1000 = vpop.f32.mrf.mxu0
      %v1001 = vadd.f32 0.0, %v1000
      %v1002 = vpop.f32.mrf.mxu0
      %v1003 = vadd.f32 0.0, %v1002
      %v1004 = vpop.f32.mrf.mxu0
      %v1005 = vpop.f32.mrf.mxu0
      %1006 = vdwg.mxu0
      %v1007 = vadd.f32 %v920, %v1001
      %v1008 = vadd.f32 %v921, %v1003
      %v1009 = vpack.c.bf16 %v1007, %v1007
      %v1010 = vpack.c.bf16 %v1008, %v1008
      %v1013 = vcombine.low %v1009, %v1010
      %v1015 = vunpack.c.l.s4 1983009808
      %v1016 = vunpack.c.0.s8 %v1015
      %v1017 = vlaneseq
      %v1018 = vshrl.u32 %v1017, 7
      %v1019 = vsub.s32 %v1016, %v1018
      %v1020 = vrot.slane %v1013, %v1019
      %1022 = vst [vmem:[%s258] sm:$0xf] %v1020
      %vm1023 = vcmask 1043456
      %v1024 = vsel %vm1023, %v1007, 0.0
      %v1025 = vsel %vm1023, %v1008, 0.0
      %v1026 = vadd.f32 %v1024, %v1025
      %1027 = vadd.xlane.f32.xlu0 %v1026
      %v1028 = vpop.xlane.xlu0 %1027
      %v1029 = vmul.f32 %v1007, %v1007
      %v1030 = vmul.f32 %v1008, %v1008
      %v1031 = vsel %vm1023, %v1029, 0.0
      %v1032 = vsel %vm1023, %v1030, 0.0
      %v1033 = vadd.f32 %v1031, %v1032
      %1034 = vadd.xlane.f32.xlu0 %v1033
      %v1035 = vpop.xlane.xlu0 %1034
      %v1036 = vsel %vm561, %v1028, %v1035
      %vm1037 = vcmask 11264
      %1038 = vst.msk [vmem:[%s262] sm:$0xf] %vm1037, %v1036
      %p1039 = scmp.lt.s32.totalorder %s18, 1
      %s1040 = scalar_select %p1039, %s18, 1
      %s1041 = smul.addr %s1040, 2
      %s1042 = smul.addr %s1041, 2
      %s1043 = scalar_lea.vmem %s5, %s1042
      %p1044 = scmp.lt.s32.totalorder %s18, 1
      %s1045 = scalar_select %p1044, %s18, 1
      %s1046 = smul.addr %s1045, 4
      %s1047 = scalar_lea.vmem %s6, %s1046
      // Predicated region
      $region41: #{up_forward.6} parent=39 // pred_check
        %p1048 = pneg %p146
      $region42: #{up_forward.6} parent=39 // pred_check_branch
        %1050 = sbr.rel (%p1048) target = $region44
      $region43: #{up_forward.6} parent=39 // pred_region
        _
      $region44: #{up_forward.6} parent=39 // pred_fallthru
        _
      // Predicated region
      $region45: #{up_forward.6} parent=39 // pred_check
        %p1051 = pneg %p172
      $region46: #{up_forward.6} parent=39 // pred_check_branch
        %1053 = sbr.rel (%p1051) target = $region48
      $region47: #{up_forward.6} parent=39 // pred_region
        _
      $region48: #{up_forward.6} parent=39 // pred_fallthru
        _
    $region40: #{up_forward.6} parent=5 // pred_fallthru
      _
    %p1054 = scmp.le.s32.totalorder 2, %s13
    // Predicated region
    $region49: #{up_forward.6} parent=5 // pred_check
      %p1055 = pneg %p1054
    $region50: #{up_forward.6} parent=5 // pred_check_branch
      %1057 = sbr.rel (%p1055) target = $region52
    $region51: #{up_forward.6} parent=5 // pred_region
      %s1058 = ssub.s32 %s13, 2
      // Predicated region
      $region53: #{up_forward.6} parent=51 // pred_check
        %p1059 = pneg %p152
      $region54: #{up_forward.6} parent=51 // pred_check_branch
        %1061 = sbr.rel (%p1059) target = $region56
      $region55: #{up_forward.6} parent=51 // pred_region
        %p1062 = scmp.lt.s32.totalorder %s19, 1
        %s1063 = scalar_select %p1062, %s19, 1
        %s1064 = smul.addr %s1063, 2
        %s1065 = smul.addr %s1064, 2
        %s1066 = scalar_lea.vmem %s5, %s1065
      $region56: #{up_forward.6} parent=51 // pred_fallthru
        _
      // Predicated region
      $region57: #{up_forward.6} parent=51 // pred_check
        %p1067 = pneg %p178
      $region58: #{up_forward.6} parent=51 // pred_check_branch
        %1069 = sbr.rel (%p1067) target = $region60
      $region59: #{up_forward.6} parent=51 // pred_region
        %p1070 = scmp.lt.s32.totalorder %s19, 1
        %s1071 = scalar_select %p1070, %s19, 1
        %s1072 = smul.addr %s1071, 4
        %s1073 = scalar_lea.vmem %s6, %s1072
      $region60: #{up_forward.6} parent=51 // pred_fallthru
        _
    $region52: #{up_forward.6} parent=5 // pred_fallthru
      _
  $region6: #{up_forward.6} parent=0 // loop_footer
    %s17 = sadd.s32 1, %s13
  $region7: #{up_forward.6} parent=0 // loop_footer_branch
    %12 = sbr.rel target = $region3
  $region8: #{up_forward.6} parent=0 // loop_exit
    _

// kernel: up_forward.5
$region0: #{up_forward.5}
  #allocation0 [shape = 'u32[]', space=smem, size = 0x4, offset = 0x4, fixed_abs, tag = 'smem constant byte address 0x4 - core index']
  #allocation1 [shape = 'u32[144,128]{1,0:T(1,128)}', space=vmem, size = 0x12000, scoped, tag = 'internal scratch']
  %s0 = inlined_call_operand.vmem [shape: f32[2,4,256], index: 0, kind: input, shape index: {}]
  %s1 = inlined_call_operand.vmem [shape: bf16[2,4,256], index: 1, kind: input, shape index: {}]
  %s2 = inlined_call_operand.vmem [shape: bf16[4,72], index: 2, kind: input, shape index: {}]
  %s3 = inlined_call_operand.vmem [shape: bf16[9,256], index: 3, kind: input, shape index: {}]
  %s4 = inlined_call_operand.vmem [shape: bf16[2,4,256], index: 4, kind: output, shape index: {0}]
  %s5 = inlined_call_operand.vmem [shape: f32[2,4,2], index: 5, kind: output, shape index: {1}]
  %6 = xla_tuple %s4, %s5
  %s7 = sld [smem:[#allocation0]]
  $region57: #{up_forward.5} parent=0
    _
  %s9 = ssub.s32 1, %s7
  %s10 = scalar_select 0, %s9, %s7
  loop: start=0, step=1, limit=4
  $region2: #{up_forward.5} parent=0 // loop_pre_header
    _
  $region3: #{up_forward.5} parent=0 // loop_header
    %s12 = sphi 0, %s16
    %p13 = scmp.ge.s32.totalorder %s12, 4
    %s22 = sphi 0, %s24
    %s25 = sphi 0, %s22
    %s26 = sphi 0, %s25
    %s42 = sphi 0, %s26
    %s48 = sphi 0, %s50
    %s51 = sphi 0, %s48
    %s52 = sphi 0, %s51
    %s68 = sphi 0, %s52
    %s72 = sphi 0, %s72
    %s74 = sphi 0, %s72
    %s75 = sphi 0, %s74
    %s89 = sphi 0, %s75
    %s93 = sphi 0, %s93
    %s95 = sphi 0, %s93
    %s96 = sphi 0, %s95
    %s110 = sphi 0, %s96
    %s116 = sphi 0, %s118
    %s119 = sphi 0, %s116
    %s120 = sphi 0, %s119
    %s136 = sphi 0, %s120
    %s142 = sphi 0, %s144
    %s145 = sphi 0, %s142
    %s146 = sphi 0, %s145
    %s162 = sphi 0, %s146
  $region4: #{up_forward.5} parent=0 // loop_header_branch
    %15 = sbr.rel (%p13) target = $region8
  $region5: #{up_forward.5} parent=0 // loop_body
    %s17 = ssub.s32 %s12, 1
    %s18 = ssub.s32 %s12, 2
    %s19 = sadd.s32 %s12, 1
    %s20 = ssub.s32 %s12, %s19
    %p21 = scmp.eq.s32.totalorder %s20, 0
    %s23 = sadd.s32 %s22, 1
    %s24 = scalar_select %p21, %s22, %s23
    %p27 = pneg %p21
    %p28 = scmp.eq.s32.totalorder %s12, 1
    %p29 = por %p27, %p28
    %p30 = scmp.ne.s32.totalorder %s22, %s25
    %p31 = scmp.eq.s32.totalorder %s12, 0
    %p32 = por %p30, %p31
    %p33 = scmp.ne.s32.totalorder %s22, %s25
    %p34 = scmp.eq.s32.totalorder %s17, 1
    %p35 = por %p33, %p34
    %p36 = scmp.ne.s32.totalorder %s25, %s26
    %p37 = scmp.eq.s32.totalorder %s17, 0
    %p38 = por %p36, %p37
    %p39 = scmp.ne.s32.totalorder %s25, %s26
    %p40 = scmp.eq.s32.totalorder %s18, 1
    %p41 = por %p39, %p40
    %p43 = scmp.ne.s32.totalorder %s26, %s42
    %p44 = scmp.eq.s32.totalorder %s18, 0
    %p45 = por %p43, %p44
    %s46 = ssub.s32 %s12, %s19
    %p47 = scmp.eq.s32.totalorder %s46, 0
    %s49 = sadd.s32 %s48, 1
    %s50 = scalar_select %p47, %s48, %s49
    %p53 = pneg %p47
    %p54 = scmp.eq.s32.totalorder %s12, 1
    %p55 = por %p53, %p54
    %p56 = scmp.ne.s32.totalorder %s48, %s51
    %p57 = scmp.eq.s32.totalorder %s12, 0
    %p58 = por %p56, %p57
    %p59 = scmp.ne.s32.totalorder %s48, %s51
    %p60 = scmp.eq.s32.totalorder %s17, 1
    %p61 = por %p59, %p60
    %p62 = scmp.ne.s32.totalorder %s51, %s52
    %p63 = scmp.eq.s32.totalorder %s17, 0
    %p64 = por %p62, %p63
    %p65 = scmp.ne.s32.totalorder %s51, %s52
    %p66 = scmp.eq.s32.totalorder %s18, 1
    %p67 = por %p65, %p66
    %p69 = scmp.ne.s32.totalorder %s52, %s68
    %p70 = scmp.eq.s32.totalorder %s18, 0
    %p71 = por %p69, %p70
    %s73 = sadd.s32 %s72, 1
    %p76 = scmp.eq.s32.totalorder %s12, 1
    %p77 = scmp.ne.s32.totalorder %s72, %s74
    %p78 = scmp.eq.s32.totalorder %s12, 0
    %p79 = por %p77, %p78
    %p80 = scmp.ne.s32.totalorder %s72, %s74
    %p81 = scmp.eq.s32.totalorder %s17, 1
    %p82 = por %p80, %p81
    %p83 = scmp.ne.s32.totalorder %s74, %s75
    %p84 = scmp.eq.s32.totalorder %s17, 0
    %p85 = por %p83, %p84
    %p86 = scmp.ne.s32.totalorder %s74, %s75
    %p87 = scmp.eq.s32.totalorder %s18, 1
    %p88 = por %p86, %p87
    %p90 = scmp.ne.s32.totalorder %s75, %s89
    %p91 = scmp.eq.s32.totalorder %s18, 0
    %p92 = por %p90, %p91
    %s94 = sadd.s32 %s93, 1
    %p97 = scmp.eq.s32.totalorder %s12, 1
    %p98 = scmp.ne.s32.totalorder %s93, %s95
    %p99 = scmp.eq.s32.totalorder %s12, 0
    %p100 = por %p98, %p99
    %p101 = scmp.ne.s32.totalorder %s93, %s95
    %p102 = scmp.eq.s32.totalorder %s17, 1
    %p103 = por %p101, %p102
    %p104 = scmp.ne.s32.totalorder %s95, %s96
    %p105 = scmp.eq.s32.totalorder %s17, 0
    %p106 = por %p104, %p105
    %p107 = scmp.ne.s32.totalorder %s95, %s96
    %p108 = scmp.eq.s32.totalorder %s18, 1
    %p109 = por %p107, %p108
    %p111 = scmp.ne.s32.totalorder %s96, %s110
    %p112 = scmp.eq.s32.totalorder %s18, 0
    %p113 = por %p111, %p112
    %s114 = ssub.s32 %s12, %s19
    %p115 = scmp.eq.s32.totalorder %s114, 0
    %s117 = sadd.s32 %s116, 1
    %s118 = scalar_select %p115, %s116, %s117
    %p121 = pneg %p115
    %p122 = scmp.eq.s32.totalorder %s12, 1
    %p123 = por %p121, %p122
    %p124 = scmp.ne.s32.totalorder %s116, %s119
    %p125 = scmp.eq.s32.totalorder %s12, 0
    %p126 = por %p124, %p125
    %p127 = scmp.ne.s32.totalorder %s116, %s119
    %p128 = scmp.eq.s32.totalorder %s17, 1
    %p129 = por %p127, %p128
    %p130 = scmp.ne.s32.totalorder %s119, %s120
    %p131 = scmp.eq.s32.totalorder %s17, 0
    %p132 = por %p130, %p131
    %p133 = scmp.ne.s32.totalorder %s119, %s120
    %p134 = scmp.eq.s32.totalorder %s18, 1
    %p135 = por %p133, %p134
    %p137 = scmp.ne.s32.totalorder %s120, %s136
    %p138 = scmp.eq.s32.totalorder %s18, 0
    %p139 = por %p137, %p138
    %s140 = ssub.s32 %s12, %s19
    %p141 = scmp.eq.s32.totalorder %s140, 0
    %s143 = sadd.s32 %s142, 1
    %s144 = scalar_select %p141, %s142, %s143
    %p147 = pneg %p141
    %p148 = scmp.eq.s32.totalorder %s12, 1
    %p149 = por %p147, %p148
    %p150 = scmp.ne.s32.totalorder %s142, %s145
    %p151 = scmp.eq.s32.totalorder %s12, 0
    %p152 = por %p150, %p151
    %p153 = scmp.ne.s32.totalorder %s142, %s145
    %p154 = scmp.eq.s32.totalorder %s17, 1
    %p155 = por %p153, %p154
    %p156 = scmp.ne.s32.totalorder %s145, %s146
    %p157 = scmp.eq.s32.totalorder %s17, 0
    %p158 = por %p156, %p157
    %p159 = scmp.ne.s32.totalorder %s145, %s146
    %p160 = scmp.eq.s32.totalorder %s18, 1
    %p161 = por %p159, %p160
    %p163 = scmp.ne.s32.totalorder %s146, %s162
    %p164 = scmp.eq.s32.totalorder %s18, 0
    %p165 = por %p163, %p164
    %p166 = scmp.le.s32.totalorder 1, %s12
    %p167 = scmp.lt.s32.totalorder %s12, 3
    %p168 = pnand %p166, %p167
    %p169 = pneg %p168
    // Predicated region
    $region9: #{up_forward.5} parent=5 // pred_check
      _
    $region10: #{up_forward.5} parent=5 // pred_check_branch
      %171 = sbr.rel (%p168) target = $region12
    $region11: #{up_forward.5} parent=5 // pred_region
      %s172 = ssub.s32 %s12, 1
      // Predicated region
      $region13: #{up_forward.5} parent=11 // pred_check
        %p173 = pneg %p85
      $region14: #{up_forward.5} parent=11 // pred_check_branch
        %175 = sbr.rel (%p173) target = $region16
      $region15: #{up_forward.5} parent=11 // pred_region
        _
      $region16: #{up_forward.5} parent=11 // pred_fallthru
        _
      // Predicated region
      $region17: #{up_forward.5} parent=11 // pred_check
        %p176 = pneg %p106
      $region18: #{up_forward.5} parent=11 // pred_check_branch
        %178 = sbr.rel (%p176) target = $region20
      $region19: #{up_forward.5} parent=11 // pred_region
        _
      $region20: #{up_forward.5} parent=11 // pred_fallthru
        _
    $region12: #{up_forward.5} parent=5 // pred_fallthru
      _
    %p179 = scmp.lt.s32.totalorder %s12, 2
    // Predicated region
    $region21: #{up_forward.5} parent=5 // pred_check
      %p180 = pneg %p179
    $region22: #{up_forward.5} parent=5 // pred_check_branch
      %182 = sbr.rel (%p180) target = $region24
    $region23: #{up_forward.5} parent=5 // pred_region
      // Predicated region
      $region25: #{up_forward.5} parent=23 // pred_check
        %p183 = pneg %p32
      $region26: #{up_forward.5} parent=23 // pred_check_branch
        %185 = sbr.rel (%p183) target = $region28
      $region27: #{up_forward.5} parent=23 // pred_region
        %p186 = scmp.lt.s32.totalorder %s12, 1
        %s187 = scalar_select %p186, %s12, 1
        %s188 = smul.addr %s187, 2
        %s189 = smul.addr %s188, 4
        %s190 = scalar_lea.vmem %s0, %s189
      $region28: #{up_forward.5} parent=23 // pred_fallthru
        _
      // Predicated region
      $region29: #{up_forward.5} parent=23 // pred_check
        %p191 = pneg %p58
      $region30: #{up_forward.5} parent=23 // pred_check_branch
        %193 = sbr.rel (%p191) target = $region32
      $region31: #{up_forward.5} parent=23 // pred_region
        %p194 = scmp.lt.s32.totalorder %s12, 1
        %s195 = scalar_select %p194, %s12, 1
        %s196 = smul.addr %s195, 2
        %s197 = smul.addr %s196, 2
        %s198 = scalar_lea.vmem %s1, %s197
      $region32: #{up_forward.5} parent=23 // pred_fallthru
        _
    $region24: #{up_forward.5} parent=5 // pred_fallthru
      _
    %p199 = scmp.le.s32.totalorder 1, %s12
    %p200 = scmp.lt.s32.totalorder %s12, 3
    %p201 = pnand %p199, %p200
    %p202 = pneg %p201
    // Predicated region
    $region33: #{up_forward.5} parent=5 // pred_check
      _
    $region34: #{up_forward.5} parent=5 // pred_check_branch
      %204 = sbr.rel (%p201) target = $region36
    $region35: #{up_forward.5} parent=5 // pred_region
      %s205 = ssub.s32 %s12, 1
      %p206 = scmp.lt.s32.totalorder %s17, 1
      %s207 = scalar_select %p206, %s17, 1
      %s208 = smul.addr %s207, 2
      %s209 = smul.addr %s208, 4
      %s210 = scalar_lea.vmem %s0, %s209
      %p211 = pneg %p38
      %p212 = pneg %p35
      %p213 = scmp.lt.s32.totalorder %s17, 1
      %s214 = scalar_select %p213, %s17, 1
      %s215 = smul.addr %s214, 2
      %s216 = smul.addr %s215, 2
      %s217 = scalar_lea.vmem %s1, %s216
      %p218 = pneg %p64
      %p219 = pneg %p61
      %p220 = pneg %p85
      %p221 = pneg %p82
      %p222 = pneg %p106
      %p223 = pneg %p103
      %p224 = pneg %p132
      %p225 = pneg %p129
      %p226 = scmp.lt.s32.totalorder %s17, 1
      %s227 = scalar_select %p226, %s17, 1
      %s228 = smul.addr %s227, 2
      %s229 = smul.addr %s228, 2
      %s230 = scalar_lea.vmem %s4, %s229
      %p231 = pneg %p158
      %p232 = pneg %p155
      %p233 = scmp.lt.s32.totalorder %s17, 1
      %s234 = scalar_select %p233, %s17, 1
      %s235 = smul.addr %s234, 4
      %s236 = scalar_lea.vmem %s5, %s235
      %p237 = scmp.lt.s32.totalorder %s17, 1
      %s238 = scalar_select %p237, %s17, 1
      %s239 = smul.addr %s238, 2
      %s240 = smul.addr %s239, 4
      %s241 = scalar_lea.vmem %s0, %s240
      %p242 = scmp.lt.s32.totalorder %s17, 1
      %s243 = scalar_select %p242, %s17, 1
      %s244 = smul.addr %s243, 2
      %s245 = smul.addr %s244, 2
      %s246 = scalar_lea.vmem %s1, %s245
      %p247 = scmp.lt.s32.totalorder %s17, 1
      %s248 = scalar_select %p247, %s17, 1
      %s249 = smul.addr %s248, 2
      %s250 = smul.addr %s249, 2
      %s251 = scalar_lea.vmem %s4, %s250
      %p252 = scmp.lt.s32.totalorder %s17, 1
      %s253 = scalar_select %p252, %s17, 1
      %s254 = smul.addr %s253, 4
      %s255 = scalar_lea.vmem %s5, %s254
      %v257 = vld [vmem:[%s2] sm:$0x3]
      %v258 = vld [vmem:[%s3] sm:$0xff]
      %v259 = vld [vmem:[%s3 + $0x8] sm:$0x11]
      %v260 = vld [vmem:[%s241] sm:$0xff]
      %v262 = vcombine.high %v260, %v260
      %v264 = vpack.c.bf16 %v260, %v260
      %v265 = vpack.c.bf16 %v262, %v262
      %267 = vrot.lane.b32.xlu0 %v265, 17
      %v268 = vpop.permute.xlu0 %267
      %270 = vrot.lane.b32.xlu0 %v264, 17
      %v271 = vpop.permute.xlu0 %270
      %vm272 = vcmask 138240
      %v273 = vsel %vm272, %v271, %v268
      %vm275 = vcmask 138240
      %v278 = vsel %vm275, %v268, %v271
      %v281 = vunpack.c.l.b16 %v258
      %v282 = vunpack.c.h.b16 %v258
      %v283 = vpack.c.b16 %v281, %v281
      %v284 = vpack.c.b16 %v282, %v282
      %v286 = vpack.i.b16 %v283, %v283
      %v288 = vlaneseq
      %v289 = vshrl.u32 %v288, 7
      %v290 = vsub.s32 0, %v289
      %v291 = vrot.slane %v286, %v290
      %v293 = vpack.i.b16 %v284, %v284
      %v295 = vlaneseq
      %v296 = vshrl.u32 %v295, 7
      %v297 = vsub.s32 0, %v296
      %v298 = vrot.slane %v293, %v297
      %v299 = vmul.bf16 %v278, %v291
      %v300 = vmul.bf16 %v273, %v298
      %301 = vrot.lane.b32.xlu0 %v265, 16
      %v302 = vpop.permute.xlu0 %301
      %303 = vrot.lane.b32.xlu0 %v264, 16
      %v304 = vpop.permute.xlu0 %303
      %vm305 = vcmask 130048
      %v306 = vsel %vm305, %v304, %v302
      %vm308 = vcmask 130048
      %v311 = vsel %vm308, %v302, %v304
      %v313 = vshrl.u32 %v283, 16
      %v314 = vpack.i.b16 %v313, %v313
      %v316 = vlaneseq
      %v317 = vshrl.u32 %v316, 7
      %v318 = vsub.s32 0, %v317
      %v319 = vrot.slane %v314, %v318
      %v320 = vshrl.u32 %v284, 16
      %v321 = vpack.i.b16 %v320, %v320
      %v323 = vlaneseq
      %v324 = vshrl.u32 %v323, 7
      %v325 = vsub.s32 0, %v324
      %v326 = vrot.slane %v321, %v325
      %v327 = vmul.bf16 %v311, %v319
      %v328 = vmul.bf16 %v306, %v326
      %v331 = vunpack.c.l.s4 1983009808
      %v332 = vunpack.c.0.s8 %v331
      %v333 = vlaneseq
      %v334 = vshrl.u32 %v333, 7
      %v335 = vsub.s32 %v332, %v334
      %v336 = vrot.slane %v257, %v335
      %337 = vrot.lane.b32.xlu0 %v336, 120
      %v338 = vpop.permute.xlu0 %337
      %vm339 = vcmask 31744
      %v341 = vsel %vm339, %v338, 0
      %vm343 = vcmask 1041408
      %v345 = vsel %vm343, %v327, 0
      %v348 = vsel %vm343, %v328, 0
      %350 = vmatprep.subr.bf16.mxu0 0
      %351 = vmatpush1.bf16.msra.mxu0 0
      %352 = vmatprep.subr.bf16.mxu0 0
      %353 = vmatpush1.bf16.msra.mxu0 0
      %354 = vmatprep.subr.bf16.mxu0 0
      %355 = vmatpush1.bf16.msra.mxu0 0
      %356 = vmatprep.subr.bf16.mxu0 0
      %357 = vmatpush1.bf16.msra.mxu0 0
      %358 = vmatprep.subr.bf16.mxu0 0
      %359 = vmatpush1.bf16.msra.mxu0 0
      %360 = vmatprep.subr.bf16.mxu0 0
      %361 = vmatpush1.bf16.msra.mxu0 0
      %362 = vmatprep.subr.bf16.mxu0 0
      %363 = vmatpush1.bf16.msra.mxu0 0
      %364 = vmatprep.subr.bf16.mxu0 %v348
      %365 = vmatpush1.bf16.msra.mxu0 %v345
      %366 = vmatprep.subr.bf16.mxu0 0
      %367 = vmatpush2.bf16.msra.mxu0 0
      %368 = vmatprep.subr.bf16.mxu0 0
      %369 = vmatpush2.bf16.msra.mxu0 0
      %370 = vmatprep.subr.bf16.mxu0 0
      %371 = vmatpush2.bf16.msra.mxu0 0
      %372 = vmatprep.subr.bf16.mxu0 0
      %373 = vmatpush2.bf16.msra.mxu0 0
      %374 = vmatprep.subr.bf16.mxu0 0
      %375 = vmatpush2.bf16.msra.mxu0 0
      %376 = vmatprep.subr.bf16.mxu0 0
      %377 = vmatpush2.bf16.msra.mxu0 0
      %378 = vmatprep.subr.bf16.mxu0 0
      %379 = vmatpush2.bf16.msra.mxu0 0
      %380 = vmatprep.subr.bf16.mxu0 0
      %381 = vmatpush2.bf16.msra.mxu0 0
      %382 = vmatprep.mubr.bf16.mxu0 0
      %383 = vmatmul.mubr.bf16.gmra.mxu0 %v341
      %v384 = vpop.f32.mrf.mxu0
      %v385 = vadd.f32 0.0, %v384
      %v386 = vpop.f32.mrf.mxu0
      %v387 = vadd.f32 0.0, %v386
      %v388 = vpop.f32.mrf.mxu0
      %v389 = vpop.f32.mrf.mxu0
      %390 = vdwg.mxu0
      %v392 = vsel %vm339, %v257, 0
      %v395 = vsel %vm343, %v299, 0
      %v398 = vsel %vm343, %v300, 0
      %400 = vmatprep.subr.bf16.mxu0 0
      %401 = vmatpush1.bf16.msra.mxu0 0
      %402 = vmatprep.subr.bf16.mxu0 0
      %403 = vmatpush1.bf16.msra.mxu0 0
      %404 = vmatprep.subr.bf16.mxu0 0
      %405 = vmatpush1.bf16.msra.mxu0 0
      %406 = vmatprep.subr.bf16.mxu0 0
      %407 = vmatpush1.bf16.msra.mxu0 0
      %408 = vmatprep.subr.bf16.mxu0 0
      %409 = vmatpush1.bf16.msra.mxu0 0
      %410 = vmatprep.subr.bf16.mxu0 0
      %411 = vmatpush1.bf16.msra.mxu0 0
      %412 = vmatprep.subr.bf16.mxu0 0
      %413 = vmatpush1.bf16.msra.mxu0 0
      %414 = vmatprep.subr.bf16.mxu0 %v398
      %415 = vmatpush1.bf16.msra.mxu0 %v395
      %416 = vmatprep.subr.bf16.mxu0 0
      %417 = vmatpush2.bf16.msra.mxu0 0
      %418 = vmatprep.subr.bf16.mxu0 0
      %419 = vmatpush2.bf16.msra.mxu0 0
      %420 = vmatprep.subr.bf16.mxu0 0
      %421 = vmatpush2.bf16.msra.mxu0 0
      %422 = vmatprep.subr.bf16.mxu0 0
      %423 = vmatpush2.bf16.msra.mxu0 0
      %424 = vmatprep.subr.bf16.mxu0 0
      %425 = vmatpush2.bf16.msra.mxu0 0
      %426 = vmatprep.subr.bf16.mxu0 0
      %427 = vmatpush2.bf16.msra.mxu0 0
      %428 = vmatprep.subr.bf16.mxu0 0
      %429 = vmatpush2.bf16.msra.mxu0 0
      %430 = vmatprep.subr.bf16.mxu0 0
      %431 = vmatpush2.bf16.msra.mxu0 0
      %432 = vmatprep.mubr.bf16.mxu0 0
      %433 = vmatmul.mubr.bf16.gmra.mxu0 %v392
      %v434 = vpop.f32.mrf.mxu0
      %v435 = vadd.f32 %v385, %v434
      %v436 = vpop.f32.mrf.mxu0
      %v437 = vadd.f32 %v387, %v436
      %v438 = vpop.f32.mrf.mxu0
      %v439 = vpop.f32.mrf.mxu0
      %440 = vdwg.mxu0
      %441 = vrot.lane.b32.xlu0 %v265, 15
      %v442 = vpop.permute.xlu0 %441
      %443 = vrot.lane.b32.xlu0 %v264, 15
      %v444 = vpop.permute.xlu0 %443
      %vm445 = vcmask 121856
      %v446 = vsel %vm445, %v444, %v442
      %vm448 = vcmask 121856
      %v451 = vsel %vm448, %v442, %v444
      %v453 = vlaneseq
      %v454 = vshrl.u32 %v453, 7
      %v455 = vsub.s32 1, %v454
      %v456 = vrot.slane %v286, %v455
      %v457 = vlaneseq
      %v458 = vshrl.u32 %v457, 7
      %v459 = vsub.s32 1, %v458
      %v460 = vrot.slane %v293, %v459
      %v461 = vmul.bf16 %v451, %v456
      %v462 = vmul.bf16 %v446, %v460
      %463 = vrot.lane.b32.xlu0 %v336, 112
      %v464 = vpop.permute.xlu0 %463
      %v466 = vsel %vm339, %v464, 0
      %v469 = vsel %vm343, %v461, 0
      %v472 = vsel %vm343, %v462, 0
      %474 = vmatprep.subr.bf16.mxu0 0
      %475 = vmatpush1.bf16.msra.mxu0 0
      %476 = vmatprep.subr.bf16.mxu0 0
      %477 = vmatpush1.bf16.msra.mxu0 0
      %478 = vmatprep.subr.bf16.mxu0 0
      %479 = vmatpush1.bf16.msra.mxu0 0
      %480 = vmatprep.subr.bf16.mxu0 0
      %481 = vmatpush1.bf16.msra.mxu0 0
      %482 = vmatprep.subr.bf16.mxu0 0
      %483 = vmatpush1.bf16.msra.mxu0 0
      %484 = vmatprep.subr.bf16.mxu0 0
      %485 = vmatpush1.bf16.msra.mxu0 0
      %486 = vmatprep.subr.bf16.mxu0 0
      %487 = vmatpush1.bf16.msra.mxu0 0
      %488 = vmatprep.subr.bf16.mxu0 %v472
      %489 = vmatpush1.bf16.msra.mxu0 %v469
      %490 = vmatprep.subr.bf16.mxu0 0
      %491 = vmatpush2.bf16.msra.mxu0 0
      %492 = vmatprep.subr.bf16.mxu0 0
      %493 = vmatpush2.bf16.msra.mxu0 0
      %494 = vmatprep.subr.bf16.mxu0 0
      %495 = vmatpush2.bf16.msra.mxu0 0
      %496 = vmatprep.subr.bf16.mxu0 0
      %497 = vmatpush2.bf16.msra.mxu0 0
      %498 = vmatprep.subr.bf16.mxu0 0
      %499 = vmatpush2.bf16.msra.mxu0 0
      %500 = vmatprep.subr.bf16.mxu0 0
      %501 = vmatpush2.bf16.msra.mxu0 0
      %502 = vmatprep.subr.bf16.mxu0 0
      %503 = vmatpush2.bf16.msra.mxu0 0
      %504 = vmatprep.subr.bf16.mxu0 0
      %505 = vmatpush2.bf16.msra.mxu0 0
      %506 = vmatprep.mubr.bf16.mxu0 0
      %507 = vmatmul.mubr.bf16.gmra.mxu0 %v466
      %v508 = vpop.f32.mrf.mxu0
      %v509 = vadd.f32 0.0, %v508
      %v510 = vpop.f32.mrf.mxu0
      %v511 = vadd.f32 0.0, %v510
      %v512 = vpop.f32.mrf.mxu0
      %v513 = vpop.f32.mrf.mxu0
      %514 = vdwg.mxu0
      %v515 = vadd.f32 %v435, %v509
      %v516 = vadd.f32 %v437, %v511
      %517 = vrot.lane.b32.xlu0 %v265, 1
      %v518 = vpop.permute.xlu0 %517
      %519 = vrot.lane.b32.xlu0 %v264, 1
      %v520 = vpop.permute.xlu0 %519
      %vm521 = vcmask 7168
      %v522 = vsel %vm521, %v520, %v518
      %vm524 = vcmask 7168
      %v527 = vsel %vm524, %v518, %v520
      %v529 = vlaneseq
      %v530 = vshrl.u32 %v529, 7
      %v531 = vsub.s32 1, %v530
      %v532 = vrot.slane %v314, %v531
      %v533 = vlaneseq
      %v534 = vshrl.u32 %v533, 7
      %v535 = vsub.s32 1, %v534
      %v536 = vrot.slane %v321, %v535
      %v537 = vmul.bf16 %v527, %v532
      %v538 = vmul.bf16 %v522, %v536
      %539 = vrot.lane.b32.xlu0 %v336, 104
      %v540 = vpop.permute.xlu0 %539
      %v542 = vsel %vm339, %v540, 0
      %v545 = vsel %vm343, %v537, 0
      %v548 = vsel %vm343, %v538, 0
      %550 = vmatprep.subr.bf16.mxu0 0
      %551 = vmatpush1.bf16.msra.mxu0 0
      %552 = vmatprep.subr.bf16.mxu0 0
      %553 = vmatpush1.bf16.msra.mxu0 0
      %554 = vmatprep.subr.bf16.mxu0 0
      %555 = vmatpush1.bf16.msra.mxu0 0
      %556 = vmatprep.subr.bf16.mxu0 0
      %557 = vmatpush1.bf16.msra.mxu0 0
      %558 = vmatprep.subr.bf16.mxu0 0
      %559 = vmatpush1.bf16.msra.mxu0 0
      %560 = vmatprep.subr.bf16.mxu0 0
      %561 = vmatpush1.bf16.msra.mxu0 0
      %562 = vmatprep.subr.bf16.mxu0 0
      %563 = vmatpush1.bf16.msra.mxu0 0
      %564 = vmatprep.subr.bf16.mxu0 %v548
      %565 = vmatpush1.bf16.msra.mxu0 %v545
      %566 = vmatprep.subr.bf16.mxu0 0
      %567 = vmatpush2.bf16.msra.mxu0 0
      %568 = vmatprep.subr.bf16.mxu0 0
      %569 = vmatpush2.bf16.msra.mxu0 0
      %570 = vmatprep.subr.bf16.mxu0 0
      %571 = vmatpush2.bf16.msra.mxu0 0
      %572 = vmatprep.subr.bf16.mxu0 0
      %573 = vmatpush2.bf16.msra.mxu0 0
      %574 = vmatprep.subr.bf16.mxu0 0
      %575 = vmatpush2.bf16.msra.mxu0 0
      %576 = vmatprep.subr.bf16.mxu0 0
      %577 = vmatpush2.bf16.msra.mxu0 0
      %578 = vmatprep.subr.bf16.mxu0 0
      %579 = vmatpush2.bf16.msra.mxu0 0
      %580 = vmatprep.subr.bf16.mxu0 0
      %581 = vmatpush2.bf16.msra.mxu0 0
      %582 = vmatprep.mubr.bf16.mxu0 0
      %583 = vmatmul.mubr.bf16.gmra.mxu0 %v542
      %v584 = vpop.f32.mrf.mxu0
      %v585 = vadd.f32 0.0, %v584
      %v586 = vpop.f32.mrf.mxu0
      %v587 = vadd.f32 0.0, %v586
      %v588 = vpop.f32.mrf.mxu0
      %v589 = vpop.f32.mrf.mxu0
      %590 = vdwg.mxu0
      %v591 = vadd.f32 %v515, %v585
      %v592 = vadd.f32 %v516, %v587
      %v593 = vlaneseq
      %v594 = vshrl.u32 %v593, 7
      %v595 = vsub.s32 2, %v594
      %v596 = vrot.slane %v286, %v595
      %v597 = vlaneseq
      %v598 = vshrl.u32 %v597, 7
      %v599 = vsub.s32 2, %v598
      %v600 = vrot.slane %v293, %v599
      %v601 = vmul.bf16 %v264, %v596
      %v602 = vmul.bf16 %v265, %v600
      %603 = vrot.lane.b32.xlu0 %v336, 96
      %v604 = vpop.permute.xlu0 %603
      %v606 = vsel %vm339, %v604, 0
      %v609 = vsel %vm343, %v601, 0
      %v612 = vsel %vm343, %v602, 0
      %614 = vmatprep.subr.bf16.mxu0 0
      %615 = vmatpush1.bf16.msra.mxu0 0
      %616 = vmatprep.subr.bf16.mxu0 0
      %617 = vmatpush1.bf16.msra.mxu0 0
      %618 = vmatprep.subr.bf16.mxu0 0
      %619 = vmatpush1.bf16.msra.mxu0 0
      %620 = vmatprep.subr.bf16.mxu0 0
      %621 = vmatpush1.bf16.msra.mxu0 0
      %622 = vmatprep.subr.bf16.mxu0 0
      %623 = vmatpush1.bf16.msra.mxu0 0
      %624 = vmatprep.subr.bf16.mxu0 0
      %625 = vmatpush1.bf16.msra.mxu0 0
      %626 = vmatprep.subr.bf16.mxu0 0
      %627 = vmatpush1.bf16.msra.mxu0 0
      %628 = vmatprep.subr.bf16.mxu0 %v612
      %629 = vmatpush1.bf16.msra.mxu0 %v609
      %630 = vmatprep.subr.bf16.mxu0 0
      %631 = vmatpush2.bf16.msra.mxu0 0
      %632 = vmatprep.subr.bf16.mxu0 0
      %633 = vmatpush2.bf16.msra.mxu0 0
      %634 = vmatprep.subr.bf16.mxu0 0
      %635 = vmatpush2.bf16.msra.mxu0 0
      %636 = vmatprep.subr.bf16.mxu0 0
      %637 = vmatpush2.bf16.msra.mxu0 0
      %638 = vmatprep.subr.bf16.mxu0 0
      %639 = vmatpush2.bf16.msra.mxu0 0
      %640 = vmatprep.subr.bf16.mxu0 0
      %641 = vmatpush2.bf16.msra.mxu0 0
      %642 = vmatprep.subr.bf16.mxu0 0
      %643 = vmatpush2.bf16.msra.mxu0 0
      %644 = vmatprep.subr.bf16.mxu0 0
      %645 = vmatpush2.bf16.msra.mxu0 0
      %646 = vmatprep.mubr.bf16.mxu0 0
      %647 = vmatmul.mubr.bf16.gmra.mxu0 %v606
      %v648 = vpop.f32.mrf.mxu0
      %v649 = vadd.f32 0.0, %v648
      %v650 = vpop.f32.mrf.mxu0
      %v651 = vadd.f32 0.0, %v650
      %v652 = vpop.f32.mrf.mxu0
      %v653 = vpop.f32.mrf.mxu0
      %654 = vdwg.mxu0
      %v655 = vadd.f32 %v591, %v649
      %v656 = vadd.f32 %v592, %v651
      %657 = vrot.lane.b32.xlu0 %v264, 127
      %v658 = vpop.permute.xlu0 %657
      %659 = vrot.lane.b32.xlu0 %v265, 127
      %v660 = vpop.permute.xlu0 %659
      %vm661 = vcmask 1039360
      %v662 = vsel %vm661, %v658, %v660
      %vm664 = vcmask 1039360
      %v667 = vsel %vm664, %v660, %v658
      %v669 = vlaneseq
      %v670 = vshrl.u32 %v669, 7
      %v671 = vsub.s32 2, %v670
      %v672 = vrot.slane %v314, %v671
      %v673 = vlaneseq
      %v674 = vshrl.u32 %v673, 7
      %v675 = vsub.s32 2, %v674
      %v676 = vrot.slane %v321, %v675
      %v677 = vmul.bf16 %v662, %v672
      %v678 = vmul.bf16 %v667, %v676
      %679 = vrot.lane.b32.xlu0 %v336, 88
      %v680 = vpop.permute.xlu0 %679
      %v682 = vsel %vm339, %v680, 0
      %v685 = vsel %vm343, %v677, 0
      %v688 = vsel %vm343, %v678, 0
      %690 = vmatprep.subr.bf16.mxu0 0
      %691 = vmatpush1.bf16.msra.mxu0 0
      %692 = vmatprep.subr.bf16.mxu0 0
      %693 = vmatpush1.bf16.msra.mxu0 0
      %694 = vmatprep.subr.bf16.mxu0 0
      %695 = vmatpush1.bf16.msra.mxu0 0
      %696 = vmatprep.subr.bf16.mxu0 0
      %697 = vmatpush1.bf16.msra.mxu0 0
      %698 = vmatprep.subr.bf16.mxu0 0
      %699 = vmatpush1.bf16.msra.mxu0 0
      %700 = vmatprep.subr.bf16.mxu0 0
      %701 = vmatpush1.bf16.msra.mxu0 0
      %702 = vmatprep.subr.bf16.mxu0 0
      %703 = vmatpush1.bf16.msra.mxu0 0
      %704 = vmatprep.subr.bf16.mxu0 %v688
      %705 = vmatpush1.bf16.msra.mxu0 %v685
      %706 = vmatprep.subr.bf16.mxu0 0
      %707 = vmatpush2.bf16.msra.mxu0 0
      %708 = vmatprep.subr.bf16.mxu0 0
      %709 = vmatpush2.bf16.msra.mxu0 0
      %710 = vmatprep.subr.bf16.mxu0 0
      %711 = vmatpush2.bf16.msra.mxu0 0
      %712 = vmatprep.subr.bf16.mxu0 0
      %713 = vmatpush2.bf16.msra.mxu0 0
      %714 = vmatprep.subr.bf16.mxu0 0
      %715 = vmatpush2.bf16.msra.mxu0 0
      %716 = vmatprep.subr.bf16.mxu0 0
      %717 = vmatpush2.bf16.msra.mxu0 0
      %718 = vmatprep.subr.bf16.mxu0 0
      %719 = vmatpush2.bf16.msra.mxu0 0
      %720 = vmatprep.subr.bf16.mxu0 0
      %721 = vmatpush2.bf16.msra.mxu0 0
      %722 = vmatprep.mubr.bf16.mxu0 0
      %723 = vmatmul.mubr.bf16.gmra.mxu0 %v682
      %v724 = vpop.f32.mrf.mxu0
      %v725 = vadd.f32 0.0, %v724
      %v726 = vpop.f32.mrf.mxu0
      %v727 = vadd.f32 0.0, %v726
      %v728 = vpop.f32.mrf.mxu0
      %v729 = vpop.f32.mrf.mxu0
      %730 = vdwg.mxu0
      %v731 = vadd.f32 %v655, %v725
      %v732 = vadd.f32 %v656, %v727
      %733 = vrot.lane.b32.xlu0 %v264, 113
      %v734 = vpop.permute.xlu0 %733
      %735 = vrot.lane.b32.xlu0 %v265, 113
      %v736 = vpop.permute.xlu0 %735
      %vm737 = vcmask 924672
      %v738 = vsel %vm737, %v734, %v736
      %vm740 = vcmask 924672
      %v743 = vsel %vm740, %v736, %v734
      %v745 = vlaneseq
      %v746 = vshrl.u32 %v745, 7
      %v747 = vsub.s32 3, %v746
      %v748 = vrot.slane %v286, %v747
      %v749 = vlaneseq
      %v750 = vshrl.u32 %v749, 7
      %v751 = vsub.s32 3, %v750
      %v752 = vrot.slane %v293, %v751
      %v753 = vmul.bf16 %v738, %v748
      %v754 = vmul.bf16 %v743, %v752
      %755 = vrot.lane.b32.xlu0 %v336, 80
      %v756 = vpop.permute.xlu0 %755
      %v758 = vsel %vm339, %v756, 0
      %v761 = vsel %vm343, %v753, 0
      %v764 = vsel %vm343, %v754, 0
      %766 = vmatprep.subr.bf16.mxu0 0
      %767 = vmatpush1.bf16.msra.mxu0 0
      %768 = vmatprep.subr.bf16.mxu0 0
      %769 = vmatpush1.bf16.msra.mxu0 0
      %770 = vmatprep.subr.bf16.mxu0 0
      %771 = vmatpush1.bf16.msra.mxu0 0
      %772 = vmatprep.subr.bf16.mxu0 0
      %773 = vmatpush1.bf16.msra.mxu0 0
      %774 = vmatprep.subr.bf16.mxu0 0
      %775 = vmatpush1.bf16.msra.mxu0 0
      %776 = vmatprep.subr.bf16.mxu0 0
      %777 = vmatpush1.bf16.msra.mxu0 0
      %778 = vmatprep.subr.bf16.mxu0 0
      %779 = vmatpush1.bf16.msra.mxu0 0
      %780 = vmatprep.subr.bf16.mxu0 %v764
      %781 = vmatpush1.bf16.msra.mxu0 %v761
      %782 = vmatprep.subr.bf16.mxu0 0
      %783 = vmatpush2.bf16.msra.mxu0 0
      %784 = vmatprep.subr.bf16.mxu0 0
      %785 = vmatpush2.bf16.msra.mxu0 0
      %786 = vmatprep.subr.bf16.mxu0 0
      %787 = vmatpush2.bf16.msra.mxu0 0
      %788 = vmatprep.subr.bf16.mxu0 0
      %789 = vmatpush2.bf16.msra.mxu0 0
      %790 = vmatprep.subr.bf16.mxu0 0
      %791 = vmatpush2.bf16.msra.mxu0 0
      %792 = vmatprep.subr.bf16.mxu0 0
      %793 = vmatpush2.bf16.msra.mxu0 0
      %794 = vmatprep.subr.bf16.mxu0 0
      %795 = vmatpush2.bf16.msra.mxu0 0
      %796 = vmatprep.subr.bf16.mxu0 0
      %797 = vmatpush2.bf16.msra.mxu0 0
      %798 = vmatprep.mubr.bf16.mxu0 0
      %799 = vmatmul.mubr.bf16.gmra.mxu0 %v758
      %v800 = vpop.f32.mrf.mxu0
      %v801 = vadd.f32 0.0, %v800
      %v802 = vpop.f32.mrf.mxu0
      %v803 = vadd.f32 0.0, %v802
      %v804 = vpop.f32.mrf.mxu0
      %v805 = vpop.f32.mrf.mxu0
      %806 = vdwg.mxu0
      %v807 = vadd.f32 %v731, %v801
      %v808 = vadd.f32 %v732, %v803
      %809 = vrot.lane.b32.xlu0 %v264, 112
      %v810 = vpop.permute.xlu0 %809
      %811 = vrot.lane.b32.xlu0 %v265, 112
      %v812 = vpop.permute.xlu0 %811
      %vm813 = vcmask 916480
      %v814 = vsel %vm813, %v810, %v812
      %vm816 = vcmask 916480
      %v819 = vsel %vm816, %v812, %v810
      %v821 = vlaneseq
      %v822 = vshrl.u32 %v821, 7
      %v823 = vsub.s32 3, %v822
      %v824 = vrot.slane %v314, %v823
      %v825 = vlaneseq
      %v826 = vshrl.u32 %v825, 7
      %v827 = vsub.s32 3, %v826
      %v828 = vrot.slane %v321, %v827
      %v829 = vmul.bf16 %v814, %v824
      %v830 = vmul.bf16 %v819, %v828
      %831 = vrot.lane.b32.xlu0 %v336, 72
      %v832 = vpop.permute.xlu0 %831
      %v834 = vsel %vm339, %v832, 0
      %v837 = vsel %vm343, %v829, 0
      %v840 = vsel %vm343, %v830, 0
      %842 = vmatprep.subr.bf16.mxu0 0
      %843 = vmatpush1.bf16.msra.mxu0 0
      %844 = vmatprep.subr.bf16.mxu0 0
      %845 = vmatpush1.bf16.msra.mxu0 0
      %846 = vmatprep.subr.bf16.mxu0 0
      %847 = vmatpush1.bf16.msra.mxu0 0
      %848 = vmatprep.subr.bf16.mxu0 0
      %849 = vmatpush1.bf16.msra.mxu0 0
      %850 = vmatprep.subr.bf16.mxu0 0
      %851 = vmatpush1.bf16.msra.mxu0 0
      %852 = vmatprep.subr.bf16.mxu0 0
      %853 = vmatpush1.bf16.msra.mxu0 0
      %854 = vmatprep.subr.bf16.mxu0 0
      %855 = vmatpush1.bf16.msra.mxu0 0
      %856 = vmatprep.subr.bf16.mxu0 %v840
      %857 = vmatpush1.bf16.msra.mxu0 %v837
      %858 = vmatprep.subr.bf16.mxu0 0
      %859 = vmatpush2.bf16.msra.mxu0 0
      %860 = vmatprep.subr.bf16.mxu0 0
      %861 = vmatpush2.bf16.msra.mxu0 0
      %862 = vmatprep.subr.bf16.mxu0 0
      %863 = vmatpush2.bf16.msra.mxu0 0
      %864 = vmatprep.subr.bf16.mxu0 0
      %865 = vmatpush2.bf16.msra.mxu0 0
      %866 = vmatprep.subr.bf16.mxu0 0
      %867 = vmatpush2.bf16.msra.mxu0 0
      %868 = vmatprep.subr.bf16.mxu0 0
      %869 = vmatpush2.bf16.msra.mxu0 0
      %870 = vmatprep.subr.bf16.mxu0 0
      %871 = vmatpush2.bf16.msra.mxu0 0
      %872 = vmatprep.subr.bf16.mxu0 0
      %873 = vmatpush2.bf16.msra.mxu0 0
      %874 = vmatprep.mubr.bf16.mxu0 0
      %875 = vmatmul.mubr.bf16.gmra.mxu0 %v834
      %v876 = vpop.f32.mrf.mxu0
      %v877 = vadd.f32 0.0, %v876
      %v878 = vpop.f32.mrf.mxu0
      %v879 = vadd.f32 0.0, %v878
      %v880 = vpop.f32.mrf.mxu0
      %v881 = vpop.f32.mrf.mxu0
      %882 = vdwg.mxu0
      %v883 = vadd.f32 %v807, %v877
      %v884 = vadd.f32 %v808, %v879
      %885 = vrot.lane.b32.xlu0 %v264, 111
      %v886 = vpop.permute.xlu0 %885
      %887 = vrot.lane.b32.xlu0 %v265, 111
      %v888 = vpop.permute.xlu0 %887
      %vm889 = vcmask 908288
      %v890 = vsel %vm889, %v886, %v888
      %vm892 = vcmask 908288
      %v895 = vsel %vm892, %v888, %v886
      %v898 = vunpack.c.l.b16 %v259
      %v899 = vunpack.c.h.b16 %v259
      %v900 = vpack.c.b16 %v898, %v898
      %v901 = vpack.c.b16 %v899, %v899
      %v903 = vpack.i.b16 %v900, %v900
      %v905 = vlaneseq
      %v906 = vshrl.u32 %v905, 7
      %v907 = vsub.s32 0, %v906
      %v908 = vrot.slane %v903, %v907
      %v910 = vpack.i.b16 %v901, %v901
      %v912 = vlaneseq
      %v913 = vshrl.u32 %v912, 7
      %v914 = vsub.s32 0, %v913
      %v915 = vrot.slane %v910, %v914
      %v916 = vmul.bf16 %v890, %v908
      %v917 = vmul.bf16 %v895, %v915
      %918 = vrot.lane.b32.xlu0 %v336, 64
      %v919 = vpop.permute.xlu0 %918
      %v921 = vsel %vm339, %v919, 0
      %v924 = vsel %vm343, %v916, 0
      %v927 = vsel %vm343, %v917, 0
      %929 = vmatprep.subr.bf16.mxu0 0
      %930 = vmatpush1.bf16.msra.mxu0 0
      %931 = vmatprep.subr.bf16.mxu0 0
      %932 = vmatpush1.bf16.msra.mxu0 0
      %933 = vmatprep.subr.bf16.mxu0 0
      %934 = vmatpush1.bf16.msra.mxu0 0
      %935 = vmatprep.subr.bf16.mxu0 0
      %936 = vmatpush1.bf16.msra.mxu0 0
      %937 = vmatprep.subr.bf16.mxu0 0
      %938 = vmatpush1.bf16.msra.mxu0 0
      %939 = vmatprep.subr.bf16.mxu0 0
      %940 = vmatpush1.bf16.msra.mxu0 0
      %941 = vmatprep.subr.bf16.mxu0 0
      %942 = vmatpush1.bf16.msra.mxu0 0
      %943 = vmatprep.subr.bf16.mxu0 %v927
      %944 = vmatpush1.bf16.msra.mxu0 %v924
      %945 = vmatprep.subr.bf16.mxu0 0
      %946 = vmatpush2.bf16.msra.mxu0 0
      %947 = vmatprep.subr.bf16.mxu0 0
      %948 = vmatpush2.bf16.msra.mxu0 0
      %949 = vmatprep.subr.bf16.mxu0 0
      %950 = vmatpush2.bf16.msra.mxu0 0
      %951 = vmatprep.subr.bf16.mxu0 0
      %952 = vmatpush2.bf16.msra.mxu0 0
      %953 = vmatprep.subr.bf16.mxu0 0
      %954 = vmatpush2.bf16.msra.mxu0 0
      %955 = vmatprep.subr.bf16.mxu0 0
      %956 = vmatpush2.bf16.msra.mxu0 0
      %957 = vmatprep.subr.bf16.mxu0 0
      %958 = vmatpush2.bf16.msra.mxu0 0
      %959 = vmatprep.subr.bf16.mxu0 0
      %960 = vmatpush2.bf16.msra.mxu0 0
      %961 = vmatprep.mubr.bf16.mxu0 0
      %962 = vmatmul.mubr.bf16.gmra.mxu0 %v921
      %v963 = vpop.f32.mrf.mxu0
      %v964 = vadd.f32 0.0, %v963
      %v965 = vpop.f32.mrf.mxu0
      %v966 = vadd.f32 0.0, %v965
      %v967 = vpop.f32.mrf.mxu0
      %v968 = vpop.f32.mrf.mxu0
      %969 = vdwg.mxu0
      %v970 = vadd.f32 %v883, %v964
      %v971 = vadd.f32 %v884, %v966
      %v972 = vld [vmem:[%s246] sm:$0xf]
      %v975 = vunpack.c.l.s4 1983009808
      %v976 = vunpack.c.0.s8 %v975
      %v977 = vlaneseq
      %v978 = vshrl.u32 %v977, 7
      %v979 = vsub.s32 %v976, %v978
      %v980 = vrot.slane %v972, %v979
      %v981 = vcombine.high %v980, %v980
      %982 = vrot.lane.b32.xlu0 %v981, 17
      %v983 = vpop.permute.xlu0 %982
      %984 = vrot.lane.b32.xlu0 %v980, 17
      %v985 = vpop.permute.xlu0 %984
      %v986 = vsel %vm272, %v985, %v983
      %v990 = vsel %vm275, %v983, %v985
      %v992 = vmul.bf16 %v990, %v291
      %v993 = vmul.bf16 %v986, %v298
      %994 = vrot.lane.b32.xlu0 %v336, 124
      %v995 = vpop.permute.xlu0 %994
      %v997 = vsel %vm339, %v995, 0
      %v1000 = vsel %vm343, %v992, 0
      %v1003 = vsel %vm343, %v993, 0
      %1005 = vmatprep.subr.bf16.mxu0 0
      %1006 = vmatpush1.bf16.msra.mxu0 0
      %1007 = vmatprep.subr.bf16.mxu0 0
      %1008 = vmatpush1.bf16.msra.mxu0 0
      %1009 = vmatprep.subr.bf16.mxu0 0
      %1010 = vmatpush1.bf16.msra.mxu0 0
      %1011 = vmatprep.subr.bf16.mxu0 0
      %1012 = vmatpush1.bf16.msra.mxu0 0
      %1013 = vmatprep.subr.bf16.mxu0 0
      %1014 = vmatpush1.bf16.msra.mxu0 0
      %1015 = vmatprep.subr.bf16.mxu0 0
      %1016 = vmatpush1.bf16.msra.mxu0 0
      %1017 = vmatprep.subr.bf16.mxu0 0
      %1018 = vmatpush1.bf16.msra.mxu0 0
      %1019 = vmatprep.subr.bf16.mxu0 %v1003
      %1020 = vmatpush1.bf16.msra.mxu0 %v1000
      %1021 = vmatprep.subr.bf16.mxu0 0
      %1022 = vmatpush2.bf16.msra.mxu0 0
      %1023 = vmatprep.subr.bf16.mxu0 0
      %1024 = vmatpush2.bf16.msra.mxu0 0
      %1025 = vmatprep.subr.bf16.mxu0 0
      %1026 = vmatpush2.bf16.msra.mxu0 0
      %1027 = vmatprep.subr.bf16.mxu0 0
      %1028 = vmatpush2.bf16.msra.mxu0 0
      %1029 = vmatprep.subr.bf16.mxu0 0
      %1030 = vmatpush2.bf16.msra.mxu0 0
      %1031 = vmatprep.subr.bf16.mxu0 0
      %1032 = vmatpush2.bf16.msra.mxu0 0
      %1033 = vmatprep.subr.bf16.mxu0 0
      %1034 = vmatpush2.bf16.msra.mxu0 0
      %1035 = vmatprep.subr.bf16.mxu0 0
      %1036 = vmatpush2.bf16.msra.mxu0 0
      %1037 = vmatprep.mubr.bf16.mxu0 0
      %1038 = vmatmul.mubr.bf16.gmra.mxu0 %v997
      %v1039 = vpop.f32.mrf.mxu0
      %v1040 = vadd.f32 0.0, %v1039
      %v1041 = vpop.f32.mrf.mxu0
      %v1042 = vadd.f32 0.0, %v1041
      %v1043 = vpop.f32.mrf.mxu0
      %v1044 = vpop.f32.mrf.mxu0
      %1045 = vdwg.mxu0
      %v1046 = vadd.f32 %v970, %v1040
      %v1047 = vadd.f32 %v971, %v1042
      %1048 = vrot.lane.b32.xlu0 %v981, 16
      %v1049 = vpop.permute.xlu0 %1048
      %1050 = vrot.lane.b32.xlu0 %v980, 16
      %v1051 = vpop.permute.xlu0 %1050
      %v1052 = vsel %vm305, %v1051, %v1049
      %v1056 = vsel %vm308, %v1049, %v1051
      %v1058 = vmul.bf16 %v1056, %v319
      %v1059 = vmul.bf16 %v1052, %v326
      %1060 = vrot.lane.b32.xlu0 %v336, 116
      %v1061 = vpop.permute.xlu0 %1060
      %v1063 = vsel %vm339, %v1061, 0
      %v1066 = vsel %vm343, %v1058, 0
      %v1069 = vsel %vm343, %v1059, 0
      %1071 = vmatprep.subr.bf16.mxu0 0
      %1072 = vmatpush1.bf16.msra.mxu0 0
      %1073 = vmatprep.subr.bf16.mxu0 0
      %1074 = vmatpush1.bf16.msra.mxu0 0
      %1075 = vmatprep.subr.bf16.mxu0 0
      %1076 = vmatpush1.bf16.msra.mxu0 0
      %1077 = vmatprep.subr.bf16.mxu0 0
      %1078 = vmatpush1.bf16.msra.mxu0 0
      %1079 = vmatprep.subr.bf16.mxu0 0
      %1080 = vmatpush1.bf16.msra.mxu0 0
      %1081 = vmatprep.subr.bf16.mxu0 0
      %1082 = vmatpush1.bf16.msra.mxu0 0
      %1083 = vmatprep.subr.bf16.mxu0 0
      %1084 = vmatpush1.bf16.msra.mxu0 0
      %1085 = vmatprep.subr.bf16.mxu0 %v1069
      %1086 = vmatpush1.bf16.msra.mxu0 %v1066
      %1087 = vmatprep.subr.bf16.mxu0 0
      %1088 = vmatpush2.bf16.msra.mxu0 0
      %1089 = vmatprep.subr.bf16.mxu0 0
      %1090 = vmatpush2.bf16.msra.mxu0 0
      %1091 = vmatprep.subr.bf16.mxu0 0
      %1092 = vmatpush2.bf16.msra.mxu0 0
      %1093 = vmatprep.subr.bf16.mxu0 0
      %1094 = vmatpush2.bf16.msra.mxu0 0
      %1095 = vmatprep.subr.bf16.mxu0 0
      %1096 = vmatpush2.bf16.msra.mxu0 0
      %1097 = vmatprep.subr.bf16.mxu0 0
      %1098 = vmatpush2.bf16.msra.mxu0 0
      %1099 = vmatprep.subr.bf16.mxu0 0
      %1100 = vmatpush2.bf16.msra.mxu0 0
      %1101 = vmatprep.subr.bf16.mxu0 0
      %1102 = vmatpush2.bf16.msra.mxu0 0
      %1103 = vmatprep.mubr.bf16.mxu0 0
      %1104 = vmatmul.mubr.bf16.gmra.mxu0 %v1063
      %v1105 = vpop.f32.mrf.mxu0
      %v1106 = vadd.f32 0.0, %v1105
      %v1107 = vpop.f32.mrf.mxu0
      %v1108 = vadd.f32 0.0, %v1107
      %v1109 = vpop.f32.mrf.mxu0
      %v1110 = vpop.f32.mrf.mxu0
      %1111 = vdwg.mxu0
      %v1112 = vadd.f32 %v1046, %v1106
      %v1113 = vadd.f32 %v1047, %v1108
      %1114 = vrot.lane.b32.xlu0 %v981, 15
      %v1115 = vpop.permute.xlu0 %1114
      %1116 = vrot.lane.b32.xlu0 %v980, 15
      %v1117 = vpop.permute.xlu0 %1116
      %v1118 = vsel %vm445, %v1117, %v1115
      %v1122 = vsel %vm448, %v1115, %v1117
      %v1124 = vmul.bf16 %v1122, %v456
      %v1125 = vmul.bf16 %v1118, %v460
      %1126 = vrot.lane.b32.xlu0 %v336, 108
      %v1127 = vpop.permute.xlu0 %1126
      %v1129 = vsel %vm339, %v1127, 0
      %v1132 = vsel %vm343, %v1124, 0
      %v1135 = vsel %vm343, %v1125, 0
      %1137 = vmatprep.subr.bf16.mxu0 0
      %1138 = vmatpush1.bf16.msra.mxu0 0
      %1139 = vmatprep.subr.bf16.mxu0 0
      %1140 = vmatpush1.bf16.msra.mxu0 0
      %1141 = vmatprep.subr.bf16.mxu0 0
      %1142 = vmatpush1.bf16.msra.mxu0 0
      %1143 = vmatprep.subr.bf16.mxu0 0
      %1144 = vmatpush1.bf16.msra.mxu0 0
      %1145 = vmatprep.subr.bf16.mxu0 0
      %1146 = vmatpush1.bf16.msra.mxu0 0
      %1147 = vmatprep.subr.bf16.mxu0 0
      %1148 = vmatpush1.bf16.msra.mxu0 0
      %1149 = vmatprep.subr.bf16.mxu0 0
      %1150 = vmatpush1.bf16.msra.mxu0 0
      %1151 = vmatprep.subr.bf16.mxu0 %v1135
      %1152 = vmatpush1.bf16.msra.mxu0 %v1132
      %1153 = vmatprep.subr.bf16.mxu0 0
      %1154 = vmatpush2.bf16.msra.mxu0 0
      %1155 = vmatprep.subr.bf16.mxu0 0
      %1156 = vmatpush2.bf16.msra.mxu0 0
      %1157 = vmatprep.subr.bf16.mxu0 0
      %1158 = vmatpush2.bf16.msra.mxu0 0
      %1159 = vmatprep.subr.bf16.mxu0 0
      %1160 = vmatpush2.bf16.msra.mxu0 0
      %1161 = vmatprep.subr.bf16.mxu0 0
      %1162 = vmatpush2.bf16.msra.mxu0 0
      %1163 = vmatprep.subr.bf16.mxu0 0
      %1164 = vmatpush2.bf16.msra.mxu0 0
      %1165 = vmatprep.subr.bf16.mxu0 0
      %1166 = vmatpush2.bf16.msra.mxu0 0
      %1167 = vmatprep.subr.bf16.mxu0 0
      %1168 = vmatpush2.bf16.msra.mxu0 0
      %1169 = vmatprep.mubr.bf16.mxu0 0
      %1170 = vmatmul.mubr.bf16.gmra.mxu0 %v1129
      %v1171 = vpop.f32.mrf.mxu0
      %v1172 = vadd.f32 0.0, %v1171
      %v1173 = vpop.f32.mrf.mxu0
      %v1174 = vadd.f32 0.0, %v1173
      %v1175 = vpop.f32.mrf.mxu0
      %v1176 = vpop.f32.mrf.mxu0
      %1177 = vdwg.mxu0
      %v1178 = vadd.f32 %v1112, %v1172
      %v1179 = vadd.f32 %v1113, %v1174
      %1180 = vrot.lane.b32.xlu0 %v981, 1
      %v1181 = vpop.permute.xlu0 %1180
      %1182 = vrot.lane.b32.xlu0 %v980, 1
      %v1183 = vpop.permute.xlu0 %1182
      %v1184 = vsel %vm521, %v1183, %v1181
      %v1188 = vsel %vm524, %v1181, %v1183
      %v1190 = vmul.bf16 %v1188, %v532
      %v1191 = vmul.bf16 %v1184, %v536
      %1192 = vrot.lane.b32.xlu0 %v336, 100
      %v1193 = vpop.permute.xlu0 %1192
      %v1195 = vsel %vm339, %v1193, 0
      %v1198 = vsel %vm343, %v1190, 0
      %v1201 = vsel %vm343, %v1191, 0
      %1203 = vmatprep.subr.bf16.mxu0 0
      %1204 = vmatpush1.bf16.msra.mxu0 0
      %1205 = vmatprep.subr.bf16.mxu0 0
      %1206 = vmatpush1.bf16.msra.mxu0 0
      %1207 = vmatprep.subr.bf16.mxu0 0
      %1208 = vmatpush1.bf16.msra.mxu0 0
      %1209 = vmatprep.subr.bf16.mxu0 0
      %1210 = vmatpush1.bf16.msra.mxu0 0
      %1211 = vmatprep.subr.bf16.mxu0 0
      %1212 = vmatpush1.bf16.msra.mxu0 0
      %1213 = vmatprep.subr.bf16.mxu0 0
      %1214 = vmatpush1.bf16.msra.mxu0 0
      %1215 = vmatprep.subr.bf16.mxu0 0
      %1216 = vmatpush1.bf16.msra.mxu0 0
      %1217 = vmatprep.subr.bf16.mxu0 %v1201
      %1218 = vmatpush1.bf16.msra.mxu0 %v1198
      %1219 = vmatprep.subr.bf16.mxu0 0
      %1220 = vmatpush2.bf16.msra.mxu0 0
      %1221 = vmatprep.subr.bf16.mxu0 0
      %1222 = vmatpush2.bf16.msra.mxu0 0
      %1223 = vmatprep.subr.bf16.mxu0 0
      %1224 = vmatpush2.bf16.msra.mxu0 0
      %1225 = vmatprep.subr.bf16.mxu0 0
      %1226 = vmatpush2.bf16.msra.mxu0 0
      %1227 = vmatprep.subr.bf16.mxu0 0
      %1228 = vmatpush2.bf16.msra.mxu0 0
      %1229 = vmatprep.subr.bf16.mxu0 0
      %1230 = vmatpush2.bf16.msra.mxu0 0
      %1231 = vmatprep.subr.bf16.mxu0 0
      %1232 = vmatpush2.bf16.msra.mxu0 0
      %1233 = vmatprep.subr.bf16.mxu0 0
      %1234 = vmatpush2.bf16.msra.mxu0 0
      %1235 = vmatprep.mubr.bf16.mxu0 0
      %1236 = vmatmul.mubr.bf16.gmra.mxu0 %v1195
      %v1237 = vpop.f32.mrf.mxu0
      %v1238 = vadd.f32 0.0, %v1237
      %v1239 = vpop.f32.mrf.mxu0
      %v1240 = vadd.f32 0.0, %v1239
      %v1241 = vpop.f32.mrf.mxu0
      %v1242 = vpop.f32.mrf.mxu0
      %1243 = vdwg.mxu0
      %v1244 = vadd.f32 %v1178, %v1238
      %v1245 = vadd.f32 %v1179, %v1240
      %v1248 = vcombine.low %v596, %v600
      %v1250 = vunpack.c.l.s4 1983009808
      %v1251 = vunpack.c.0.s8 %v1250
      %v1252 = vlaneseq
      %v1253 = vshrl.u32 %v1252, 7
      %v1254 = vsub.s32 %v1251, %v1253
      %v1255 = vrot.slane %v1248, %v1254
      %v1257 = vmul.bf16 %v972, %v1255
      %1258 = vrot.lane.b32.xlu0 %v336, 92
      %v1259 = vpop.permute.xlu0 %1258
      %v1262 = vunpack.c.l.s4 1983009808
      %v1263 = vunpack.c.0.s8 %v1262
      %v1264 = vlaneseq
      %v1265 = vshrl.u32 %v1264, 7
      %v1266 = vsub.s32 %v1263, %v1265
      %v1267 = vrot.slane %v1257, %v1266
      %v1268 = vcombine.high %v1267, %v1267
      %v1270 = vsel %vm339, %v1259, 0
      %v1273 = vsel %vm343, %v1267, 0
      %v1276 = vsel %vm343, %v1268, 0
      %1278 = vmatprep.subr.bf16.mxu0 0
      %1279 = vmatpush1.bf16.msra.mxu0 0
      %1280 = vmatprep.subr.bf16.mxu0 0
      %1281 = vmatpush1.bf16.msra.mxu0 0
      %1282 = vmatprep.subr.bf16.mxu0 0
      %1283 = vmatpush1.bf16.msra.mxu0 0
      %1284 = vmatprep.subr.bf16.mxu0 0
      %1285 = vmatpush1.bf16.msra.mxu0 0
      %1286 = vmatprep.subr.bf16.mxu0 0
      %1287 = vmatpush1.bf16.msra.mxu0 0
      %1288 = vmatprep.subr.bf16.mxu0 0
      %1289 = vmatpush1.bf16.msra.mxu0 0
      %1290 = vmatprep.subr.bf16.mxu0 0
      %1291 = vmatpush1.bf16.msra.mxu0 0
      %1292 = vmatprep.subr.bf16.mxu0 %v1276
      %1293 = vmatpush1.bf16.msra.mxu0 %v1273
      %1294 = vmatprep.subr.bf16.mxu0 0
      %1295 = vmatpush2.bf16.msra.mxu0 0
      %1296 = vmatprep.subr.bf16.mxu0 0
      %1297 = vmatpush2.bf16.msra.mxu0 0
      %1298 = vmatprep.subr.bf16.mxu0 0
      %1299 = vmatpush2.bf16.msra.mxu0 0
      %1300 = vmatprep.subr.bf16.mxu0 0
      %1301 = vmatpush2.bf16.msra.mxu0 0
      %1302 = vmatprep.subr.bf16.mxu0 0
      %1303 = vmatpush2.bf16.msra.mxu0 0
      %1304 = vmatprep.subr.bf16.mxu0 0
      %1305 = vmatpush2.bf16.msra.mxu0 0
      %1306 = vmatprep.subr.bf16.mxu0 0
      %1307 = vmatpush2.bf16.msra.mxu0 0
      %1308 = vmatprep.subr.bf16.mxu0 0
      %1309 = vmatpush2.bf16.msra.mxu0 0
      %1310 = vmatprep.mubr.bf16.mxu0 0
      %1311 = vmatmul.mubr.bf16.gmra.mxu0 %v1270
      %v1312 = vpop.f32.mrf.mxu0
      %v1313 = vadd.f32 0.0, %v1312
      %v1314 = vpop.f32.mrf.mxu0
      %v1315 = vadd.f32 0.0, %v1314
      %v1316 = vpop.f32.mrf.mxu0
      %v1317 = vpop.f32.mrf.mxu0
      %1318 = vdwg.mxu0
      %v1319 = vadd.f32 %v1244, %v1313
      %v1320 = vadd.f32 %v1245, %v1315
      %1321 = vrot.lane.b32.xlu0 %v980, 127
      %v1322 = vpop.permute.xlu0 %1321
      %1323 = vrot.lane.b32.xlu0 %v981, 127
      %v1324 = vpop.permute.xlu0 %1323
      %v1325 = vsel %vm661, %v1322, %v1324
      %v1329 = vsel %vm664, %v1324, %v1322
      %v1331 = vmul.bf16 %v1325, %v672
      %v1332 = vmul.bf16 %v1329, %v676
      %1333 = vrot.lane.b32.xlu0 %v336, 84
      %v1334 = vpop.permute.xlu0 %1333
      %v1336 = vsel %vm339, %v1334, 0
      %v1339 = vsel %vm343, %v1331, 0
      %v1342 = vsel %vm343, %v1332, 0
      %1344 = vmatprep.subr.bf16.mxu0 0
      %1345 = vmatpush1.bf16.msra.mxu0 0
      %1346 = vmatprep.subr.bf16.mxu0 0
      %1347 = vmatpush1.bf16.msra.mxu0 0
      %1348 = vmatprep.subr.bf16.mxu0 0
      %1349 = vmatpush1.bf16.msra.mxu0 0
      %1350 = vmatprep.subr.bf16.mxu0 0
      %1351 = vmatpush1.bf16.msra.mxu0 0
      %1352 = vmatprep.subr.bf16.mxu0 0
      %1353 = vmatpush1.bf16.msra.mxu0 0
      %1354 = vmatprep.subr.bf16.mxu0 0
      %1355 = vmatpush1.bf16.msra.mxu0 0
      %1356 = vmatprep.subr.bf16.mxu0 0
      %1357 = vmatpush1.bf16.msra.mxu0 0
      %1358 = vmatprep.subr.bf16.mxu0 %v1342
      %1359 = vmatpush1.bf16.msra.mxu0 %v1339
      %1360 = vmatprep.subr.bf16.mxu0 0
      %1361 = vmatpush2.bf16.msra.mxu0 0
      %1362 = vmatprep.subr.bf16.mxu0 0
      %1363 = vmatpush2.bf16.msra.mxu0 0
      %1364 = vmatprep.subr.bf16.mxu0 0
      %1365 = vmatpush2.bf16.msra.mxu0 0
      %1366 = vmatprep.subr.bf16.mxu0 0
      %1367 = vmatpush2.bf16.msra.mxu0 0
      %1368 = vmatprep.subr.bf16.mxu0 0
      %1369 = vmatpush2.bf16.msra.mxu0 0
      %1370 = vmatprep.subr.bf16.mxu0 0
      %1371 = vmatpush2.bf16.msra.mxu0 0
      %1372 = vmatprep.subr.bf16.mxu0 0
      %1373 = vmatpush2.bf16.msra.mxu0 0
      %1374 = vmatprep.subr.bf16.mxu0 0
      %1375 = vmatpush2.bf16.msra.mxu0 0
      %1376 = vmatprep.mubr.bf16.mxu0 0
      %1377 = vmatmul.mubr.bf16.gmra.mxu0 %v1336
      %v1378 = vpop.f32.mrf.mxu0
      %v1379 = vadd.f32 0.0, %v1378
      %v1380 = vpop.f32.mrf.mxu0
      %v1381 = vadd.f32 0.0, %v1380
      %v1382 = vpop.f32.mrf.mxu0
      %v1383 = vpop.f32.mrf.mxu0
      %1384 = vdwg.mxu0
      %v1385 = vadd.f32 %v1319, %v1379
      %v1386 = vadd.f32 %v1320, %v1381
      %1387 = vrot.lane.b32.xlu0 %v980, 113
      %v1388 = vpop.permute.xlu0 %1387
      %1389 = vrot.lane.b32.xlu0 %v981, 113
      %v1390 = vpop.permute.xlu0 %1389
      %v1391 = vsel %vm737, %v1388, %v1390
      %v1395 = vsel %vm740, %v1390, %v1388
      %v1397 = vmul.bf16 %v1391, %v748
      %v1398 = vmul.bf16 %v1395, %v752
      %1399 = vrot.lane.b32.xlu0 %v336, 76
      %v1400 = vpop.permute.xlu0 %1399
      %v1402 = vsel %vm339, %v1400, 0
      %v1405 = vsel %vm343, %v1397, 0
      %v1408 = vsel %vm343, %v1398, 0
      %1410 = vmatprep.subr.bf16.mxu0 0
      %1411 = vmatpush1.bf16.msra.mxu0 0
      %1412 = vmatprep.subr.bf16.mxu0 0
      %1413 = vmatpush1.bf16.msra.mxu0 0
      %1414 = vmatprep.subr.bf16.mxu0 0
      %1415 = vmatpush1.bf16.msra.mxu0 0
      %1416 = vmatprep.subr.bf16.mxu0 0
      %1417 = vmatpush1.bf16.msra.mxu0 0
      %1418 = vmatprep.subr.bf16.mxu0 0
      %1419 = vmatpush1.bf16.msra.mxu0 0
      %1420 = vmatprep.subr.bf16.mxu0 0
      %1421 = vmatpush1.bf16.msra.mxu0 0
      %1422 = vmatprep.subr.bf16.mxu0 0
      %1423 = vmatpush1.bf16.msra.mxu0 0
      %1424 = vmatprep.subr.bf16.mxu0 %v1408
      %1425 = vmatpush1.bf16.msra.mxu0 %v1405
      %1426 = vmatprep.subr.bf16.mxu0 0
      %1427 = vmatpush2.bf16.msra.mxu0 0
      %1428 = vmatprep.subr.bf16.mxu0 0
      %1429 = vmatpush2.bf16.msra.mxu0 0
      %1430 = vmatprep.subr.bf16.mxu0 0
      %1431 = vmatpush2.bf16.msra.mxu0 0
      %1432 = vmatprep.subr.bf16.mxu0 0
      %1433 = vmatpush2.bf16.msra.mxu0 0
      %1434 = vmatprep.subr.bf16.mxu0 0
      %1435 = vmatpush2.bf16.msra.mxu0 0
      %1436 = vmatprep.subr.bf16.mxu0 0
      %1437 = vmatpush2.bf16.msra.mxu0 0
      %1438 = vmatprep.subr.bf16.mxu0 0
      %1439 = vmatpush2.bf16.msra.mxu0 0
      %1440 = vmatprep.subr.bf16.mxu0 0
      %1441 = vmatpush2.bf16.msra.mxu0 0
      %1442 = vmatprep.mubr.bf16.mxu0 0
      %1443 = vmatmul.mubr.bf16.gmra.mxu0 %v1402
      %v1444 = vpop.f32.mrf.mxu0
      %v1445 = vadd.f32 0.0, %v1444
      %v1446 = vpop.f32.mrf.mxu0
      %v1447 = vadd.f32 0.0, %v1446
      %v1448 = vpop.f32.mrf.mxu0
      %v1449 = vpop.f32.mrf.mxu0
      %1450 = vdwg.mxu0
      %v1451 = vadd.f32 %v1385, %v1445
      %v1452 = vadd.f32 %v1386, %v1447
      %1453 = vrot.lane.b32.xlu0 %v980, 112
      %v1454 = vpop.permute.xlu0 %1453
      %1455 = vrot.lane.b32.xlu0 %v981, 112
      %v1456 = vpop.permute.xlu0 %1455
      %v1457 = vsel %vm813, %v1454, %v1456
      %v1461 = vsel %vm816, %v1456, %v1454
      %v1463 = vmul.bf16 %v1457, %v824
      %v1464 = vmul.bf16 %v1461, %v828
      %1465 = vrot.lane.b32.xlu0 %v336, 68
      %v1466 = vpop.permute.xlu0 %1465
      %v1468 = vsel %vm339, %v1466, 0
      %v1471 = vsel %vm343, %v1463, 0
      %v1474 = vsel %vm343, %v1464, 0
      %1476 = vmatprep.subr.bf16.mxu0 0
      %1477 = vmatpush1.bf16.msra.mxu0 0
      %1478 = vmatprep.subr.bf16.mxu0 0
      %1479 = vmatpush1.bf16.msra.mxu0 0
      %1480 = vmatprep.subr.bf16.mxu0 0
      %1481 = vmatpush1.bf16.msra.mxu0 0
      %1482 = vmatprep.subr.bf16.mxu0 0
      %1483 = vmatpush1.bf16.msra.mxu0 0
      %1484 = vmatprep.subr.bf16.mxu0 0
      %1485 = vmatpush1.bf16.msra.mxu0 0
      %1486 = vmatprep.subr.bf16.mxu0 0
      %1487 = vmatpush1.bf16.msra.mxu0 0
      %1488 = vmatprep.subr.bf16.mxu0 0
      %1489 = vmatpush1.bf16.msra.mxu0 0
      %1490 = vmatprep.subr.bf16.mxu0 %v1474
      %1491 = vmatpush1.bf16.msra.mxu0 %v1471
      %1492 = vmatprep.subr.bf16.mxu0 0
      %1493 = vmatpush2.bf16.msra.mxu0 0
      %1494 = vmatprep.subr.bf16.mxu0 0
      %1495 = vmatpush2.bf16.msra.mxu0 0
      %1496 = vmatprep.subr.bf16.mxu0 0
      %1497 = vmatpush2.bf16.msra.mxu0 0
      %1498 = vmatprep.subr.bf16.mxu0 0
      %1499 = vmatpush2.bf16.msra.mxu0 0
      %1500 = vmatprep.subr.bf16.mxu0 0
      %1501 = vmatpush2.bf16.msra.mxu0 0
      %1502 = vmatprep.subr.bf16.mxu0 0
      %1503 = vmatpush2.bf16.msra.mxu0 0
      %1504 = vmatprep.subr.bf16.mxu0 0
      %1505 = vmatpush2.bf16.msra.mxu0 0
      %1506 = vmatprep.subr.bf16.mxu0 0
      %1507 = vmatpush2.bf16.msra.mxu0 0
      %1508 = vmatprep.mubr.bf16.mxu0 0
      %1509 = vmatmul.mubr.bf16.gmra.mxu0 %v1468
      %v1510 = vpop.f32.mrf.mxu0
      %v1511 = vadd.f32 0.0, %v1510
      %v1512 = vpop.f32.mrf.mxu0
      %v1513 = vadd.f32 0.0, %v1512
      %v1514 = vpop.f32.mrf.mxu0
      %v1515 = vpop.f32.mrf.mxu0
      %1516 = vdwg.mxu0
      %v1517 = vadd.f32 %v1451, %v1511
      %v1518 = vadd.f32 %v1452, %v1513
      %1519 = vrot.lane.b32.xlu0 %v980, 111
      %v1520 = vpop.permute.xlu0 %1519
      %1521 = vrot.lane.b32.xlu0 %v981, 111
      %v1522 = vpop.permute.xlu0 %1521
      %v1523 = vsel %vm889, %v1520, %v1522
      %v1527 = vsel %vm892, %v1522, %v1520
      %v1529 = vmul.bf16 %v1523, %v908
      %v1530 = vmul.bf16 %v1527, %v915
      %1531 = vrot.lane.b32.xlu0 %v336, 60
      %v1532 = vpop.permute.xlu0 %1531
      %v1534 = vsel %vm339, %v1532, 0
      %v1537 = vsel %vm343, %v1529, 0
      %v1540 = vsel %vm343, %v1530, 0
      %1542 = vmatprep.subr.bf16.mxu0 0
      %1543 = vmatpush1.bf16.msra.mxu0 0
      %1544 = vmatprep.subr.bf16.mxu0 0
      %1545 = vmatpush1.bf16.msra.mxu0 0
      %1546 = vmatprep.subr.bf16.mxu0 0
      %1547 = vmatpush1.bf16.msra.mxu0 0
      %1548 = vmatprep.subr.bf16.mxu0 0
      %1549 = vmatpush1.bf16.msra.mxu0 0
      %1550 = vmatprep.subr.bf16.mxu0 0
      %1551 = vmatpush1.bf16.msra.mxu0 0
      %1552 = vmatprep.subr.bf16.mxu0 0
      %1553 = vmatpush1.bf16.msra.mxu0 0
      %1554 = vmatprep.subr.bf16.mxu0 0
      %1555 = vmatpush1.bf16.msra.mxu0 0
      %1556 = vmatprep.subr.bf16.mxu0 %v1540
      %1557 = vmatpush1.bf16.msra.mxu0 %v1537
      %1558 = vmatprep.subr.bf16.mxu0 0
      %1559 = vmatpush2.bf16.msra.mxu0 0
      %1560 = vmatprep.subr.bf16.mxu0 0
      %1561 = vmatpush2.bf16.msra.mxu0 0
      %1562 = vmatprep.subr.bf16.mxu0 0
      %1563 = vmatpush2.bf16.msra.mxu0 0
      %1564 = vmatprep.subr.bf16.mxu0 0
      %1565 = vmatpush2.bf16.msra.mxu0 0
      %1566 = vmatprep.subr.bf16.mxu0 0
      %1567 = vmatpush2.bf16.msra.mxu0 0
      %1568 = vmatprep.subr.bf16.mxu0 0
      %1569 = vmatpush2.bf16.msra.mxu0 0
      %1570 = vmatprep.subr.bf16.mxu0 0
      %1571 = vmatpush2.bf16.msra.mxu0 0
      %1572 = vmatprep.subr.bf16.mxu0 0
      %1573 = vmatpush2.bf16.msra.mxu0 0
      %1574 = vmatprep.mubr.bf16.mxu0 0
      %1575 = vmatmul.mubr.bf16.gmra.mxu0 %v1534
      %v1576 = vpop.f32.mrf.mxu0
      %v1577 = vadd.f32 0.0, %v1576
      %v1578 = vpop.f32.mrf.mxu0
      %v1579 = vadd.f32 0.0, %v1578
      %v1580 = vpop.f32.mrf.mxu0
      %v1581 = vpop.f32.mrf.mxu0
      %1582 = vdwg.mxu0
      %v1583 = vadd.f32 %v1517, %v1577
      %v1584 = vadd.f32 %v1518, %v1579
      %v1585 = vpack.c.bf16 %v1583, %v1583
      %v1586 = vpack.c.bf16 %v1584, %v1584
      %v1589 = vcombine.low %v1585, %v1586
      %v1591 = vunpack.c.l.s4 1983009808
      %v1592 = vunpack.c.0.s8 %v1591
      %v1593 = vlaneseq
      %v1594 = vshrl.u32 %v1593, 7
      %v1595 = vsub.s32 %v1592, %v1594
      %v1596 = vrot.slane %v1589, %v1595
      %1598 = vst [vmem:[%s251] sm:$0xf] %v1596
      %vm1599 = vcmask 1043456
      %v1600 = vsel %vm1599, %v1583, 0.0
      %v1601 = vsel %vm1599, %v1584, 0.0
      %v1602 = vadd.f32 %v1600, %v1601
      %1603 = vadd.xlane.f32.xlu0 %v1602
      %v1604 = vpop.xlane.xlu0 %1603
      %v1605 = vmul.f32 %v1583, %v1583
      %v1606 = vmul.f32 %v1584, %v1584
      %v1607 = vsel %vm1599, %v1605, 0.0
      %v1608 = vsel %vm1599, %v1606, 0.0
      %v1609 = vadd.f32 %v1607, %v1608
      %1610 = vadd.xlane.f32.xlu0 %v1609
      %v1611 = vpop.xlane.xlu0 %1610
      %v1612 = vsel %vm524, %v1604, %v1611
      %vm1613 = vcmask 11264
      %1614 = vst.msk [vmem:[%s255] sm:$0xf] %vm1613, %v1612
      %p1615 = scmp.lt.s32.totalorder %s17, 1
      %s1616 = scalar_select %p1615, %s17, 1
      %s1617 = smul.addr %s1616, 2
      %s1618 = smul.addr %s1617, 2
      %s1619 = scalar_lea.vmem %s4, %s1618
      %p1620 = scmp.lt.s32.totalorder %s17, 1
      %s1621 = scalar_select %p1620, %s17, 1
      %s1622 = smul.addr %s1621, 4
      %s1623 = scalar_lea.vmem %s5, %s1622
      // Predicated region
      $region37: #{up_forward.5} parent=35 // pred_check
        %p1624 = pneg %p129
      $region38: #{up_forward.5} parent=35 // pred_check_branch
        %1626 = sbr.rel (%p1624) target = $region40
      $region39: #{up_forward.5} parent=35 // pred_region
        _
      $region40: #{up_forward.5} parent=35 // pred_fallthru
        _
      // Predicated region
      $region41: #{up_forward.5} parent=35 // pred_check
        %p1627 = pneg %p155
      $region42: #{up_forward.5} parent=35 // pred_check_branch
        %1629 = sbr.rel (%p1627) target = $region44
      $region43: #{up_forward.5} parent=35 // pred_region
        _
      $region44: #{up_forward.5} parent=35 // pred_fallthru
        _
    $region36: #{up_forward.5} parent=5 // pred_fallthru
      _
    %p1630 = scmp.le.s32.totalorder 2, %s12
    // Predicated region
    $region45: #{up_forward.5} parent=5 // pred_check
      %p1631 = pneg %p1630
    $region46: #{up_forward.5} parent=5 // pred_check_branch
      %1633 = sbr.rel (%p1631) target = $region48
    $region47: #{up_forward.5} parent=5 // pred_region
      %s1634 = ssub.s32 %s12, 2
      // Predicated region
      $region49: #{up_forward.5} parent=47 // pred_check
        %p1635 = pneg %p135
      $region50: #{up_forward.5} parent=47 // pred_check_branch
        %1637 = sbr.rel (%p1635) target = $region52
      $region51: #{up_forward.5} parent=47 // pred_region
        %p1638 = scmp.lt.s32.totalorder %s18, 1
        %s1639 = scalar_select %p1638, %s18, 1
        %s1640 = smul.addr %s1639, 2
        %s1641 = smul.addr %s1640, 2
        %s1642 = scalar_lea.vmem %s4, %s1641
      $region52: #{up_forward.5} parent=47 // pred_fallthru
        _
      // Predicated region
      $region53: #{up_forward.5} parent=47 // pred_check
        %p1643 = pneg %p161
      $region54: #{up_forward.5} parent=47 // pred_check_branch
        %1645 = sbr.rel (%p1643) target = $region56
      $region55: #{up_forward.5} parent=47 // pred_region
        %p1646 = scmp.lt.s32.totalorder %s18, 1
        %s1647 = scalar_select %p1646, %s18, 1
        %s1648 = smul.addr %s1647, 4
        %s1649 = scalar_lea.vmem %s5, %s1648
      $region56: #{up_forward.5} parent=47 // pred_fallthru
        _
    $region48: #{up_forward.5} parent=5 // pred_fallthru
      _
  $region6: #{up_forward.5} parent=0 // loop_footer
    %s16 = sadd.s32 1, %s12
  $region7: #{up_forward.5} parent=0 // loop_footer_branch
    %11 = sbr.rel target = $region3
  $region8: #{up_forward.5} parent=0 // loop_exit
    _

</llo_original>
